<compile_context>
chip_gen: v5e
topology: v5e:2x2
jax: 0.10.0
libtpu: 0.0.40
codegen_flags: <defaults>
</compile_context>

<pallas_src>
import functools
import math

import jax
import jax.numpy as jnp
from jax.experimental import pallas as pl
from jax.experimental.pallas import tpu as pltpu

LN_EPS = 1e-5                      # nn.LayerNorm default
DIM_FEEDFORWARD = 2048             # nn.TransformerEncoderLayer default
VMEM_LIMIT_BYTES = 32 * 1024 * 1024


# ------------------------------ in-kernel helpers ---------------------------- #

def _mm(a, w):
    # a: (N, in) bf16, w: (out, in) bf16 (torch layout) -> (N, out) f32 accum.
    return jax.lax.dot_general(a, w, (((1,), (1,)), ((), ())),
                               preferred_element_type=jnp.float32)


def _layer_norm(z, g, b):
    # f32 statistics (keeps parity with the f32 PyTorch reference).
    mean = jnp.mean(z, axis=-1, keepdims=True)
    var = jnp.mean(jnp.square(z - mean), axis=-1, keepdims=True)
    return (z - mean) * jax.lax.rsqrt(var + LN_EPS) * g + b


# ------------------------------ kernels -------------------------------------- #

def embed_gather_kernel(idx_ref, row_ref, out_ref):
    # row_ref is the (1, 1, D) embedding-table row selected by the
    # data-dependent index_map (scalar-prefetched flat index); plain copy.
    del idx_ref
    out_ref[...] = row_ref[...]


def encoder_layer_kernel(x_ref,
                         wqkv_ref, bqkv_ref, woh_ref, bo_ref,
                         ln1g_ref, ln1b_ref,
                         w1_ref, b1_ref, w2_ref, b2_ref,
                         ln2g_ref, ln2b_ref,
                         out_ref, *, nhead, scale):
    bb, s, d = x_ref.shape
    dh = d // nhead
    n = bb * s

    x = x_ref[...].reshape(n, d)                                    # f32 residual stream

    # ---- fused QKV projection: one lane-dense (n, 3*d) MXU matmul ----
    qkv = _mm(x.astype(jnp.bfloat16), wqkv_ref[...]) + bqkv_ref[...]

    # ---- multi-head self-attention; head split/merge stays in-register ----
    # The per-head out-projection slices of Wo are pre-arranged as
    # woh[h] = Wo[:, h*dh:(h+1)*dh], so summing per-head projections is exactly
    # concat(heads) @ Wo.T without any in-kernel concatenation.
    attn = None
    for h in range(nhead):
        qh = (qkv[:, h * dh:(h + 1) * dh] * scale).reshape(bb, s, dh)
        kh = qkv[:, d + h * dh:d + (h + 1) * dh].reshape(bb, s, dh)
        vh = qkv[:, 2 * d + h * dh:2 * d + (h + 1) * dh].reshape(bb, s, dh)
        sc = jnp.einsum('bqd,bkd->bqk', qh.astype(jnp.bfloat16),
                        kh.astype(jnp.bfloat16),
                        preferred_element_type=jnp.float32)
        m = jnp.max(sc, axis=-1, keepdims=True)
        e = jnp.exp(sc - m)                                          # f32 softmax
        p = e * pl.reciprocal(jnp.sum(e, axis=-1, keepdims=True), approx=True)
        oh = jnp.einsum('bqk,bkd->bqd', p.astype(jnp.bfloat16),
                        vh.astype(jnp.bfloat16),
                        preferred_element_type=jnp.float32)
        ph = _mm(oh.reshape(n, dh).astype(jnp.bfloat16), woh_ref[h])
        attn = ph if attn is None else attn + ph
    y = attn + bo_ref[...]
    x = _layer_norm(x + y, ln1g_ref[...], ln1b_ref[...])             # post-norm #1

    # ---- FFN: linear1 -> relu -> linear2, residual + LayerNorm #2 ----
    h1 = jnp.maximum(_mm(x.astype(jnp.bfloat16), w1_ref[...]) + b1_ref[...], 0.0)
    y = _mm(h1.astype(jnp.bfloat16), w2_ref[...]) + b2_ref[...]
    x = _layer_norm(x + y, ln2g_ref[...], ln2b_ref[...])

    out_ref[...] = x.reshape(bb, s, d)


def heads_kernel(x_ref, w_ref, b_ref, out_ref):
    # Per-feature DynamicLinear head (one grid step per feature).
    # x: (1, B, D) f32 ; w: (1, Opad, D) bf16 ; b: (1, 1, Opad) f32 ;
    # out: (1, B, Opad) f32 — lane-dense (Opad multiple of 128).
    x = x_ref[0].astype(jnp.bfloat16)                                # (B, D)
    y = _mm(x, w_ref[0])                                             # (B, Opad)
    out_ref[0] = y + b_ref[0]


# ------------------------------ wrappers -------------------------------------- #

def embed(batch_idx, tables):
    # batch_idx: (B, F) int32 ; tables: (F, Vmax, D) f32
    B, F = batch_idx.shape
    _, Vmax, D = tables.shape
    flat_idx = (batch_idx.astype(jnp.int32)
                + jnp.arange(F, dtype=jnp.int32)[None, :] * Vmax).reshape(B * F)
    table_rows = tables.reshape(F * Vmax, 1, D)
    out = pl.pallas_call(
        embed_gather_kernel,
        grid_spec=pltpu.PrefetchScalarGridSpec(
            num_scalar_prefetch=1,
            grid=(B * F,),
            in_specs=[pl.BlockSpec((1, 1, D), lambda i, idx: (idx[i], 0, 0))],
            out_specs=pl.BlockSpec((1, 1, D), lambda i, idx: (i, 0, 0))),
        out_shape=jax.ShapeDtypeStruct((B * F, 1, D), jnp.float32),
        compiler_params=pltpu.CompilerParams(
            dimension_semantics=("arbitrary",),
            vmem_limit_bytes=VMEM_LIMIT_BYTES),
    )(flat_idx, table_rows)
    return out.reshape(B, F, D)


def encoder_layer(x, p, nhead, block_b=None):
    B, S, D = x.shape
    if block_b is None:
        block_b = max(1, min(B, 256 // max(S, 1)))   # ~256 rows per tile
    block_b = max(1, min(block_b, B))
    while B % block_b:
        block_b -= 1
    grid = (B // block_b,)

    def resident(shape):
        nd = len(shape)
        # constant block index -> weight DMA'd once, stays resident in VMEM
        return pl.BlockSpec(shape, lambda i, _nd=nd: (0,) * _nd)

    weights = (p['wqkv'], p['bqkv'], p['wo_h'], p['bo'],
               p['ln1_g'], p['ln1_b'],
               p['w1'], p['b1'], p['w2'], p['b2'],
               p['ln2_g'], p['ln2_b'])

    kernel = functools.partial(encoder_layer_kernel, nhead=nhead,
                               scale=1.0 / math.sqrt(D // nhead))
    return pl.pallas_call(
        kernel,
        grid=grid,
        in_specs=[pl.BlockSpec((block_b, S, D), lambda i: (i, 0, 0))]
                 + [resident(w.shape) for w in weights],
        out_specs=pl.BlockSpec((block_b, S, D), lambda i: (i, 0, 0)),
        out_shape=jax.ShapeDtypeStruct((B, S, D), jnp.float32),
        input_output_aliases={0: 0},        # residual stream reuses its HBM buffer
        compiler_params=pltpu.CompilerParams(
            dimension_semantics=("parallel",),
            vmem_limit_bytes=VMEM_LIMIT_BYTES),
    )(x, *weights)


def dynamic_linear_heads(x, head_w, head_b, out_dims):
    # x: (B, F, D) f32 ; head_w: (F, Opad, D) bf16 ; head_b: (F, 1, Opad) f32
    B, F, D = x.shape
    Opad = head_w.shape[1]
    xT = jnp.transpose(x, (1, 0, 2))                                 # (F, B, D)
    logits = pl.pallas_call(
        heads_kernel,
        grid=(F,),
        in_specs=[pl.BlockSpec((1, B, D), lambda f: (f, 0, 0)),
                  pl.BlockSpec((1, Opad, D), lambda f: (f, 0, 0)),
                  pl.BlockSpec((1, 1, Opad), lambda f: (f, 0, 0))],
        out_specs=pl.BlockSpec((1, B, Opad), lambda f: (f, 0, 0)),
        out_shape=jax.ShapeDtypeStruct((F, B, Opad), jnp.float32),
        compiler_params=pltpu.CompilerParams(
            dimension_semantics=("parallel",),
            vmem_limit_bytes=VMEM_LIMIT_BYTES),
    )(xT, head_w, head_b)
    # DynamicLinearLayer returns a python list with per-feature output widths.
    return [logits[i, :, :o] for i, o in enumerate(out_dims)]


def macode_forward(params, batch, config, out_dims, block_b=None):
    # batch: (B, num_features) float codes (as the torch module gets, cast to long)
    idx = batch.astype(jnp.int32)
    x = embed(idx, params['emb_tables'])                             # (B, F, D)
    for lp in params['layers']:
        x = encoder_layer(x, lp, config['num_transformer_heads'], block_b=block_b)
    return dynamic_linear_heads(x, params['head_w'], params['head_b'], out_dims)


# ------------------------------ parameters ------------------------------------ #

def kaiming_uniform(key, shape, fan_in):
    bound = math.sqrt(2.0) * math.sqrt(3.0 / fan_in)
    return jax.random.uniform(key, shape, jnp.float32, -bound, bound)


def init_params(key, config, n_cont, num_categories):
    D = config['dim_transformer']
    H = config['num_transformer_heads']
    Dh = D // H
    FF = DIM_FEEDFORWARD
    bins = config['bins']
    F = n_cont + len(num_categories)
    vocab = [bins + 1] * n_cont + [c + 1 for c in num_categories]
    Vmax = max(vocab)
    out_dims = [bins] * n_cont + list(num_categories)
    Opad = ((max(out_dims) + 127) // 128) * 128      # lane-dense head output

    keys = iter(jax.random.split(key, 256))

    tables = jnp.zeros((F, Vmax, D), jnp.float32)
    for i, v in enumerate(vocab):
        tables = tables.at[i, :v, :].set(kaiming_uniform(next(keys), (v, D), D))

    layers = []
    for _ in range(config['num_transformer_layer']):
        wqkv = jax.random.normal(next(keys), (3 * D, D)) / math.sqrt(D)
        wo = jax.random.normal(next(keys), (D, D)) / math.sqrt(D)
        # out-proj weight rearranged per head: woh[h] = Wo[:, h*Dh:(h+1)*Dh]
        wo_h = wo.reshape(D, H, Dh).transpose(1, 0, 2)               # (H, D, Dh)
        layers.append({
            'wqkv':  wqkv.astype(jnp.bfloat16),
            'bqkv':  jnp.zeros((1, 3 * D), jnp.float32),
            'wo_h':  wo_h.astype(jnp.bfloat16),
            'bo':    jnp.zeros((1, D), jnp.float32),
            'ln1_g': jnp.ones((1, D), jnp.float32),
            'ln1_b': jnp.zeros((1, D), jnp.float32),
            'w1':   (jax.random.normal(next(keys), (FF, D)) / math.sqrt(D)).astype(jnp.bfloat16),
            'b1':    jnp.zeros((1, FF), jnp.float32),
            'w2':   (jax.random.normal(next(keys), (D, FF)) / math.sqrt(FF)).astype(jnp.bfloat16),
            'b2':    jnp.zeros((1, D), jnp.float32),
            'ln2_g': jnp.ones((1, D), jnp.float32),
            'ln2_b': jnp.zeros((1, D), jnp.float32),
        })

    head_w = jnp.zeros((F, Opad, D), jnp.float32)
    head_b = jnp.zeros((F, 1, Opad), jnp.float32)
    for i, o in enumerate(out_dims):
        head_w = head_w.at[i, :o, :].set(kaiming_uniform(next(keys), (o, D), D))
        head_b = head_b.at[i, 0, :o].set(
            jax.random.uniform(next(keys), (o,), jnp.float32,
                               -1.0 / math.sqrt(D), 1.0 / math.sqrt(D)))

    params = {'emb_tables': tables, 'layers': layers,
              'head_w': head_w.astype(jnp.bfloat16), 'head_b': head_b}
    return params, out_dims


# ------------------------------ main ------------------------------------------- #
# TODO(synk): generate_synthetic_data / impute (Categorical sampling + pandas
# post-processing) are host-side inference loops, not kernels; only forward() is
# implemented here.  Dropout is p=0.0 in the reference, so it is a no-op.

if __name__ == "__main__":
    config = {
        'dim_transformer': 32,
        'num_transformer_heads': 4,
        'num_transformer_layer': 2,
        'bins': 10,
        'batch_size': 8,
    }
    n_cont = 3
    num_categories = [4, 5, 6]
    B = config['batch_size']
    F = n_cont + len(num_categories)

    key = jax.random.PRNGKey(0)
    pkey, dkey = jax.random.split(key)
    params, out_dims = init_params(pkey, config, n_cont, num_categories)

    # Build an input batch of integer codes (floats, like the torch module gets).
    dkeys = jax.random.split(dkey, F)
    cols = []
    for i in range(n_cont):
        cols.append(jax.random.randint(dkeys[i], (B,), 0, config['bins'] + 1))
    for j, c in enumerate(num_categories):
        cols.append(jax.random.randint(dkeys[n_cont + j], (B,), 0, c + 1))
    batch = jnp.stack(cols, axis=1).astype(jnp.float32)              # (B, F) = (8, 6)

    fwd = jax.jit(functools.partial(macode_forward, config=config,
                                    out_dims=out_dims, block_b=4))
    preds = fwd(params, batch)
    preds = jax.block_until_ready(preds)

    assert len(preds) == F
    for p_i, o in zip(preds, out_dims):
        assert p_i.shape == (B, o), (p_i.shape, (B, o))
        assert bool(jnp.all(jnp.isfinite(p_i)))
    print("KERNEL_OK")
</pallas_src>

<mosaic_0001>
module attributes {stable_mosaic.version = 11 : i64} {
  func.func @embed_gather_kernel(%arg0: i32, %arg1: memref<48xi32, #tpu.memory_space<smem>>, %arg2: memref<1x1x32xf32, #tpu.memory_space<vmem>>, %arg3: memref<1x1x32xf32, #tpu.memory_space<vmem>>) attributes {dimension_semantics = [#tpu.dimension_semantics<arbitrary>], iteration_bounds = array<i64: 48>, scalar_prefetch = 1 : i64, scratch_operands = 0 : i64, tpu.core_type = #tpu.core_type<tc>, window_params = [{transform_indices = @transform_0, window_bounds = array<i64: 1, 1, 32>}, {transform_indices = @transform_1, window_bounds = array<i64: 1, 1, 32>}]} {
    %c0 = arith.constant 0 : index
    %c0_0 = arith.constant 0 : index
    %c0_1 = arith.constant 0 : index
    %0 = vector.load %arg2[%c0, %c0_0, %c0_1] : memref<1x1x32xf32, #tpu.memory_space<vmem>>, vector<1x1x32xf32>
    %c0_2 = arith.constant 0 : index
    %c0_3 = arith.constant 0 : index
    %c0_4 = arith.constant 0 : index
    %1 = vector.load %arg3[%c0_2, %c0_3, %c0_4] : memref<1x1x32xf32, #tpu.memory_space<vmem>>, vector<1x1x32xf32>
    tpu.vector_store %arg3[%c0_2, %c0_3, %c0_4], %0 {strides = array<i32>} : memref<1x1x32xf32, #tpu.memory_space<vmem>>, vector<1x1x32xf32>,
    return
  }
  func.func @transform_0(%arg0: i32, %arg1: memref<48xi32, #tpu.memory_space<smem>>) -> (i32, i32, i32) {
    %0 = arith.index_cast %arg0 : i32 to index
    %1 = memref.load %arg1[%0] : memref<48xi32, #tpu.memory_space<smem>>
    %c0_i32 = arith.constant 0 : i32
    %c0_i32_0 = arith.constant 0 : i32
    %c0_i32_1 = arith.constant 0 : i32
    return %1, %c0_i32, %c0_i32_0 : i32, i32, i32
  }
  func.func @transform_1(%arg0: i32, %arg1: memref<48xi32, #tpu.memory_space<smem>>) -> (i32, i32, i32) {
    %c0_i32 = arith.constant 0 : i32
    %c0_i32_0 = arith.constant 0 : i32
    %c0_i32_1 = arith.constant 0 : i32
    return %arg0, %c0_i32, %c0_i32_0 : i32, i32, i32
  }
}

module attributes {stable_mosaic.version = 11 : i64} {
  func.func @encoder_layer_kernel(%arg0: i32, %arg1: memref<4x6x32xf32, #tpu.memory_space<vmem>>, %arg2: memref<96x32xbf16, #tpu.memory_space<vmem>>, %arg3: memref<1x96xf32, #tpu.memory_space<vmem>>, %arg4: memref<4x32x8xbf16, #tpu.memory_space<vmem>>, %arg5: memref<1x32xf32, #tpu.memory_space<vmem>>, %arg6: memref<1x32xf32, #tpu.memory_space<vmem>>, %arg7: memref<1x32xf32, #tpu.memory_space<vmem>>, %arg8: memref<2048x32xbf16, #tpu.memory_space<vmem>>, %arg9: memref<1x2048xf32, #tpu.memory_space<vmem>>, %arg10: memref<32x2048xbf16, #tpu.memory_space<vmem>>, %arg11: memref<1x32xf32, #tpu.memory_space<vmem>>, %arg12: memref<1x32xf32, #tpu.memory_space<vmem>>, %arg13: memref<1x32xf32, #tpu.memory_space<vmem>>, %arg14: memref<4x6x32xf32, #tpu.memory_space<vmem>>) attributes {dimension_semantics = [#tpu.dimension_semantics<parallel>], iteration_bounds = array<i64: 2>, scalar_prefetch = 0 : i64, scratch_operands = 0 : i64, tpu.core_type = #tpu.core_type<tc>, window_params = [{transform_indices = @transform_0, window_bounds = array<i64: 4, 6, 32>}, {pipeline_mode = #tpu.pipeline_mode<synchronous>, transform_indices = @transform_1, window_bounds = array<i64: 96, 32>}, {pipeline_mode = #tpu.pipeline_mode<synchronous>, transform_indices = @transform_2, window_bounds = array<i64: 1, 96>}, {pipeline_mode = #tpu.pipeline_mode<synchronous>, transform_indices = @transform_3, window_bounds = array<i64: 4, 32, 8>}, {pipeline_mode = #tpu.pipeline_mode<synchronous>, transform_indices = @transform_4, window_bounds = array<i64: 1, 32>}, {pipeline_mode = #tpu.pipeline_mode<synchronous>, transform_indices = @transform_5, window_bounds = array<i64: 1, 32>}, {pipeline_mode = #tpu.pipeline_mode<synchronous>, transform_indices = @transform_6, window_bounds = array<i64: 1, 32>}, {pipeline_mode = #tpu.pipeline_mode<synchronous>, transform_indices = @transform_7, window_bounds = array<i64: 2048, 32>}, {pipeline_mode = #tpu.pipeline_mode<synchronous>, transform_indices = @transform_8, window_bounds = array<i64: 1, 2048>}, {pipeline_mode = #tpu.pipeline_mode<synchronous>, transform_indices = @transform_9, window_bounds = array<i64: 32, 2048>}, {pipeline_mode = #tpu.pipeline_mode<synchronous>, transform_indices = @transform_10, window_bounds = array<i64: 1, 32>}, {pipeline_mode = #tpu.pipeline_mode<synchronous>, transform_indices = @transform_11, window_bounds = array<i64: 1, 32>}, {pipeline_mode = #tpu.pipeline_mode<synchronous>, transform_indices = @transform_12, window_bounds = array<i64: 1, 32>}, {transform_indices = @transform_13, window_bounds = array<i64: 4, 6, 32>}]} {
    %c0 = arith.constant 0 : index
    %c0_0 = arith.constant 0 : index
    %c0_1 = arith.constant 0 : index
    %0 = vector.load %arg1[%c0, %c0_0, %c0_1] : memref<4x6x32xf32, #tpu.memory_space<vmem>>, vector<4x6x32xf32>
    %1 = vector.shape_cast %0 : vector<4x6x32xf32> to vector<24x32xf32>
    %2 = arith.truncf %1 : vector<24x32xf32> to vector<24x32xbf16>
    %c0_2 = arith.constant 0 : index
    %c0_3 = arith.constant 0 : index
    %3 = vector.load %arg2[%c0_2, %c0_3] : memref<96x32xbf16, #tpu.memory_space<vmem>>, vector<96x32xbf16>
    %cst = arith.constant dense<0.000000e+00> : vector<24x96xf32>
    %4 = tpu.matmul %2, %3, %cst {dimension_numbers = #tpu.dot_dimension_numbers<[1], [1], [0], [0], [0, 0, 1, 0], [], []>} : vector<24x32xbf16>, vector<96x32xbf16>, vector<24x96xf32> -> vector<24x96xf32>
    %c0_4 = arith.constant 0 : index
    %c0_5 = arith.constant 0 : index
    %5 = vector.load %arg3[%c0_4, %c0_5] : memref<1x96xf32, #tpu.memory_space<vmem>>, vector<1x96xf32>
    %6 = vector.broadcast %5 : vector<1x96xf32> to vector<24x96xf32>
    %7 = arith.addf %4, %6 : vector<24x96xf32>
    %8 = vector.extract_strided_slice %7 {offsets = [0, 0], sizes = [24, 8], strides = [1, 1]} : vector<24x96xf32> to vector<24x8xf32>
    %cst_6 = arith.constant 0.353553385 : f32
    %9 = vector.broadcast %cst_6 : f32 to vector<24x8xf32>
    %10 = arith.mulf %8, %9 : vector<24x8xf32>
    %11 = vector.shape_cast %10 : vector<24x8xf32> to vector<4x6x8xf32>
    %12 = vector.extract_strided_slice %7 {offsets = [0, 32], sizes = [24, 8], strides = [1, 1]} : vector<24x96xf32> to vector<24x8xf32>
    %13 = vector.shape_cast %12 : vector<24x8xf32> to vector<4x6x8xf32>
    %14 = vector.extract_strided_slice %7 {offsets = [0, 64], sizes = [24, 8], strides = [1, 1]} : vector<24x96xf32> to vector<24x8xf32>
    %15 = vector.shape_cast %14 : vector<24x8xf32> to vector<4x6x8xf32>
    %16 = arith.truncf %11 : vector<4x6x8xf32> to vector<4x6x8xbf16>
    %17 = arith.truncf %13 : vector<4x6x8xf32> to vector<4x6x8xbf16>
    "tpu.trace_start"() <{level = 10 : i32, message = "bqd,bkd->bqk"}> : () -> ()
    %cst_7 = arith.constant dense<0.000000e+00> : vector<4x6x6xf32>
    %18 = tpu.matmul %16, %17, %cst_7 {dimension_numbers = #tpu.dot_dimension_numbers<[2], [2], [1], [1], [0, 0, 0, 1, 1, 1], [0], [0]>} : vector<4x6x8xbf16>, vector<4x6x8xbf16>, vector<4x6x6xf32> -> vector<4x6x6xf32>
    "tpu.trace_stop"() : () -> ()
    %cst_8 = arith.constant dense<0xFF800000> : vector<4x6xf32>
    %19 = vector.multi_reduction <maximumf>, %18, %cst_8 [2] : vector<4x6x6xf32> to vector<4x6xf32>
    %20 = vector.shape_cast %19 : vector<4x6xf32> to vector<4x6x1xf32>
    %21 = vector.broadcast %20 : vector<4x6x1xf32> to vector<4x6x6xf32>
    %22 = arith.subf %18, %21 : vector<4x6x6xf32>
    %23 = math.exp %22 : vector<4x6x6xf32>
    %cst_9 = arith.constant dense<0.000000e+00> : vector<4x6xf32>
    %24 = vector.multi_reduction <add>, %23, %cst_9 [2] : vector<4x6x6xf32> to vector<4x6xf32>
    %25 = vector.shape_cast %24 : vector<4x6xf32> to vector<4x6x1xf32>
    %26 = tpu.reciprocal %25 {approx = true} : vector<4x6x1xf32> -> vector<4x6x1xf32>
    %27 = vector.broadcast %26 : vector<4x6x1xf32> to vector<4x6x6xf32>
    %28 = arith.mulf %23, %27 : vector<4x6x6xf32>
    %29 = arith.truncf %28 : vector<4x6x6xf32> to vector<4x6x6xbf16>
    %30 = arith.truncf %15 : vector<4x6x8xf32> to vector<4x6x8xbf16>
    "tpu.trace_start"() <{level = 10 : i32, message = "bqk,bkd->bqd"}> : () -> ()
    %cst_10 = arith.constant dense<0.000000e+00> : vector<4x6x8xf32>
    %31 = tpu.matmul %29, %30, %cst_10 {dimension_numbers = #tpu.dot_dimension_numbers<[2], [1], [1], [2], [0, 0, 0, 1, 1, 2], [0], [0]>} : vector<4x6x6xbf16>, vector<4x6x8xbf16>, vector<4x6x8xf32> -> vector<4x6x8xf32>
    "tpu.trace_stop"() : () -> ()
    %32 = vector.shape_cast %31 : vector<4x6x8xf32> to vector<24x8xf32>
    %33 = arith.truncf %32 : vector<24x8xf32> to vector<24x8xbf16>
    %c0_11 = arith.constant 0 : index
    %c0_12 = arith.constant 0 : index
    %c0_13 = arith.constant 0 : index
    %34 = vector.load %arg4[%c0_11, %c0_12, %c0_13] : memref<4x32x8xbf16, #tpu.memory_space<vmem>>, vector<1x32x8xbf16>
    %35 = vector.shape_cast %34 : vector<1x32x8xbf16> to vector<32x8xbf16>
    %cst_14 = arith.constant dense<0.000000e+00> : vector<24x32xf32>
    %36 = tpu.matmul %33, %35, %cst_14 {dimension_numbers = #tpu.dot_dimension_numbers<[1], [1], [0], [0], [0, 0, 1, 0], [], []>} : vector<24x8xbf16>, vector<32x8xbf16>, vector<24x32xf32> -> vector<24x32xf32>
    %37 = vector.extract_strided_slice %7 {offsets = [0, 8], sizes = [24, 8], strides = [1, 1]} : vector<24x96xf32> to vector<24x8xf32>
    %cst_15 = arith.constant 0.353553385 : f32
    %38 = vector.broadcast %cst_15 : f32 to vector<24x8xf32>
    %39 = arith.mulf %37, %38 : vector<24x8xf32>
    %40 = vector.shape_cast %39 : vector<24x8xf32> to vector<4x6x8xf32>
    %41 = vector.extract_strided_slice %7 {offsets = [0, 40], sizes = [24, 8], strides = [1, 1]} : vector<24x96xf32> to vector<24x8xf32>
    %42 = vector.shape_cast %41 : vector<24x8xf32> to vector<4x6x8xf32>
    %43 = vector.extract_strided_slice %7 {offsets = [0, 72], sizes = [24, 8], strides = [1, 1]} : vector<24x96xf32> to vector<24x8xf32>
    %44 = vector.shape_cast %43 : vector<24x8xf32> to vector<4x6x8xf32>
    %45 = arith.truncf %40 : vector<4x6x8xf32> to vector<4x6x8xbf16>
    %46 = arith.truncf %42 : vector<4x6x8xf32> to vector<4x6x8xbf16>
    "tpu.trace_start"() <{level = 10 : i32, message = "bqd,bkd->bqk"}> : () -> ()
    %cst_16 = arith.constant dense<0.000000e+00> : vector<4x6x6xf32>
    %47 = tpu.matmul %45, %46, %cst_16 {dimension_numbers = #tpu.dot_dimension_numbers<[2], [2], [1], [1], [0, 0, 0, 1, 1, 1], [0], [0]>} : vector<4x6x8xbf16>, vector<4x6x8xbf16>, vector<4x6x6xf32> -> vector<4x6x6xf32>
    "tpu.trace_stop"() : () -> ()
    %cst_17 = arith.constant dense<0xFF800000> : vector<4x6xf32>
    %48 = vector.multi_reduction <maximumf>, %47, %cst_17 [2] : vector<4x6x6xf32> to vector<4x6xf32>
    %49 = vector.shape_cast %48 : vector<4x6xf32> to vector<4x6x1xf32>
    %50 = vector.broadcast %49 : vector<4x6x1xf32> to vector<4x6x6xf32>
    %51 = arith.subf %47, %50 : vector<4x6x6xf32>
    %52 = math.exp %51 : vector<4x6x6xf32>
    %cst_18 = arith.constant dense<0.000000e+00> : vector<4x6xf32>
    %53 = vector.multi_reduction <add>, %52, %cst_18 [2] : vector<4x6x6xf32> to vector<4x6xf32>
    %54 = vector.shape_cast %53 : vector<4x6xf32> to vector<4x6x1xf32>
    %55 = tpu.reciprocal %54 {approx = true} : vector<4x6x1xf32> -> vector<4x6x1xf32>
    %56 = vector.broadcast %55 : vector<4x6x1xf32> to vector<4x6x6xf32>
    %57 = arith.mulf %52, %56 : vector<4x6x6xf32>
    %58 = arith.truncf %57 : vector<4x6x6xf32> to vector<4x6x6xbf16>
    %59 = arith.truncf %44 : vector<4x6x8xf32> to vector<4x6x8xbf16>
    "tpu.trace_start"() <{level = 10 : i32, message = "bqk,bkd->bqd"}> : () -> ()
    %cst_19 = arith.constant dense<0.000000e+00> : vector<4x6x8xf32>
    %60 = tpu.matmul %58, %59, %cst_19 {dimension_numbers = #tpu.dot_dimension_numbers<[2], [1], [1], [2], [0, 0, 0, 1, 1, 2], [0], [0]>} : vector<4x6x6xbf16>, vector<4x6x8xbf16>, vector<4x6x8xf32> -> vector<4x6x8xf32>
    "tpu.trace_stop"() : () -> ()
    %61 = vector.shape_cast %60 : vector<4x6x8xf32> to vector<24x8xf32>
    %62 = arith.truncf %61 : vector<24x8xf32> to vector<24x8xbf16>
    %c1 = arith.constant 1 : index
    %c0_20 = arith.constant 0 : index
    %c0_21 = arith.constant 0 : index
    %63 = vector.load %arg4[%c1, %c0_20, %c0_21] : memref<4x32x8xbf16, #tpu.memory_space<vmem>>, vector<1x32x8xbf16>
    %64 = vector.shape_cast %63 : vector<1x32x8xbf16> to vector<32x8xbf16>
    %cst_22 = arith.constant dense<0.000000e+00> : vector<24x32xf32>
    %65 = tpu.matmul %62, %64, %cst_22 {dimension_numbers = #tpu.dot_dimension_numbers<[1], [1], [0], [0], [0, 0, 1, 0], [], []>} : vector<24x8xbf16>, vector<32x8xbf16>, vector<24x32xf32> -> vector<24x32xf32>
    %66 = arith.addf %36, %65 : vector<24x32xf32>
    %67 = vector.extract_strided_slice %7 {offsets = [0, 16], sizes = [24, 8], strides = [1, 1]} : vector<24x96xf32> to vector<24x8xf32>
    %cst_23 = arith.constant 0.353553385 : f32
    %68 = vector.broadcast %cst_23 : f32 to vector<24x8xf32>
    %69 = arith.mulf %67, %68 : vector<24x8xf32>
    %70 = vector.shape_cast %69 : vector<24x8xf32> to vector<4x6x8xf32>
    %71 = vector.extract_strided_slice %7 {offsets = [0, 48], sizes = [24, 8], strides = [1, 1]} : vector<24x96xf32> to vector<24x8xf32>
    %72 = vector.shape_cast %71 : vector<24x8xf32> to vector<4x6x8xf32>
    %73 = vector.extract_strided_slice %7 {offsets = [0, 80], sizes = [24, 8], strides = [1, 1]} : vector<24x96xf32> to vector<24x8xf32>
    %74 = vector.shape_cast %73 : vector<24x8xf32> to vector<4x6x8xf32>
    %75 = arith.truncf %70 : vector<4x6x8xf32> to vector<4x6x8xbf16>
    %76 = arith.truncf %72 : vector<4x6x8xf32> to vector<4x6x8xbf16>
    "tpu.trace_start"() <{level = 10 : i32, message = "bqd,bkd->bqk"}> : () -> ()
    %cst_24 = arith.constant dense<0.000000e+00> : vector<4x6x6xf32>
    %77 = tpu.matmul %75, %76, %cst_24 {dimension_numbers = #tpu.dot_dimension_numbers<[2], [2], [1], [1], [0, 0, 0, 1, 1, 1], [0], [0]>} : vector<4x6x8xbf16>, vector<4x6x8xbf16>, vector<4x6x6xf32> -> vector<4x6x6xf32>
    "tpu.trace_stop"() : () -> ()
    %cst_25 = arith.constant dense<0xFF800000> : vector<4x6xf32>
    %78 = vector.multi_reduction <maximumf>, %77, %cst_25 [2] : vector<4x6x6xf32> to vector<4x6xf32>
    %79 = vector.shape_cast %78 : vector<4x6xf32> to vector<4x6x1xf32>
    %80 = vector.broadcast %79 : vector<4x6x1xf32> to vector<4x6x6xf32>
    %81 = arith.subf %77, %80 : vector<4x6x6xf32>
    %82 = math.exp %81 : vector<4x6x6xf32>
    %cst_26 = arith.constant dense<0.000000e+00> : vector<4x6xf32>
    %83 = vector.multi_reduction <add>, %82, %cst_26 [2] : vector<4x6x6xf32> to vector<4x6xf32>
    %84 = vector.shape_cast %83 : vector<4x6xf32> to vector<4x6x1xf32>
    %85 = tpu.reciprocal %84 {approx = true} : vector<4x6x1xf32> -> vector<4x6x1xf32>
    %86 = vector.broadcast %85 : vector<4x6x1xf32> to vector<4x6x6xf32>
    %87 = arith.mulf %82, %86 : vector<4x6x6xf32>
    %88 = arith.truncf %87 : vector<4x6x6xf32> to vector<4x6x6xbf16>
    %89 = arith.truncf %74 : vector<4x6x8xf32> to vector<4x6x8xbf16>
    "tpu.trace_start"() <{level = 10 : i32, message = "bqk,bkd->bqd"}> : () -> ()
    %cst_27 = arith.constant dense<0.000000e+00> : vector<4x6x8xf32>
    %90 = tpu.matmul %88, %89, %cst_27 {dimension_numbers = #tpu.dot_dimension_numbers<[2], [1], [1], [2], [0, 0, 0, 1, 1, 2], [0], [0]>} : vector<4x6x6xbf16>, vector<4x6x8xbf16>, vector<4x6x8xf32> -> vector<4x6x8xf32>
    "tpu.trace_stop"() : () -> ()
    %91 = vector.shape_cast %90 : vector<4x6x8xf32> to vector<24x8xf32>
    %92 = arith.truncf %91 : vector<24x8xf32> to vector<24x8xbf16>
    %c2 = arith.constant 2 : index
    %c0_28 = arith.constant 0 : index
    %c0_29 = arith.constant 0 : index
    %93 = vector.load %arg4[%c2, %c0_28, %c0_29] : memref<4x32x8xbf16, #tpu.memory_space<vmem>>, vector<1x32x8xbf16>
    %94 = vector.shape_cast %93 : vector<1x32x8xbf16> to vector<32x8xbf16>
    %cst_30 = arith.constant dense<0.000000e+00> : vector<24x32xf32>
    %95 = tpu.matmul %92, %94, %cst_30 {dimension_numbers = #tpu.dot_dimension_numbers<[1], [1], [0], [0], [0, 0, 1, 0], [], []>} : vector<24x8xbf16>, vector<32x8xbf16>, vector<24x32xf32> -> vector<24x32xf32>
    %96 = arith.addf %66, %95 : vector<24x32xf32>
    %97 = vector.extract_strided_slice %7 {offsets = [0, 24], sizes = [24, 8], strides = [1, 1]} : vector<24x96xf32> to vector<24x8xf32>
    %cst_31 = arith.constant 0.353553385 : f32
    %98 = vector.broadcast %cst_31 : f32 to vector<24x8xf32>
    %99 = arith.mulf %97, %98 : vector<24x8xf32>
    %100 = vector.shape_cast %99 : vector<24x8xf32> to vector<4x6x8xf32>
    %101 = vector.extract_strided_slice %7 {offsets = [0, 56], sizes = [24, 8], strides = [1, 1]} : vector<24x96xf32> to vector<24x8xf32>
    %102 = vector.shape_cast %101 : vector<24x8xf32> to vector<4x6x8xf32>
    %103 = vector.extract_strided_slice %7 {offsets = [0, 88], sizes = [24, 8], strides = [1, 1]} : vector<24x96xf32> to vector<24x8xf32>
    %104 = vector.shape_cast %103 : vector<24x8xf32> to vector<4x6x8xf32>
    %105 = arith.truncf %100 : vector<4x6x8xf32> to vector<4x6x8xbf16>
    %106 = arith.truncf %102 : vector<4x6x8xf32> to vector<4x6x8xbf16>
    "tpu.trace_start"() <{level = 10 : i32, message = "bqd,bkd->bqk"}> : () -> ()
    %cst_32 = arith.constant dense<0.000000e+00> : vector<4x6x6xf32>
    %107 = tpu.matmul %105, %106, %cst_32 {dimension_numbers = #tpu.dot_dimension_numbers<[2], [2], [1], [1], [0, 0, 0, 1, 1, 1], [0], [0]>} : vector<4x6x8xbf16>, vector<4x6x8xbf16>, vector<4x6x6xf32> -> vector<4x6x6xf32>
    "tpu.trace_stop"() : () -> ()
    %cst_33 = arith.constant dense<0xFF800000> : vector<4x6xf32>
    %108 = vector.multi_reduction <maximumf>, %107, %cst_33 [2] : vector<4x6x6xf32> to vector<4x6xf32>
    %109 = vector.shape_cast %108 : vector<4x6xf32> to vector<4x6x1xf32>
    %110 = vector.broadcast %109 : vector<4x6x1xf32> to vector<4x6x6xf32>
    %111 = arith.subf %107, %110 : vector<4x6x6xf32>
    %112 = math.exp %111 : vector<4x6x6xf32>
    %cst_34 = arith.constant dense<0.000000e+00> : vector<4x6xf32>
    %113 = vector.multi_reduction <add>, %112, %cst_34 [2] : vector<4x6x6xf32> to vector<4x6xf32>
    %114 = vector.shape_cast %113 : vector<4x6xf32> to vector<4x6x1xf32>
    %115 = tpu.reciprocal %114 {approx = true} : vector<4x6x1xf32> -> vector<4x6x1xf32>
    %116 = vector.broadcast %115 : vector<4x6x1xf32> to vector<4x6x6xf32>
    %117 = arith.mulf %112, %116 : vector<4x6x6xf32>
    %118 = arith.truncf %117 : vector<4x6x6xf32> to vector<4x6x6xbf16>
    %119 = arith.truncf %104 : vector<4x6x8xf32> to vector<4x6x8xbf16>
    "tpu.trace_start"() <{level = 10 : i32, message = "bqk,bkd->bqd"}> : () -> ()
    %cst_35 = arith.constant dense<0.000000e+00> : vector<4x6x8xf32>
    %120 = tpu.matmul %118, %119, %cst_35 {dimension_numbers = #tpu.dot_dimension_numbers<[2], [1], [1], [2], [0, 0, 0, 1, 1, 2], [0], [0]>} : vector<4x6x6xbf16>, vector<4x6x8xbf16>, vector<4x6x8xf32> -> vector<4x6x8xf32>
    "tpu.trace_stop"() : () -> ()
    %121 = vector.shape_cast %120 : vector<4x6x8xf32> to vector<24x8xf32>
    %122 = arith.truncf %121 : vector<24x8xf32> to vector<24x8xbf16>
    %c3 = arith.constant 3 : index
    %c0_36 = arith.constant 0 : index
    %c0_37 = arith.constant 0 : index
    %123 = vector.load %arg4[%c3, %c0_36, %c0_37] : memref<4x32x8xbf16, #tpu.memory_space<vmem>>, vector<1x32x8xbf16>
    %124 = vector.shape_cast %123 : vector<1x32x8xbf16> to vector<32x8xbf16>
    %cst_38 = arith.constant dense<0.000000e+00> : vector<24x32xf32>
    %125 = tpu.matmul %122, %124, %cst_38 {dimension_numbers = #tpu.dot_dimension_numbers<[1], [1], [0], [0], [0, 0, 1, 0], [], []>} : vector<24x8xbf16>, vector<32x8xbf16>, vector<24x32xf32> -> vector<24x32xf32>
    %126 = arith.addf %96, %125 : vector<24x32xf32>
    %c0_39 = arith.constant 0 : index
    %c0_40 = arith.constant 0 : index
    %127 = vector.load %arg5[%c0_39, %c0_40] : memref<1x32xf32, #tpu.memory_space<vmem>>, vector<1x32xf32>
    %128 = vector.broadcast %127 : vector<1x32xf32> to vector<24x32xf32>
    %129 = arith.addf %126, %128 : vector<24x32xf32>
    %130 = arith.addf %1, %129 : vector<24x32xf32>
    %c0_41 = arith.constant 0 : index
    %c0_42 = arith.constant 0 : index
    %131 = vector.load %arg6[%c0_41, %c0_42] : memref<1x32xf32, #tpu.memory_space<vmem>>, vector<1x32xf32>
    %c0_43 = arith.constant 0 : index
    %c0_44 = arith.constant 0 : index
    %132 = vector.load %arg7[%c0_43, %c0_44] : memref<1x32xf32, #tpu.memory_space<vmem>>, vector<1x32xf32>
    %cst_45 = arith.constant dense<0.000000e+00> : vector<24xf32>
    %133 = vector.multi_reduction <add>, %130, %cst_45 [1] : vector<24x32xf32> to vector<24xf32>
    %134 = vector.shape_cast %133 : vector<24xf32> to vector<24x1xf32>
    %cst_46 = arith.constant 3.200000e+01 : f32
    %135 = vector.broadcast %cst_46 : f32 to vector<24x1xf32>
    %136 = arith.divf %134, %135 : vector<24x1xf32>
    %137 = vector.broadcast %136 : vector<24x1xf32> to vector<24x32xf32>
    %138 = arith.subf %130, %137 : vector<24x32xf32>
    %139 = arith.mulf %138, %138 : vector<24x32xf32>
    %cst_47 = arith.constant dense<0.000000e+00> : vector<24xf32>
    %140 = vector.multi_reduction <add>, %139, %cst_47 [1] : vector<24x32xf32> to vector<24xf32>
    %141 = vector.shape_cast %140 : vector<24xf32> to vector<24x1xf32>
    %cst_48 = arith.constant 3.200000e+01 : f32
    %142 = vector.broadcast %cst_48 : f32 to vector<24x1xf32>
    %143 = arith.divf %141, %142 : vector<24x1xf32>
    %144 = vector.broadcast %136 : vector<24x1xf32> to vector<24x32xf32>
    %145 = arith.subf %130, %144 : vector<24x32xf32>
    %cst_49 = arith.constant 9.99999974E-6 : f32
    %146 = vector.broadcast %cst_49 : f32 to vector<24x1xf32>
    %147 = arith.addf %143, %146 : vector<24x1xf32>
    %148 = math.rsqrt %147 : vector<24x1xf32>
    %149 = vector.broadcast %148 : vector<24x1xf32> to vector<24x32xf32>
    %150 = arith.mulf %145, %149 : vector<24x32xf32>
    %151 = vector.broadcast %131 : vector<1x32xf32> to vector<24x32xf32>
    %152 = arith.mulf %150, %151 : vector<24x32xf32>
    %153 = vector.broadcast %132 : vector<1x32xf32> to vector<24x32xf32>
    %154 = arith.addf %152, %153 : vector<24x32xf32>
    %155 = arith.truncf %154 : vector<24x32xf32> to vector<24x32xbf16>
    %c0_50 = arith.constant 0 : index
    %c0_51 = arith.constant 0 : index
    %156 = vector.load %arg8[%c0_50, %c0_51] : memref<2048x32xbf16, #tpu.memory_space<vmem>>, vector<2048x32xbf16>
    %cst_52 = arith.constant dense<0.000000e+00> : vector<24x2048xf32>
    %157 = tpu.matmul %155, %156, %cst_52 {dimension_numbers = #tpu.dot_dimension_numbers<[1], [1], [0], [0], [0, 0, 1, 0], [], []>} : vector<24x32xbf16>, vector<2048x32xbf16>, vector<24x2048xf32> -> vector<24x2048xf32>
    %c0_53 = arith.constant 0 : index
    %c0_54 = arith.constant 0 : index
    %158 = vector.load %arg9[%c0_53, %c0_54] : memref<1x2048xf32, #tpu.memory_space<vmem>>, vector<1x2048xf32>
    %159 = vector.broadcast %158 : vector<1x2048xf32> to vector<24x2048xf32>
    %160 = arith.addf %157, %159 : vector<24x2048xf32>
    %cst_55 = arith.constant 0.000000e+00 : f32
    %161 = vector.broadcast %cst_55 : f32 to vector<24x2048xf32>
    %162 = arith.maximumf %160, %161 : vector<24x2048xf32>
    %163 = arith.truncf %162 : vector<24x2048xf32> to vector<24x2048xbf16>
    %c0_56 = arith.constant 0 : index
    %c0_57 = arith.constant 0 : index
    %164 = vector.load %arg10[%c0_56, %c0_57] : memref<32x2048xbf16, #tpu.memory_space<vmem>>, vector<32x2048xbf16>
    %cst_58 = arith.constant dense<0.000000e+00> : vector<24x32xf32>
    %165 = tpu.matmul %163, %164, %cst_58 {dimension_numbers = #tpu.dot_dimension_numbers<[1], [1], [0], [0], [0, 0, 1, 0], [], []>} : vector<24x2048xbf16>, vector<32x2048xbf16>, vector<24x32xf32> -> vector<24x32xf32>
    %c0_59 = arith.constant 0 : index
    %c0_60 = arith.constant 0 : index
    %166 = vector.load %arg11[%c0_59, %c0_60] : memref<1x32xf32, #tpu.memory_space<vmem>>, vector<1x32xf32>
    %167 = vector.broadcast %166 : vector<1x32xf32> to vector<24x32xf32>
    %168 = arith.addf %165, %167 : vector<24x32xf32>
    %169 = arith.addf %154, %168 : vector<24x32xf32>
    %c0_61 = arith.constant 0 : index
    %c0_62 = arith.constant 0 : index
    %170 = vector.load %arg12[%c0_61, %c0_62] : memref<1x32xf32, #tpu.memory_space<vmem>>, vector<1x32xf32>
    %c0_63 = arith.constant 0 : index
    %c0_64 = arith.constant 0 : index
    %171 = vector.load %arg13[%c0_63, %c0_64] : memref<1x32xf32, #tpu.memory_space<vmem>>, vector<1x32xf32>
    %cst_65 = arith.constant dense<0.000000e+00> : vector<24xf32>
    %172 = vector.multi_reduction <add>, %169, %cst_65 [1] : vector<24x32xf32> to vector<24xf32>
    %173 = vector.shape_cast %172 : vector<24xf32> to vector<24x1xf32>
    %cst_66 = arith.constant 3.200000e+01 : f32
    %174 = vector.broadcast %cst_66 : f32 to vector<24x1xf32>
    %175 = arith.divf %173, %174 : vector<24x1xf32>
    %176 = vector.broadcast %175 : vector<24x1xf32> to vector<24x32xf32>
    %177 = arith.subf %169, %176 : vector<24x32xf32>
    %178 = arith.mulf %177, %177 : vector<24x32xf32>
    %cst_67 = arith.constant dense<0.000000e+00> : vector<24xf32>
    %179 = vector.multi_reduction <add>, %178, %cst_67 [1] : vector<24x32xf32> to vector<24xf32>
    %180 = vector.shape_cast %179 : vector<24xf32> to vector<24x1xf32>
    %cst_68 = arith.constant 3.200000e+01 : f32
    %181 = vector.broadcast %cst_68 : f32 to vector<24x1xf32>
    %182 = arith.divf %180, %181 : vector<24x1xf32>
    %183 = vector.broadcast %175 : vector<24x1xf32> to vector<24x32xf32>
    %184 = arith.subf %169, %183 : vector<24x32xf32>
    %cst_69 = arith.constant 9.99999974E-6 : f32
    %185 = vector.broadcast %cst_69 : f32 to vector<24x1xf32>
    %186 = arith.addf %182, %185 : vector<24x1xf32>
    %187 = math.rsqrt %186 : vector<24x1xf32>
    %188 = vector.broadcast %187 : vector<24x1xf32> to vector<24x32xf32>
    %189 = arith.mulf %184, %188 : vector<24x32xf32>
    %190 = vector.broadcast %170 : vector<1x32xf32> to vector<24x32xf32>
    %191 = arith.mulf %189, %190 : vector<24x32xf32>
    %192 = vector.broadcast %171 : vector<1x32xf32> to vector<24x32xf32>
    %193 = arith.addf %191, %192 : vector<24x32xf32>
    %194 = vector.shape_cast %193 : vector<24x32xf32> to vector<4x6x32xf32>
    %c0_70 = arith.constant 0 : index
    %c0_71 = arith.constant 0 : index
    %c0_72 = arith.constant 0 : index
    %195 = vector.load %arg14[%c0_70, %c0_71, %c0_72] : memref<4x6x32xf32, #tpu.memory_space<vmem>>, vector<4x6x32xf32>
    tpu.vector_store %arg14[%c0_70, %c0_71, %c0_72], %194 {strides = array<i32>} : memref<4x6x32xf32, #tpu.memory_space<vmem>>, vector<4x6x32xf32>,
    return
  }
  func.func @transform_0(%arg0: i32) -> (i32, i32, i32) {
    %c0_i32 = arith.constant 0 : i32
    %c0_i32_0 = arith.constant 0 : i32
    %c0_i32_1 = arith.constant 0 : i32
    return %arg0, %c0_i32, %c0_i32_0 : i32, i32, i32
  }
  func.func @transform_1(%arg0: i32) -> (i32, i32) {
    %c0_i32 = arith.constant 0 : i32
    %c0_i32_0 = arith.constant 0 : i32
    %c0_i32_1 = arith.constant 0 : i32
    return %c0_i32, %c0_i32_0 : i32, i32
  }
  func.func @transform_2(%arg0: i32) -> (i32, i32) {
    %c0_i32 = arith.constant 0 : i32
    %c0_i32_0 = arith.constant 0 : i32
    %c0_i32_1 = arith.constant 0 : i32
    return %c0_i32, %c0_i32_0 : i32, i32
  }
  func.func @transform_3(%arg0: i32) -> (i32, i32, i32) {
    %c0_i32 = arith.constant 0 : i32
    %c0_i32_0 = arith.constant 0 : i32
    %c0_i32_1 = arith.constant 0 : i32
    %c0_i32_2 = arith.constant 0 : i32
    return %c0_i32, %c0_i32_0, %c0_i32_1 : i32, i32, i32
  }
  func.func @transform_4(%arg0: i32) -> (i32, i32) {
    %c0_i32 = arith.constant 0 : i32
    %c0_i32_0 = arith.constant 0 : i32
    %c0_i32_1 = arith.constant 0 : i32
    return %c0_i32, %c0_i32_0 : i32, i32
  }
  func.func @transform_5(%arg0: i32) -> (i32, i32) {
    %c0_i32 = arith.constant 0 : i32
    %c0_i32_0 = arith.constant 0 : i32
    %c0_i32_1 = arith.constant 0 : i32
    return %c0_i32, %c0_i32_0 : i32, i32
  }
  func.func @transform_6(%arg0: i32) -> (i32, i32) {
    %c0_i32 = arith.constant 0 : i32
    %c0_i32_0 = arith.constant 0 : i32
    %c0_i32_1 = arith.constant 0 : i32
    return %c0_i32, %c0_i32_0 : i32, i32
  }
  func.func @transform_7(%arg0: i32) -> (i32, i32) {
    %c0_i32 = arith.constant 0 : i32
    %c0_i32_0 = arith.constant 0 : i32
    %c0_i32_1 = arith.constant 0 : i32
    return %c0_i32, %c0_i32_0 : i32, i32
  }
  func.func @transform_8(%arg0: i32) -> (i32, i32) {
    %c0_i32 = arith.constant 0 : i32
    %c0_i32_0 = arith.constant 0 : i32
    %c0_i32_1 = arith.constant 0 : i32
    return %c0_i32, %c0_i32_0 : i32, i32
  }
  func.func @transform_9(%arg0: i32) -> (i32, i32) {
    %c0_i32 = arith.constant 0 : i32
    %c0_i32_0 = arith.constant 0 : i32
    %c0_i32_1 = arith.constant 0 : i32
    return %c0_i32, %c0_i32_0 : i32, i32
  }
  func.func @transform_10(%arg0: i32) -> (i32, i32) {
    %c0_i32 = arith.constant 0 : i32
    %c0_i32_0 = arith.constant 0 : i32
    %c0_i32_1 = arith.constant 0 : i32
    return %c0_i32, %c0_i32_0 : i32, i32
  }
  func.func @transform_11(%arg0: i32) -> (i32, i32) {
    %c0_i32 = arith.constant 0 : i32
    %c0_i32_0 = arith.constant 0 : i32
    %c0_i32_1 = arith.constant 0 : i32
    return %c0_i32, %c0_i32_0 : i32, i32
  }
  func.func @transform_12(%arg0: i32) -> (i32, i32) {
    %c0_i32 = arith.constant 0 : i32
    %c0_i32_0 = arith.constant 0 : i32
    %c0_i32_1 = arith.constant 0 : i32
    return %c0_i32, %c0_i32_0 : i32, i32
  }
  func.func @transform_13(%arg0: i32) -> (i32, i32, i32) {
    %c0_i32 = arith.constant 0 : i32
    %c0_i32_0 = arith.constant 0 : i32
    %c0_i32_1 = arith.constant 0 : i32
    return %arg0, %c0_i32, %c0_i32_0 : i32, i32, i32
  }
}

module attributes {stable_mosaic.version = 11 : i64} {
  func.func @heads_kernel(%arg0: i32, %arg1: memref<1x8x32xf32, #tpu.memory_space<vmem>>, %arg2: memref<1x128x32xbf16, #tpu.memory_space<vmem>>, %arg3: memref<1x1x128xf32, #tpu.memory_space<vmem>>, %arg4: memref<1x8x128xf32, #tpu.memory_space<vmem>>) attributes {dimension_semantics = [#tpu.dimension_semantics<parallel>], iteration_bounds = array<i64: 6>, scalar_prefetch = 0 : i64, scratch_operands = 0 : i64, tpu.core_type = #tpu.core_type<tc>, window_params = [{transform_indices = @transform_0, window_bounds = array<i64: 1, 8, 32>}, {transform_indices = @transform_1, window_bounds = array<i64: 1, 128, 32>}, {transform_indices = @transform_2, window_bounds = array<i64: 1, 1, 128>}, {transform_indices = @transform_3, window_bounds = array<i64: 1, 8, 128>}]} {
    %c0 = arith.constant 0 : index
    %c0_0 = arith.constant 0 : index
    %c0_1 = arith.constant 0 : index
    %0 = vector.load %arg1[%c0, %c0_0, %c0_1] : memref<1x8x32xf32, #tpu.memory_space<vmem>>, vector<1x8x32xf32>
    %1 = vector.shape_cast %0 : vector<1x8x32xf32> to vector<8x32xf32>
    %2 = arith.truncf %1 : vector<8x32xf32> to vector<8x32xbf16>
    %c0_2 = arith.constant 0 : index
    %c0_3 = arith.constant 0 : index
    %c0_4 = arith.constant 0 : index
    %3 = vector.load %arg2[%c0_2, %c0_3, %c0_4] : memref<1x128x32xbf16, #tpu.memory_space<vmem>>, vector<1x128x32xbf16>
    %4 = vector.shape_cast %3 : vector<1x128x32xbf16> to vector<128x32xbf16>
    %cst = arith.constant dense<0.000000e+00> : vector<8x128xf32>
    %5 = tpu.matmul %2, %4, %cst {dimension_numbers = #tpu.dot_dimension_numbers<[1], [1], [0], [0], [0, 0, 1, 0], [], []>} : vector<8x32xbf16>, vector<128x32xbf16>, vector<8x128xf32> -> vector<8x128xf32>
    %c0_5 = arith.constant 0 : index
    %c0_6 = arith.constant 0 : index
    %c0_7 = arith.constant 0 : index
    %6 = vector.load %arg3[%c0_5, %c0_6, %c0_7] : memref<1x1x128xf32, #tpu.memory_space<vmem>>, vector<1x1x128xf32>
    %7 = vector.shape_cast %6 : vector<1x1x128xf32> to vector<1x128xf32>
    %8 = vector.broadcast %7 : vector<1x128xf32> to vector<8x128xf32>
    %9 = arith.addf %5, %8 : vector<8x128xf32>
    %c0_8 = arith.constant 0 : index
    %c0_9 = arith.constant 0 : index
    %c0_10 = arith.constant 0 : index
    %10 = vector.load %arg4[%c0_8, %c0_9, %c0_10] : memref<1x8x128xf32, #tpu.memory_space<vmem>>, vector<1x8x128xf32>
    %11 = vector.shape_cast %10 : vector<1x8x128xf32> to vector<8x128xf32>
    %12 = vector.shape_cast %9 : vector<8x128xf32> to vector<1x8x128xf32>
    tpu.vector_store %arg4[%c0_8, %c0_9, %c0_10], %12 {strides = array<i32>} : memref<1x8x128xf32, #tpu.memory_space<vmem>>, vector<1x8x128xf32>,
    return
  }
  func.func @transform_0(%arg0: i32) -> (i32, i32, i32) {
    %c0_i32 = arith.constant 0 : i32
    %c0_i32_0 = arith.constant 0 : i32
    %c0_i32_1 = arith.constant 0 : i32
    return %arg0, %c0_i32, %c0_i32_0 : i32, i32, i32
  }
  func.func @transform_1(%arg0: i32) -> (i32, i32, i32) {
    %c0_i32 = arith.constant 0 : i32
    %c0_i32_0 = arith.constant 0 : i32
    %c0_i32_1 = arith.constant 0 : i32
    return %arg0, %c0_i32, %c0_i32_0 : i32, i32, i32
  }
  func.func @transform_2(%arg0: i32) -> (i32, i32, i32) {
    %c0_i32 = arith.constant 0 : i32
    %c0_i32_0 = arith.constant 0 : i32
    %c0_i32_1 = arith.constant 0 : i32
    return %arg0, %c0_i32, %c0_i32_0 : i32, i32, i32
  }
  func.func @transform_3(%arg0: i32) -> (i32, i32, i32) {
    %c0_i32 = arith.constant 0 : i32
    %c0_i32_0 = arith.constant 0 : i32
    %c0_i32_1 = arith.constant 0 : i32
    return %arg0, %c0_i32, %c0_i32_0 : i32, i32, i32
  }
}

</mosaic_0001>

<llo_original>
// kernel: macode_forward.4
$region0: #{macode_forward.4}
  #allocation0 [shape = 'u32[]', space=smem, size = 0x4, offset = 0x4, fixed_abs, tag = 'smem constant byte address 0x4 - core index']
  #allocation1 [shape = 'u32[72,128]{1,0:T(1,128)}', space=vmem, size = 0x9000, scoped, tag = 'internal scratch']
  #allocation2 [shape = 's32[1]{0}', space=sflag, size = 0x4, scoped, tag = 'scoped memory for macode_forward.4']
  #allocation3 [shape = 'u8[512]{0}', space=smem, size = 0x200, scoped, tag = 'prefetched SMEM operand 0']
  %s0 = inlined_call_operand.vmem [shape: s32[48], index: 0, kind: input, shape index: {}]
  %s1 = inlined_call_operand.vmem [shape: f32[66,1,32], index: 1, kind: input, shape index: {}]
  %s2 = inlined_call_operand.vmem [shape: f32[48,1,32], index: 2, kind: output, shape index: {}]
  %s3 = sld [smem:[#allocation0]]
  $region37: #{macode_forward.4} parent=0
    _
  %s5 = ssub.s32 1, %s3
  %s6 = scalar_select 0, %s5, %s3
  %s8 = sshll.u32 %s0, 4
  %s9 = int_to_ptr.vmem [resolvable:$true] %s8
  %11 = dma.vmem_to_smem %s9, 16, [#allocation3], [#allocation2]
  %13 = dma.done [#allocation2], 16
  %14 = sfence
  loop: start=0, step=1, limit=50
  $region2: #{macode_forward.4} parent=0 // loop_pre_header
    _
  $region3: #{macode_forward.4} parent=0 // loop_header
    %s16 = sphi 0, %s20
    %p17 = scmp.ge.s32.totalorder %s16, 50
    %s28 = sphi 0, %s30
    %s31 = sphi 0, %s28
    %s32 = sphi 0, %s31
    %s48 = sphi 0, %s32
    %s54 = sphi 0, %s56
    %s57 = sphi 0, %s54
    %s58 = sphi 0, %s57
    %s74 = sphi 0, %s58
  $region4: #{macode_forward.4} parent=0 // loop_header_branch
    %19 = sbr.rel (%p17) target = $region8
  $region5: #{macode_forward.4} parent=0 // loop_body
    %s21 = ssub.s32 %s16, 1
    %s22 = ssub.s32 %s16, 2
    %s23 = sadd.s32 %s16, 1
    %s24 = sld [smem:[#allocation3 + %s16]]
    %s25 = sld [smem:[#allocation3 + %s23]]
    %s26 = ssub.s32 %s24, %s25
    %p27 = scmp.eq.s32.totalorder %s26, 0
    %s29 = sadd.s32 %s28, 1
    %s30 = scalar_select %p27, %s28, %s29
    %p33 = pneg %p27
    %p34 = scmp.eq.s32.totalorder %s16, 47
    %p35 = por %p33, %p34
    %p36 = scmp.ne.s32.totalorder %s28, %s31
    %p37 = scmp.eq.s32.totalorder %s16, 0
    %p38 = por %p36, %p37
    %p39 = scmp.ne.s32.totalorder %s28, %s31
    %p40 = scmp.eq.s32.totalorder %s21, 47
    %p41 = por %p39, %p40
    %p42 = scmp.ne.s32.totalorder %s31, %s32
    %p43 = scmp.eq.s32.totalorder %s21, 0
    %p44 = por %p42, %p43
    %p45 = scmp.ne.s32.totalorder %s31, %s32
    %p46 = scmp.eq.s32.totalorder %s22, 47
    %p47 = por %p45, %p46
    %p49 = scmp.ne.s32.totalorder %s32, %s48
    %p50 = scmp.eq.s32.totalorder %s22, 0
    %p51 = por %p49, %p50
    %s52 = ssub.s32 %s16, %s23
    %p53 = scmp.eq.s32.totalorder %s52, 0
    %s55 = sadd.s32 %s54, 1
    %s56 = scalar_select %p53, %s54, %s55
    %p59 = pneg %p53
    %p60 = scmp.eq.s32.totalorder %s16, 47
    %p61 = por %p59, %p60
    %p62 = scmp.ne.s32.totalorder %s54, %s57
    %p63 = scmp.eq.s32.totalorder %s16, 0
    %p64 = por %p62, %p63
    %p65 = scmp.ne.s32.totalorder %s54, %s57
    %p66 = scmp.eq.s32.totalorder %s21, 47
    %p67 = por %p65, %p66
    %p68 = scmp.ne.s32.totalorder %s57, %s58
    %p69 = scmp.eq.s32.totalorder %s21, 0
    %p70 = por %p68, %p69
    %p71 = scmp.ne.s32.totalorder %s57, %s58
    %p72 = scmp.eq.s32.totalorder %s22, 47
    %p73 = por %p71, %p72
    %p75 = scmp.ne.s32.totalorder %s58, %s74
    %p76 = scmp.eq.s32.totalorder %s22, 0
    %p77 = por %p75, %p76
    %p78 = scmp.le.s32.totalorder 1, %s16
    %p79 = scmp.lt.s32.totalorder %s16, 49
    %p80 = pnand %p78, %p79
    %p81 = pneg %p80
    // Predicated region
    $region9: #{macode_forward.4} parent=5 // pred_check
      _
    $region10: #{macode_forward.4} parent=5 // pred_check_branch
      %83 = sbr.rel (%p80) target = $region12
    $region11: #{macode_forward.4} parent=5 // pred_region
      %s84 = ssub.s32 %s16, 1
    $region12: #{macode_forward.4} parent=5 // pred_fallthru
      _
    %p85 = scmp.lt.s32.totalorder %s16, 48
    // Predicated region
    $region13: #{macode_forward.4} parent=5 // pred_check
      %p86 = pneg %p85
    $region14: #{macode_forward.4} parent=5 // pred_check_branch
      %88 = sbr.rel (%p86) target = $region16
    $region15: #{macode_forward.4} parent=5 // pred_region
      // Predicated region
      $region17: #{macode_forward.4} parent=15 // pred_check
        %p89 = pneg %p38
      $region18: #{macode_forward.4} parent=15 // pred_check_branch
        %91 = sbr.rel (%p89) target = $region20
      $region19: #{macode_forward.4} parent=15 // pred_region
        %s92 = sld [smem:[#allocation3 + %s16]]
        %p93 = scmp.lt.s32.totalorder %s92, 65
        %s94 = scalar_select %p93, %s92, 65
        %s95 = scalar_lea.vmem %s1, %s94
        %s96 = sld [smem:[#allocation3 + %s16]]
      $region20: #{macode_forward.4} parent=15 // pred_fallthru
        _
    $region16: #{macode_forward.4} parent=5 // pred_fallthru
      _
    %p97 = scmp.le.s32.totalorder 1, %s16
    %p98 = scmp.lt.s32.totalorder %s16, 49
    %p99 = pnand %p97, %p98
    %p100 = pneg %p99
    // Predicated region
    $region21: #{macode_forward.4} parent=5 // pred_check
      _
    $region22: #{macode_forward.4} parent=5 // pred_check_branch
      %102 = sbr.rel (%p99) target = $region24
    $region23: #{macode_forward.4} parent=5 // pred_region
      %s103 = ssub.s32 %s16, 1
      %s104 = sld [smem:[#allocation3 + %s21]]
      %p105 = scmp.lt.s32.totalorder %s104, 65
      %s106 = scalar_select %p105, %s104, 65
      %s107 = scalar_lea.vmem %s1, %s106
      %p108 = pneg %p44
      %p109 = pneg %p41
      %p110 = pneg %p70
      %p111 = pneg %p67
      %p112 = scmp.lt.s32.totalorder %s21, 47
      %s113 = scalar_select %p112, %s21, 47
      %s114 = scalar_lea.vmem %s2, %s113
      %s115 = sld [smem:[#allocation3 + %s21]]
      %p116 = scmp.lt.s32.totalorder %s115, 65
      %s117 = scalar_select %p116, %s115, 65
      %s118 = scalar_lea.vmem %s1, %s117
      %s119 = sld [smem:[#allocation3 + %s21]]
      %p120 = scmp.lt.s32.totalorder %s21, 47
      %s121 = scalar_select %p120, %s21, 47
      %s122 = scalar_lea.vmem %s2, %s121
      %v123 = vld [vmem:[%s118] sm:$0x1]
      %vm124 = vcmask 253952
      %125 = vst.msk [vmem:[%s122] sm:$0x1] %vm124, %v123
      %p126 = scmp.lt.s32.totalorder %s21, 47
      %s127 = scalar_select %p126, %s21, 47
      %s128 = scalar_lea.vmem %s2, %s127
      // Predicated region
      $region25: #{macode_forward.4} parent=23 // pred_check
        %p129 = pneg %p67
      $region26: #{macode_forward.4} parent=23 // pred_check_branch
        %131 = sbr.rel (%p129) target = $region28
      $region27: #{macode_forward.4} parent=23 // pred_region
        _
      $region28: #{macode_forward.4} parent=23 // pred_fallthru
        _
    $region24: #{macode_forward.4} parent=5 // pred_fallthru
      _
    %p132 = scmp.le.s32.totalorder 2, %s16
    // Predicated region
    $region29: #{macode_forward.4} parent=5 // pred_check
      %p133 = pneg %p132
    $region30: #{macode_forward.4} parent=5 // pred_check_branch
      %135 = sbr.rel (%p133) target = $region32
    $region31: #{macode_forward.4} parent=5 // pred_region
      %s136 = ssub.s32 %s16, 2
      // Predicated region
      $region33: #{macode_forward.4} parent=31 // pred_check
        %p137 = pneg %p73
      $region34: #{macode_forward.4} parent=31 // pred_check_branch
        %139 = sbr.rel (%p137) target = $region36
      $region35: #{macode_forward.4} parent=31 // pred_region
        %p140 = scmp.lt.s32.totalorder %s22, 47
        %s141 = scalar_select %p140, %s22, 47
        %s142 = scalar_lea.vmem %s2, %s141
      $region36: #{macode_forward.4} parent=31 // pred_fallthru
        _
    $region32: #{macode_forward.4} parent=5 // pred_fallthru
      _
  $region6: #{macode_forward.4} parent=0 // loop_footer
    %s20 = sadd.s32 1, %s16
  $region7: #{macode_forward.4} parent=0 // loop_footer_branch
    %15 = sbr.rel target = $region3
  $region8: #{macode_forward.4} parent=0 // loop_exit
    _

// kernel: macode_forward.7
$region0: #{macode_forward.7}
  #allocation0 [shape = 'u32[]', space=smem, size = 0x4, offset = 0x4, fixed_abs, tag = 'smem constant byte address 0x4 - core index']
  #allocation1 [shape = 'u32[72,128]{1,0:T(1,128)}', space=vmem, size = 0x9000, scoped, tag = 'internal scratch']
  %s0 = inlined_call_operand.vmem [shape: f32[6,8,32], index: 0, kind: input, shape index: {}]
  %s1 = inlined_call_operand.vmem [shape: bf16[6,128,32], index: 1, kind: input, shape index: {}]
  %s2 = inlined_call_operand.vmem [shape: f32[6,1,128], index: 2, kind: input, shape index: {}]
  %s3 = inlined_call_operand.vmem [shape: f32[6,8,128], index: 3, kind: output, shape index: {}]
  %s4 = sld [smem:[#allocation0]]
  $region45: #{macode_forward.7} parent=0
    _
  %s6 = ssub.s32 1, %s4
  %s7 = scalar_select 0, %s6, %s4
  loop: start=0, step=1, limit=8
  $region2: #{macode_forward.7} parent=0 // loop_pre_header
    _
  $region3: #{macode_forward.7} parent=0 // loop_header
    %s9 = sphi 0, %s13
    %p10 = scmp.ge.s32.totalorder %s9, 8
    %s19 = sphi 0, %s21
    %s22 = sphi 0, %s19
    %s23 = sphi 0, %s22
    %s39 = sphi 0, %s23
    %s45 = sphi 0, %s47
    %s48 = sphi 0, %s45
    %s49 = sphi 0, %s48
    %s65 = sphi 0, %s49
    %s71 = sphi 0, %s73
    %s74 = sphi 0, %s71
    %s75 = sphi 0, %s74
    %s91 = sphi 0, %s75
    %s97 = sphi 0, %s99
    %s100 = sphi 0, %s97
    %s101 = sphi 0, %s100
    %s117 = sphi 0, %s101
  $region4: #{macode_forward.7} parent=0 // loop_header_branch
    %12 = sbr.rel (%p10) target = $region8
  $region5: #{macode_forward.7} parent=0 // loop_body
    %s14 = ssub.s32 %s9, 1
    %s15 = ssub.s32 %s9, 2
    %s16 = sadd.s32 %s9, 1
    %s17 = ssub.s32 %s9, %s16
    %p18 = scmp.eq.s32.totalorder %s17, 0
    %s20 = sadd.s32 %s19, 1
    %s21 = scalar_select %p18, %s19, %s20
    %p24 = pneg %p18
    %p25 = scmp.eq.s32.totalorder %s9, 5
    %p26 = por %p24, %p25
    %p27 = scmp.ne.s32.totalorder %s19, %s22
    %p28 = scmp.eq.s32.totalorder %s9, 0
    %p29 = por %p27, %p28
    %p30 = scmp.ne.s32.totalorder %s19, %s22
    %p31 = scmp.eq.s32.totalorder %s14, 5
    %p32 = por %p30, %p31
    %p33 = scmp.ne.s32.totalorder %s22, %s23
    %p34 = scmp.eq.s32.totalorder %s14, 0
    %p35 = por %p33, %p34
    %p36 = scmp.ne.s32.totalorder %s22, %s23
    %p37 = scmp.eq.s32.totalorder %s15, 5
    %p38 = por %p36, %p37
    %p40 = scmp.ne.s32.totalorder %s23, %s39
    %p41 = scmp.eq.s32.totalorder %s15, 0
    %p42 = por %p40, %p41
    %s43 = ssub.s32 %s9, %s16
    %p44 = scmp.eq.s32.totalorder %s43, 0
    %s46 = sadd.s32 %s45, 1
    %s47 = scalar_select %p44, %s45, %s46
    %p50 = pneg %p44
    %p51 = scmp.eq.s32.totalorder %s9, 5
    %p52 = por %p50, %p51
    %p53 = scmp.ne.s32.totalorder %s45, %s48
    %p54 = scmp.eq.s32.totalorder %s9, 0
    %p55 = por %p53, %p54
    %p56 = scmp.ne.s32.totalorder %s45, %s48
    %p57 = scmp.eq.s32.totalorder %s14, 5
    %p58 = por %p56, %p57
    %p59 = scmp.ne.s32.totalorder %s48, %s49
    %p60 = scmp.eq.s32.totalorder %s14, 0
    %p61 = por %p59, %p60
    %p62 = scmp.ne.s32.totalorder %s48, %s49
    %p63 = scmp.eq.s32.totalorder %s15, 5
    %p64 = por %p62, %p63
    %p66 = scmp.ne.s32.totalorder %s49, %s65
    %p67 = scmp.eq.s32.totalorder %s15, 0
    %p68 = por %p66, %p67
    %s69 = ssub.s32 %s9, %s16
    %p70 = scmp.eq.s32.totalorder %s69, 0
    %s72 = sadd.s32 %s71, 1
    %s73 = scalar_select %p70, %s71, %s72
    %p76 = pneg %p70
    %p77 = scmp.eq.s32.totalorder %s9, 5
    %p78 = por %p76, %p77
    %p79 = scmp.ne.s32.totalorder %s71, %s74
    %p80 = scmp.eq.s32.totalorder %s9, 0
    %p81 = por %p79, %p80
    %p82 = scmp.ne.s32.totalorder %s71, %s74
    %p83 = scmp.eq.s32.totalorder %s14, 5
    %p84 = por %p82, %p83
    %p85 = scmp.ne.s32.totalorder %s74, %s75
    %p86 = scmp.eq.s32.totalorder %s14, 0
    %p87 = por %p85, %p86
    %p88 = scmp.ne.s32.totalorder %s74, %s75
    %p89 = scmp.eq.s32.totalorder %s15, 5
    %p90 = por %p88, %p89
    %p92 = scmp.ne.s32.totalorder %s75, %s91
    %p93 = scmp.eq.s32.totalorder %s15, 0
    %p94 = por %p92, %p93
    %s95 = ssub.s32 %s9, %s16
    %p96 = scmp.eq.s32.totalorder %s95, 0
    %s98 = sadd.s32 %s97, 1
    %s99 = scalar_select %p96, %s97, %s98
    %p102 = pneg %p96
    %p103 = scmp.eq.s32.totalorder %s9, 5
    %p104 = por %p102, %p103
    %p105 = scmp.ne.s32.totalorder %s97, %s100
    %p106 = scmp.eq.s32.totalorder %s9, 0
    %p107 = por %p105, %p106
    %p108 = scmp.ne.s32.totalorder %s97, %s100
    %p109 = scmp.eq.s32.totalorder %s14, 5
    %p110 = por %p108, %p109
    %p111 = scmp.ne.s32.totalorder %s100, %s101
    %p112 = scmp.eq.s32.totalorder %s14, 0
    %p113 = por %p111, %p112
    %p114 = scmp.ne.s32.totalorder %s100, %s101
    %p115 = scmp.eq.s32.totalorder %s15, 5
    %p116 = por %p114, %p115
    %p118 = scmp.ne.s32.totalorder %s101, %s117
    %p119 = scmp.eq.s32.totalorder %s15, 0
    %p120 = por %p118, %p119
    %p121 = scmp.le.s32.totalorder 1, %s9
    %p122 = scmp.lt.s32.totalorder %s9, 7
    %p123 = pnand %p121, %p122
    %p124 = pneg %p123
    // Predicated region
    $region9: #{macode_forward.7} parent=5 // pred_check
      _
    $region10: #{macode_forward.7} parent=5 // pred_check_branch
      %126 = sbr.rel (%p123) target = $region12
    $region11: #{macode_forward.7} parent=5 // pred_region
      %s127 = ssub.s32 %s9, 1
    $region12: #{macode_forward.7} parent=5 // pred_fallthru
      _
    %p128 = scmp.lt.s32.totalorder %s9, 6
    // Predicated region
    $region13: #{macode_forward.7} parent=5 // pred_check
      %p129 = pneg %p128
    $region14: #{macode_forward.7} parent=5 // pred_check_branch
      %131 = sbr.rel (%p129) target = $region16
    $region15: #{macode_forward.7} parent=5 // pred_region
      // Predicated region
      $region17: #{macode_forward.7} parent=15 // pred_check
        %p132 = pneg %p29
      $region18: #{macode_forward.7} parent=15 // pred_check_branch
        %134 = sbr.rel (%p132) target = $region20
      $region19: #{macode_forward.7} parent=15 // pred_region
        %p135 = scmp.lt.s32.totalorder %s9, 5
        %s136 = scalar_select %p135, %s9, 5
        %s137 = smul.addr %s136, 8
        %s138 = scalar_lea.vmem %s0, %s137
      $region20: #{macode_forward.7} parent=15 // pred_fallthru
        _
      // Predicated region
      $region21: #{macode_forward.7} parent=15 // pred_check
        %p139 = pneg %p55
      $region22: #{macode_forward.7} parent=15 // pred_check_branch
        %141 = sbr.rel (%p139) target = $region24
      $region23: #{macode_forward.7} parent=15 // pred_region
        %p142 = scmp.lt.s32.totalorder %s9, 5
        %s143 = scalar_select %p142, %s9, 5
        %s144 = smul.addr %s143, 16
        %s145 = smul.addr %s144, 4
        %s146 = scalar_lea.vmem %s1, %s145
      $region24: #{macode_forward.7} parent=15 // pred_fallthru
        _
      // Predicated region
      $region25: #{macode_forward.7} parent=15 // pred_check
        %p147 = pneg %p81
      $region26: #{macode_forward.7} parent=15 // pred_check_branch
        %149 = sbr.rel (%p147) target = $region28
      $region27: #{macode_forward.7} parent=15 // pred_region
        %p150 = scmp.lt.s32.totalorder %s9, 5
        %s151 = scalar_select %p150, %s9, 5
        %s152 = scalar_lea.vmem %s2, %s151
      $region28: #{macode_forward.7} parent=15 // pred_fallthru
        _
    $region16: #{macode_forward.7} parent=5 // pred_fallthru
      _
    %p153 = scmp.le.s32.totalorder 1, %s9
    %p154 = scmp.lt.s32.totalorder %s9, 7
    %p155 = pnand %p153, %p154
    %p156 = pneg %p155
    // Predicated region
    $region29: #{macode_forward.7} parent=5 // pred_check
      _
    $region30: #{macode_forward.7} parent=5 // pred_check_branch
      %158 = sbr.rel (%p155) target = $region32
    $region31: #{macode_forward.7} parent=5 // pred_region
      %s159 = ssub.s32 %s9, 1
      %p160 = scmp.lt.s32.totalorder %s14, 5
      %s161 = scalar_select %p160, %s14, 5
      %s162 = smul.addr %s161, 8
      %s163 = scalar_lea.vmem %s0, %s162
      %p164 = pneg %p35
      %p165 = pneg %p32
      %p166 = scmp.lt.s32.totalorder %s14, 5
      %s167 = scalar_select %p166, %s14, 5
      %s168 = smul.addr %s167, 16
      %s169 = smul.addr %s168, 4
      %s170 = scalar_lea.vmem %s1, %s169
      %p171 = pneg %p61
      %p172 = pneg %p58
      %p173 = scmp.lt.s32.totalorder %s14, 5
      %s174 = scalar_select %p173, %s14, 5
      %s175 = scalar_lea.vmem %s2, %s174
      %p176 = pneg %p87
      %p177 = pneg %p84
      %p178 = pneg %p113
      %p179 = pneg %p110
      %p180 = scmp.lt.s32.totalorder %s14, 5
      %s181 = scalar_select %p180, %s14, 5
      %s182 = smul.addr %s181, 8
      %s183 = scalar_lea.vmem %s3, %s182
      %p184 = scmp.lt.s32.totalorder %s14, 5
      %s185 = scalar_select %p184, %s14, 5
      %s186 = smul.addr %s185, 8
      %s187 = scalar_lea.vmem %s0, %s186
      %p188 = scmp.lt.s32.totalorder %s14, 5
      %s189 = scalar_select %p188, %s14, 5
      %s190 = smul.addr %s189, 16
      %s191 = smul.addr %s190, 4
      %s192 = scalar_lea.vmem %s1, %s191
      %p193 = scmp.lt.s32.totalorder %s14, 5
      %s194 = scalar_select %p193, %s14, 5
      %s195 = scalar_lea.vmem %s2, %s194
      %p196 = scmp.lt.s32.totalorder %s14, 5
      %s197 = scalar_select %p196, %s14, 5
      %s198 = smul.addr %s197, 8
      %s199 = scalar_lea.vmem %s3, %s198
      %v200 = vld [vmem:[%s187] sm:$0xff]
      %v201 = vpack.c.bf16 %v200, %v200
      %v202 = vld [vmem:[%s192] sm:$0xf]
      %v203 = vld [vmem:[%s192 + $0x4] sm:$0xf]
      %v204 = vld [vmem:[%s192 + $0x8] sm:$0xf]
      %v205 = vld [vmem:[%s192 + $0xc] sm:$0xf]
      %v206 = vld [vmem:[%s192 + $0x10] sm:$0xf]
      %v207 = vld [vmem:[%s192 + $0x14] sm:$0xf]
      %v208 = vld [vmem:[%s192 + $0x18] sm:$0xf]
      %v209 = vld [vmem:[%s192 + $0x1c] sm:$0xf]
      %v210 = vld [vmem:[%s192 + $0x20] sm:$0xf]
      %v211 = vld [vmem:[%s192 + $0x24] sm:$0xf]
      %v212 = vld [vmem:[%s192 + $0x28] sm:$0xf]
      %v213 = vld [vmem:[%s192 + $0x2c] sm:$0xf]
      %v214 = vld [vmem:[%s192 + $0x30] sm:$0xf]
      %v215 = vld [vmem:[%s192 + $0x34] sm:$0xf]
      %v216 = vld [vmem:[%s192 + $0x38] sm:$0xf]
      %v217 = vld [vmem:[%s192 + $0x3c] sm:$0xf]
      %v218 = vld [vmem:[%s195] sm:$0x1]
      %v220 = vperm.slane %v218, 0
      %v238 = vunpack.c.l.b16 %v202
      %v239 = vunpack.c.l.b16 %v203
      %v240 = vunpack.c.l.b16 %v204
      %v241 = vunpack.c.l.b16 %v205
      %v242 = vunpack.c.l.b16 %v206
      %v243 = vunpack.c.l.b16 %v207
      %v244 = vunpack.c.l.b16 %v208
      %v245 = vunpack.c.l.b16 %v209
      %v246 = vunpack.c.l.b16 %v210
      %v247 = vunpack.c.l.b16 %v211
      %v248 = vunpack.c.l.b16 %v212
      %v249 = vunpack.c.l.b16 %v213
      %v250 = vunpack.c.l.b16 %v214
      %v251 = vunpack.c.l.b16 %v215
      %v252 = vunpack.c.l.b16 %v216
      %v253 = vunpack.c.l.b16 %v217
      %v254 = vpack.c.b16 %v239, %v238
      %v255 = vpack.c.b16 %v241, %v240
      %v256 = vpack.c.b16 %v243, %v242
      %v257 = vpack.c.b16 %v245, %v244
      %v258 = vpack.c.b16 %v247, %v246
      %v259 = vpack.c.b16 %v249, %v248
      %v260 = vpack.c.b16 %v251, %v250
      %v261 = vpack.c.b16 %v253, %v252
      %vm262 = vcmask 261120
      %v264 = vsel %vm262, %v201, 0
      %v267 = vsel %vm262, %v254, 0
      %v270 = vsel %vm262, %v255, 0
      %v273 = vsel %vm262, %v256, 0
      %v276 = vsel %vm262, %v257, 0
      %v279 = vsel %vm262, %v258, 0
      %v282 = vsel %vm262, %v259, 0
      %v285 = vsel %vm262, %v260, 0
      %v288 = vsel %vm262, %v261, 0
      %290 = vmatpush.bf16.xpose.msra.mxu0 %v288
      %291 = vmatpush.bf16.xpose.msra.mxu0 %v285
      %292 = vmatpush.bf16.xpose.msra.mxu0 %v282
      %293 = vmatpush.bf16.xpose.msra.mxu0 %v279
      %294 = vmatpush.bf16.xpose.msra.mxu0 %v276
      %295 = vmatpush.bf16.xpose.msra.mxu0 %v273
      %296 = vmatpush.bf16.xpose.msra.mxu0 %v270
      %297 = vmatpush.bf16.xpose.msra.mxu0 %v267
      %298 = vmatmul.bf16.gmra.mxu0 %v264
      %v299 = vpop.f32.mrf.mxu0
      %v300 = vadd.f32 %v220, %v299
      %v301 = vpop.f32.mrf.mxu0
      %302 = vdwg.mxu0
      %303 = vst [vmem:[%s199] sm:$0xff] %v300
      %p304 = scmp.lt.s32.totalorder %s14, 5
      %s305 = scalar_select %p304, %s14, 5
      %s306 = smul.addr %s305, 8
      %s307 = scalar_lea.vmem %s3, %s306
      // Predicated region
      $region33: #{macode_forward.7} parent=31 // pred_check
        %p308 = pneg %p110
      $region34: #{macode_forward.7} parent=31 // pred_check_branch
        %310 = sbr.rel (%p308) target = $region36
      $region35: #{macode_forward.7} parent=31 // pred_region
        _
      $region36: #{macode_forward.7} parent=31 // pred_fallthru
        _
    $region32: #{macode_forward.7} parent=5 // pred_fallthru
      _
    %p311 = scmp.le.s32.totalorder 2, %s9
    // Predicated region
    $region37: #{macode_forward.7} parent=5 // pred_check
      %p312 = pneg %p311
    $region38: #{macode_forward.7} parent=5 // pred_check_branch
      %314 = sbr.rel (%p312) target = $region40
    $region39: #{macode_forward.7} parent=5 // pred_region
      %s315 = ssub.s32 %s9, 2
      // Predicated region
      $region41: #{macode_forward.7} parent=39 // pred_check
        %p316 = pneg %p116
      $region42: #{macode_forward.7} parent=39 // pred_check_branch
        %318 = sbr.rel (%p316) target = $region44
      $region43: #{macode_forward.7} parent=39 // pred_region
        %p319 = scmp.lt.s32.totalorder %s15, 5
        %s320 = scalar_select %p319, %s15, 5
        %s321 = smul.addr %s320, 8
        %s322 = scalar_lea.vmem %s3, %s321
      $region44: #{macode_forward.7} parent=39 // pred_fallthru
        _
    $region40: #{macode_forward.7} parent=5 // pred_fallthru
      _
  $region6: #{macode_forward.7} parent=0 // loop_footer
    %s13 = sadd.s32 1, %s9
  $region7: #{macode_forward.7} parent=0 // loop_footer_branch
    %8 = sbr.rel target = $region3
  $region8: #{macode_forward.7} parent=0 // loop_exit
    _

// kernel: macode_forward.5
$region0: #{macode_forward.5}
  #allocation0 [shape = 'u32[]', space=smem, size = 0x4, offset = 0x4, fixed_abs, tag = 'smem constant byte address 0x4 - core index']
  #allocation1 [shape = 'u32[72,128]{1,0:T(1,128)}', space=vmem, size = 0x9000, scoped, tag = 'internal scratch']
  %s0 = inlined_call_operand.vmem [shape: f32[8,6,32], index: 0, kind: input, shape index: {}, may-alias: {0,13}]
  %s1 = inlined_call_operand.vmem [shape: bf16[96,32], index: 1, kind: input, shape index: {}]
  %s2 = inlined_call_operand.vmem [shape: f32[1,96], index: 2, kind: input, shape index: {}]
  %s3 = inlined_call_operand.vmem [shape: bf16[4,32,8], index: 3, kind: input, shape index: {}]
  %s4 = inlined_call_operand.vmem [shape: f32[1,32], index: 4, kind: input, shape index: {}]
  %s5 = inlined_call_operand.vmem [shape: f32[1,32], index: 5, kind: input, shape index: {}]
  %s6 = inlined_call_operand.vmem [shape: f32[1,32], index: 6, kind: input, shape index: {}]
  %s7 = inlined_call_operand.vmem [shape: bf16[2048,32], index: 7, kind: input, shape index: {}]
  %s8 = inlined_call_operand.vmem [shape: f32[1,2048], index: 8, kind: input, shape index: {}]
  %s9 = inlined_call_operand.vmem [shape: bf16[32,2048], index: 9, kind: input, shape index: {}]
  %s10 = inlined_call_operand.vmem [shape: f32[1,32], index: 10, kind: input, shape index: {}]
  %s11 = inlined_call_operand.vmem [shape: f32[1,32], index: 11, kind: input, shape index: {}]
  %s12 = inlined_call_operand.vmem [shape: f32[1,32], index: 12, kind: input, shape index: {}]
  %s13 = inlined_call_operand.vmem [shape: f32[8,6,32], index: 13, kind: output, shape index: {}, may-alias: {0,13}]
  %s14 = sld [smem:[#allocation0]]
  $region85: #{macode_forward.5} parent=0
    _
  %s16 = ssub.s32 1, %s14
  %s17 = scalar_select 0, %s16, %s14
  loop: start=0, step=1, limit=4
  $region2: #{macode_forward.5} parent=0 // loop_pre_header
    _
  $region3: #{macode_forward.5} parent=0 // loop_header
    %s19 = sphi 0, %s23
    %p20 = scmp.ge.s32.totalorder %s19, 4
    %s29 = sphi 0, %s31
    %s32 = sphi 0, %s29
    %s33 = sphi 0, %s32
    %s49 = sphi 0, %s33
    %s53 = sphi 0, %s53
    %s55 = sphi 0, %s53
    %s56 = sphi 0, %s55
    %s70 = sphi 0, %s56
    %s74 = sphi 0, %s74
    %s76 = sphi 0, %s74
    %s77 = sphi 0, %s76
    %s91 = sphi 0, %s77
    %s95 = sphi 0, %s95
    %s97 = sphi 0, %s95
    %s98 = sphi 0, %s97
    %s112 = sphi 0, %s98
    %s116 = sphi 0, %s116
    %s118 = sphi 0, %s116
    %s119 = sphi 0, %s118
    %s133 = sphi 0, %s119
    %s137 = sphi 0, %s137
    %s139 = sphi 0, %s137
    %s140 = sphi 0, %s139
    %s154 = sphi 0, %s140
    %s158 = sphi 0, %s158
    %s160 = sphi 0, %s158
    %s161 = sphi 0, %s160
    %s175 = sphi 0, %s161
    %s179 = sphi 0, %s179
    %s181 = sphi 0, %s179
    %s182 = sphi 0, %s181
    %s196 = sphi 0, %s182
    %s200 = sphi 0, %s200
    %s202 = sphi 0, %s200
    %s203 = sphi 0, %s202
    %s217 = sphi 0, %s203
    %s221 = sphi 0, %s221
    %s223 = sphi 0, %s221
    %s224 = sphi 0, %s223
    %s238 = sphi 0, %s224
    %s242 = sphi 0, %s242
    %s244 = sphi 0, %s242
    %s245 = sphi 0, %s244
    %s259 = sphi 0, %s245
    %s263 = sphi 0, %s263
    %s265 = sphi 0, %s263
    %s266 = sphi 0, %s265
    %s280 = sphi 0, %s266
    %s284 = sphi 0, %s284
    %s286 = sphi 0, %s284
    %s287 = sphi 0, %s286
    %s301 = sphi 0, %s287
    %s307 = sphi 0, %s309
    %s310 = sphi 0, %s307
    %s311 = sphi 0, %s310
    %s327 = sphi 0, %s311
  $region4: #{macode_forward.5} parent=0 // loop_header_branch
    %22 = sbr.rel (%p20) target = $region8
  $region5: #{macode_forward.5} parent=0 // loop_body
    %s24 = ssub.s32 %s19, 1
    %s25 = ssub.s32 %s19, 2
    %s26 = sadd.s32 %s19, 1
    %s27 = ssub.s32 %s19, %s26
    %p28 = scmp.eq.s32.totalorder %s27, 0
    %s30 = sadd.s32 %s29, 1
    %s31 = scalar_select %p28, %s29, %s30
    %p34 = pneg %p28
    %p35 = scmp.eq.s32.totalorder %s19, 1
    %p36 = por %p34, %p35
    %p37 = scmp.ne.s32.totalorder %s29, %s32
    %p38 = scmp.eq.s32.totalorder %s19, 0
    %p39 = por %p37, %p38
    %p40 = scmp.ne.s32.totalorder %s29, %s32
    %p41 = scmp.eq.s32.totalorder %s24, 1
    %p42 = por %p40, %p41
    %p43 = scmp.ne.s32.totalorder %s32, %s33
    %p44 = scmp.eq.s32.totalorder %s24, 0
    %p45 = por %p43, %p44
    %p46 = scmp.ne.s32.totalorder %s32, %s33
    %p47 = scmp.eq.s32.totalorder %s25, 1
    %p48 = por %p46, %p47
    %p50 = scmp.ne.s32.totalorder %s33, %s49
    %p51 = scmp.eq.s32.totalorder %s25, 0
    %p52 = por %p50, %p51
    %s54 = sadd.s32 %s53, 1
    %p57 = scmp.eq.s32.totalorder %s19, 1
    %p58 = scmp.ne.s32.totalorder %s53, %s55
    %p59 = scmp.eq.s32.totalorder %s19, 0
    %p60 = por %p58, %p59
    %p61 = scmp.ne.s32.totalorder %s53, %s55
    %p62 = scmp.eq.s32.totalorder %s24, 1
    %p63 = por %p61, %p62
    %p64 = scmp.ne.s32.totalorder %s55, %s56
    %p65 = scmp.eq.s32.totalorder %s24, 0
    %p66 = por %p64, %p65
    %p67 = scmp.ne.s32.totalorder %s55, %s56
    %p68 = scmp.eq.s32.totalorder %s25, 1
    %p69 = por %p67, %p68
    %p71 = scmp.ne.s32.totalorder %s56, %s70
    %p72 = scmp.eq.s32.totalorder %s25, 0
    %p73 = por %p71, %p72
    %s75 = sadd.s32 %s74, 1
    %p78 = scmp.eq.s32.totalorder %s19, 1
    %p79 = scmp.ne.s32.totalorder %s74, %s76
    %p80 = scmp.eq.s32.totalorder %s19, 0
    %p81 = por %p79, %p80
    %p82 = scmp.ne.s32.totalorder %s74, %s76
    %p83 = scmp.eq.s32.totalorder %s24, 1
    %p84 = por %p82, %p83
    %p85 = scmp.ne.s32.totalorder %s76, %s77
    %p86 = scmp.eq.s32.totalorder %s24, 0
    %p87 = por %p85, %p86
    %p88 = scmp.ne.s32.totalorder %s76, %s77
    %p89 = scmp.eq.s32.totalorder %s25, 1
    %p90 = por %p88, %p89
    %p92 = scmp.ne.s32.totalorder %s77, %s91
    %p93 = scmp.eq.s32.totalorder %s25, 0
    %p94 = por %p92, %p93
    %s96 = sadd.s32 %s95, 1
    %p99 = scmp.eq.s32.totalorder %s19, 1
    %p100 = scmp.ne.s32.totalorder %s95, %s97
    %p101 = scmp.eq.s32.totalorder %s19, 0
    %p102 = por %p100, %p101
    %p103 = scmp.ne.s32.totalorder %s95, %s97
    %p104 = scmp.eq.s32.totalorder %s24, 1
    %p105 = por %p103, %p104
    %p106 = scmp.ne.s32.totalorder %s97, %s98
    %p107 = scmp.eq.s32.totalorder %s24, 0
    %p108 = por %p106, %p107
    %p109 = scmp.ne.s32.totalorder %s97, %s98
    %p110 = scmp.eq.s32.totalorder %s25, 1
    %p111 = por %p109, %p110
    %p113 = scmp.ne.s32.totalorder %s98, %s112
    %p114 = scmp.eq.s32.totalorder %s25, 0
    %p115 = por %p113, %p114
    %s117 = sadd.s32 %s116, 1
    %p120 = scmp.eq.s32.totalorder %s19, 1
    %p121 = scmp.ne.s32.totalorder %s116, %s118
    %p122 = scmp.eq.s32.totalorder %s19, 0
    %p123 = por %p121, %p122
    %p124 = scmp.ne.s32.totalorder %s116, %s118
    %p125 = scmp.eq.s32.totalorder %s24, 1
    %p126 = por %p124, %p125
    %p127 = scmp.ne.s32.totalorder %s118, %s119
    %p128 = scmp.eq.s32.totalorder %s24, 0
    %p129 = por %p127, %p128
    %p130 = scmp.ne.s32.totalorder %s118, %s119
    %p131 = scmp.eq.s32.totalorder %s25, 1
    %p132 = por %p130, %p131
    %p134 = scmp.ne.s32.totalorder %s119, %s133
    %p135 = scmp.eq.s32.totalorder %s25, 0
    %p136 = por %p134, %p135
    %s138 = sadd.s32 %s137, 1
    %p141 = scmp.eq.s32.totalorder %s19, 1
    %p142 = scmp.ne.s32.totalorder %s137, %s139
    %p143 = scmp.eq.s32.totalorder %s19, 0
    %p144 = por %p142, %p143
    %p145 = scmp.ne.s32.totalorder %s137, %s139
    %p146 = scmp.eq.s32.totalorder %s24, 1
    %p147 = por %p145, %p146
    %p148 = scmp.ne.s32.totalorder %s139, %s140
    %p149 = scmp.eq.s32.totalorder %s24, 0
    %p150 = por %p148, %p149
    %p151 = scmp.ne.s32.totalorder %s139, %s140
    %p152 = scmp.eq.s32.totalorder %s25, 1
    %p153 = por %p151, %p152
    %p155 = scmp.ne.s32.totalorder %s140, %s154
    %p156 = scmp.eq.s32.totalorder %s25, 0
    %p157 = por %p155, %p156
    %s159 = sadd.s32 %s158, 1
    %p162 = scmp.eq.s32.totalorder %s19, 1
    %p163 = scmp.ne.s32.totalorder %s158, %s160
    %p164 = scmp.eq.s32.totalorder %s19, 0
    %p165 = por %p163, %p164
    %p166 = scmp.ne.s32.totalorder %s158, %s160
    %p167 = scmp.eq.s32.totalorder %s24, 1
    %p168 = por %p166, %p167
    %p169 = scmp.ne.s32.totalorder %s160, %s161
    %p170 = scmp.eq.s32.totalorder %s24, 0
    %p171 = por %p169, %p170
    %p172 = scmp.ne.s32.totalorder %s160, %s161
    %p173 = scmp.eq.s32.totalorder %s25, 1
    %p174 = por %p172, %p173
    %p176 = scmp.ne.s32.totalorder %s161, %s175
    %p177 = scmp.eq.s32.totalorder %s25, 0
    %p178 = por %p176, %p177
    %s180 = sadd.s32 %s179, 1
    %p183 = scmp.eq.s32.totalorder %s19, 1
    %p184 = scmp.ne.s32.totalorder %s179, %s181
    %p185 = scmp.eq.s32.totalorder %s19, 0
    %p186 = por %p184, %p185
    %p187 = scmp.ne.s32.totalorder %s179, %s181
    %p188 = scmp.eq.s32.totalorder %s24, 1
    %p189 = por %p187, %p188
    %p190 = scmp.ne.s32.totalorder %s181, %s182
    %p191 = scmp.eq.s32.totalorder %s24, 0
    %p192 = por %p190, %p191
    %p193 = scmp.ne.s32.totalorder %s181, %s182
    %p194 = scmp.eq.s32.totalorder %s25, 1
    %p195 = por %p193, %p194
    %p197 = scmp.ne.s32.totalorder %s182, %s196
    %p198 = scmp.eq.s32.totalorder %s25, 0
    %p199 = por %p197, %p198
    %s201 = sadd.s32 %s200, 1
    %p204 = scmp.eq.s32.totalorder %s19, 1
    %p205 = scmp.ne.s32.totalorder %s200, %s202
    %p206 = scmp.eq.s32.totalorder %s19, 0
    %p207 = por %p205, %p206
    %p208 = scmp.ne.s32.totalorder %s200, %s202
    %p209 = scmp.eq.s32.totalorder %s24, 1
    %p210 = por %p208, %p209
    %p211 = scmp.ne.s32.totalorder %s202, %s203
    %p212 = scmp.eq.s32.totalorder %s24, 0
    %p213 = por %p211, %p212
    %p214 = scmp.ne.s32.totalorder %s202, %s203
    %p215 = scmp.eq.s32.totalorder %s25, 1
    %p216 = por %p214, %p215
    %p218 = scmp.ne.s32.totalorder %s203, %s217
    %p219 = scmp.eq.s32.totalorder %s25, 0
    %p220 = por %p218, %p219
    %s222 = sadd.s32 %s221, 1
    %p225 = scmp.eq.s32.totalorder %s19, 1
    %p226 = scmp.ne.s32.totalorder %s221, %s223
    %p227 = scmp.eq.s32.totalorder %s19, 0
    %p228 = por %p226, %p227
    %p229 = scmp.ne.s32.totalorder %s221, %s223
    %p230 = scmp.eq.s32.totalorder %s24, 1
    %p231 = por %p229, %p230
    %p232 = scmp.ne.s32.totalorder %s223, %s224
    %p233 = scmp.eq.s32.totalorder %s24, 0
    %p234 = por %p232, %p233
    %p235 = scmp.ne.s32.totalorder %s223, %s224
    %p236 = scmp.eq.s32.totalorder %s25, 1
    %p237 = por %p235, %p236
    %p239 = scmp.ne.s32.totalorder %s224, %s238
    %p240 = scmp.eq.s32.totalorder %s25, 0
    %p241 = por %p239, %p240
    %s243 = sadd.s32 %s242, 1
    %p246 = scmp.eq.s32.totalorder %s19, 1
    %p247 = scmp.ne.s32.totalorder %s242, %s244
    %p248 = scmp.eq.s32.totalorder %s19, 0
    %p249 = por %p247, %p248
    %p250 = scmp.ne.s32.totalorder %s242, %s244
    %p251 = scmp.eq.s32.totalorder %s24, 1
    %p252 = por %p250, %p251
    %p253 = scmp.ne.s32.totalorder %s244, %s245
    %p254 = scmp.eq.s32.totalorder %s24, 0
    %p255 = por %p253, %p254
    %p256 = scmp.ne.s32.totalorder %s244, %s245
    %p257 = scmp.eq.s32.totalorder %s25, 1
    %p258 = por %p256, %p257
    %p260 = scmp.ne.s32.totalorder %s245, %s259
    %p261 = scmp.eq.s32.totalorder %s25, 0
    %p262 = por %p260, %p261
    %s264 = sadd.s32 %s263, 1
    %p267 = scmp.eq.s32.totalorder %s19, 1
    %p268 = scmp.ne.s32.totalorder %s263, %s265
    %p269 = scmp.eq.s32.totalorder %s19, 0
    %p270 = por %p268, %p269
    %p271 = scmp.ne.s32.totalorder %s263, %s265
    %p272 = scmp.eq.s32.totalorder %s24, 1
    %p273 = por %p271, %p272
    %p274 = scmp.ne.s32.totalorder %s265, %s266
    %p275 = scmp.eq.s32.totalorder %s24, 0
    %p276 = por %p274, %p275
    %p277 = scmp.ne.s32.totalorder %s265, %s266
    %p278 = scmp.eq.s32.totalorder %s25, 1
    %p279 = por %p277, %p278
    %p281 = scmp.ne.s32.totalorder %s266, %s280
    %p282 = scmp.eq.s32.totalorder %s25, 0
    %p283 = por %p281, %p282
    %s285 = sadd.s32 %s284, 1
    %p288 = scmp.eq.s32.totalorder %s19, 1
    %p289 = scmp.ne.s32.totalorder %s284, %s286
    %p290 = scmp.eq.s32.totalorder %s19, 0
    %p291 = por %p289, %p290
    %p292 = scmp.ne.s32.totalorder %s284, %s286
    %p293 = scmp.eq.s32.totalorder %s24, 1
    %p294 = por %p292, %p293
    %p295 = scmp.ne.s32.totalorder %s286, %s287
    %p296 = scmp.eq.s32.totalorder %s24, 0
    %p297 = por %p295, %p296
    %p298 = scmp.ne.s32.totalorder %s286, %s287
    %p299 = scmp.eq.s32.totalorder %s25, 1
    %p300 = por %p298, %p299
    %p302 = scmp.ne.s32.totalorder %s287, %s301
    %p303 = scmp.eq.s32.totalorder %s25, 0
    %p304 = por %p302, %p303
    %s305 = ssub.s32 %s19, %s26
    %p306 = scmp.eq.s32.totalorder %s305, 0
    %s308 = sadd.s32 %s307, 1
    %s309 = scalar_select %p306, %s307, %s308
    %p312 = pneg %p306
    %p313 = scmp.eq.s32.totalorder %s19, 1
    %p314 = por %p312, %p313
    %p315 = scmp.ne.s32.totalorder %s307, %s310
    %p316 = scmp.eq.s32.totalorder %s19, 0
    %p317 = por %p315, %p316
    %p318 = scmp.ne.s32.totalorder %s307, %s310
    %p319 = scmp.eq.s32.totalorder %s24, 1
    %p320 = por %p318, %p319
    %p321 = scmp.ne.s32.totalorder %s310, %s311
    %p322 = scmp.eq.s32.totalorder %s24, 0
    %p323 = por %p321, %p322
    %p324 = scmp.ne.s32.totalorder %s310, %s311
    %p325 = scmp.eq.s32.totalorder %s25, 1
    %p326 = por %p324, %p325
    %p328 = scmp.ne.s32.totalorder %s311, %s327
    %p329 = scmp.eq.s32.totalorder %s25, 0
    %p330 = por %p328, %p329
    %p331 = scmp.le.s32.totalorder 1, %s19
    %p332 = scmp.lt.s32.totalorder %s19, 3
    %p333 = pnand %p331, %p332
    %p334 = pneg %p333
    // Predicated region
    $region9: #{macode_forward.5} parent=5 // pred_check
      _
    $region10: #{macode_forward.5} parent=5 // pred_check_branch
      %336 = sbr.rel (%p333) target = $region12
    $region11: #{macode_forward.5} parent=5 // pred_region
      %s337 = ssub.s32 %s19, 1
      // Predicated region
      $region13: #{macode_forward.5} parent=11 // pred_check
        %p338 = pneg %p66
      $region14: #{macode_forward.5} parent=11 // pred_check_branch
        %340 = sbr.rel (%p338) target = $region16
      $region15: #{macode_forward.5} parent=11 // pred_region
        _
      $region16: #{macode_forward.5} parent=11 // pred_fallthru
        _
      // Predicated region
      $region17: #{macode_forward.5} parent=11 // pred_check
        %p341 = pneg %p87
      $region18: #{macode_forward.5} parent=11 // pred_check_branch
        %343 = sbr.rel (%p341) target = $region20
      $region19: #{macode_forward.5} parent=11 // pred_region
        _
      $region20: #{macode_forward.5} parent=11 // pred_fallthru
        _
      // Predicated region
      $region21: #{macode_forward.5} parent=11 // pred_check
        %p344 = pneg %p108
      $region22: #{macode_forward.5} parent=11 // pred_check_branch
        %346 = sbr.rel (%p344) target = $region24
      $region23: #{macode_forward.5} parent=11 // pred_region
        _
      $region24: #{macode_forward.5} parent=11 // pred_fallthru
        _
      // Predicated region
      $region25: #{macode_forward.5} parent=11 // pred_check
        %p347 = pneg %p129
      $region26: #{macode_forward.5} parent=11 // pred_check_branch
        %349 = sbr.rel (%p347) target = $region28
      $region27: #{macode_forward.5} parent=11 // pred_region
        _
      $region28: #{macode_forward.5} parent=11 // pred_fallthru
        _
      // Predicated region
      $region29: #{macode_forward.5} parent=11 // pred_check
        %p350 = pneg %p150
      $region30: #{macode_forward.5} parent=11 // pred_check_branch
        %352 = sbr.rel (%p350) target = $region32
      $region31: #{macode_forward.5} parent=11 // pred_region
        _
      $region32: #{macode_forward.5} parent=11 // pred_fallthru
        _
      // Predicated region
      $region33: #{macode_forward.5} parent=11 // pred_check
        %p353 = pneg %p171
      $region34: #{macode_forward.5} parent=11 // pred_check_branch
        %355 = sbr.rel (%p353) target = $region36
      $region35: #{macode_forward.5} parent=11 // pred_region
        _
      $region36: #{macode_forward.5} parent=11 // pred_fallthru
        _
      // Predicated region
      $region37: #{macode_forward.5} parent=11 // pred_check
        %p356 = pneg %p192
      $region38: #{macode_forward.5} parent=11 // pred_check_branch
        %358 = sbr.rel (%p356) target = $region40
      $region39: #{macode_forward.5} parent=11 // pred_region
        _
      $region40: #{macode_forward.5} parent=11 // pred_fallthru
        _
      // Predicated region
      $region41: #{macode_forward.5} parent=11 // pred_check
        %p359 = pneg %p213
      $region42: #{macode_forward.5} parent=11 // pred_check_branch
        %361 = sbr.rel (%p359) target = $region44
      $region43: #{macode_forward.5} parent=11 // pred_region
        _
      $region44: #{macode_forward.5} parent=11 // pred_fallthru
        _
      // Predicated region
      $region45: #{macode_forward.5} parent=11 // pred_check
        %p362 = pneg %p234
      $region46: #{macode_forward.5} parent=11 // pred_check_branch
        %364 = sbr.rel (%p362) target = $region48
      $region47: #{macode_forward.5} parent=11 // pred_region
        _
      $region48: #{macode_forward.5} parent=11 // pred_fallthru
        _
      // Predicated region
      $region49: #{macode_forward.5} parent=11 // pred_check
        %p365 = pneg %p255
      $region50: #{macode_forward.5} parent=11 // pred_check_branch
        %367 = sbr.rel (%p365) target = $region52
      $region51: #{macode_forward.5} parent=11 // pred_region
        _
      $region52: #{macode_forward.5} parent=11 // pred_fallthru
        _
      // Predicated region
      $region53: #{macode_forward.5} parent=11 // pred_check
        %p368 = pneg %p276
      $region54: #{macode_forward.5} parent=11 // pred_check_branch
        %370 = sbr.rel (%p368) target = $region56
      $region55: #{macode_forward.5} parent=11 // pred_region
        _
      $region56: #{macode_forward.5} parent=11 // pred_fallthru
        _
      // Predicated region
      $region57: #{macode_forward.5} parent=11 // pred_check
        %p371 = pneg %p297
      $region58: #{macode_forward.5} parent=11 // pred_check_branch
        %373 = sbr.rel (%p371) target = $region60
      $region59: #{macode_forward.5} parent=11 // pred_region
        _
      $region60: #{macode_forward.5} parent=11 // pred_fallthru
        _
    $region12: #{macode_forward.5} parent=5 // pred_fallthru
      _
    %p374 = scmp.lt.s32.totalorder %s19, 2
    // Predicated region
    $region61: #{macode_forward.5} parent=5 // pred_check
      %p375 = pneg %p374
    $region62: #{macode_forward.5} parent=5 // pred_check_branch
      %377 = sbr.rel (%p375) target = $region64
    $region63: #{macode_forward.5} parent=5 // pred_region
      // Predicated region
      $region65: #{macode_forward.5} parent=63 // pred_check
        %p378 = pneg %p39
      $region66: #{macode_forward.5} parent=63 // pred_check_branch
        %380 = sbr.rel (%p378) target = $region68
      $region67: #{macode_forward.5} parent=63 // pred_region
        %s381 = smul.u32 4, %s19
        %p382 = scmp.lt.s32.totalorder %s381, 7
        %s383 = scalar_select %p382, %s381, 7
        %s384 = smul.addr %s383, 8
        %s385 = scalar_lea.vmem %s0, %s384
        %s386 = smul.u32 4, %s19
      $region68: #{macode_forward.5} parent=63 // pred_fallthru
        _
    $region64: #{macode_forward.5} parent=5 // pred_fallthru
      _
    %p387 = scmp.le.s32.totalorder 1, %s19
    %p388 = scmp.lt.s32.totalorder %s19, 3
    %p389 = pnand %p387, %p388
    %p390 = pneg %p389
    // Predicated region
    $region69: #{macode_forward.5} parent=5 // pred_check
      _
    $region70: #{macode_forward.5} parent=5 // pred_check_branch
      %392 = sbr.rel (%p389) target = $region72
    $region71: #{macode_forward.5} parent=5 // pred_region
      %s393 = ssub.s32 %s19, 1
      %s394 = smul.u32 4, %s24
      %p395 = scmp.lt.s32.totalorder %s394, 7
      %s396 = scalar_select %p395, %s394, 7
      %s397 = smul.addr %s396, 8
      %s398 = scalar_lea.vmem %s0, %s397
      %p399 = pneg %p45
      %p400 = pneg %p42
      %p401 = pneg %p66
      %p402 = pneg %p63
      %p403 = pneg %p87
      %p404 = pneg %p84
      %p405 = pneg %p108
      %p406 = pneg %p105
      %p407 = pneg %p129
      %p408 = pneg %p126
      %p409 = pneg %p150
      %p410 = pneg %p147
      %p411 = pneg %p171
      %p412 = pneg %p168
      %p413 = pneg %p192
      %p414 = pneg %p189
      %p415 = pneg %p213
      %p416 = pneg %p210
      %p417 = pneg %p234
      %p418 = pneg %p231
      %p419 = pneg %p255
      %p420 = pneg %p252
      %p421 = pneg %p276
      %p422 = pneg %p273
      %p423 = pneg %p297
      %p424 = pneg %p294
      %p425 = pneg %p323
      %p426 = pneg %p320
      %s427 = smul.u32 4, %s24
      %p428 = scmp.lt.s32.totalorder %s427, 7
      %s429 = scalar_select %p428, %s427, 7
      %s430 = smul.addr %s429, 8
      %s431 = scalar_lea.vmem %s13, %s430
      %s432 = smul.u32 4, %s24
      %p433 = scmp.lt.s32.totalorder %s432, 7
      %s434 = scalar_select %p433, %s432, 7
      %s435 = smul.addr %s434, 8
      %s436 = scalar_lea.vmem %s0, %s435
      %s437 = smul.u32 4, %s24
      %s438 = smul.u32 4, %s24
      %p439 = scmp.lt.s32.totalorder %s438, 7
      %s440 = scalar_select %p439, %s438, 7
      %s441 = smul.addr %s440, 8
      %s442 = scalar_lea.vmem %s13, %s441
      %s443 = smul.u32 4, %s24
      %v445 = vld [vmem:[%s436] sm:$0x3f]
      %v446 = vld [vmem:[%s436 + $0x8] sm:$0x3f]
      %v447 = vld [vmem:[%s436 + $0x10] sm:$0x3f]
      %v448 = vld [vmem:[%s436 + $0x18] sm:$0x3f]
      %v453 = vrot.slane %v445, 2
      %v454 = vrot.slane %v445, 4
      %v455 = vrot.slane %v446, 2
      %v456 = vrot.slane %v446, 4
      %v457 = vrot.slane %v447, 2
      %v458 = vrot.slane %v447, 4
      %v459 = vrot.slane %v448, 2
      %v460 = vrot.slane %v448, 4
      %469 = vst [vmem:[#allocation1] ss:$4 sm:$0xff] %v445
      %s470 = scalar_lea.vmem [#allocation1], 1
      %471 = vst [vmem:[%s470] ss:$4 sm:$0xff] %v453
      %s472 = scalar_lea.vmem [#allocation1], 2
      %473 = vst [vmem:[%s472] ss:$4 sm:$0xff] %v454
      %s474 = scalar_lea.vmem [#allocation1], 3
      %475 = vst [vmem:[%s474] ss:$4 sm:$0xff] %v446
      %s476 = scalar_lea.vmem [#allocation1], 32
      %477 = vst [vmem:[%s476] ss:$4 sm:$0xff] %v455
      %s478 = scalar_lea.vmem [#allocation1], 33
      %479 = vst [vmem:[%s478] ss:$4 sm:$0xff] %v456
      %s480 = scalar_lea.vmem [#allocation1], 34
      %481 = vst [vmem:[%s480] ss:$4 sm:$0xff] %v447
      %s482 = scalar_lea.vmem [#allocation1], 35
      %483 = vst [vmem:[%s482] ss:$4 sm:$0xff] %v457
      %v484 = vld.sshfl [vmem:[#allocation1] sm:$0xff pattern:$0x73625140]
      %v485 = vld.sshfl [vmem:[#allocation1 + $0x20] sm:$0xff pattern:$0x73625140]
      %486 = vst [vmem:[#allocation1] ss:$4 sm:$0xff] %v458
      %487 = vst [vmem:[%s470] ss:$4 sm:$0xff] %v448
      %488 = vst [vmem:[%s472] ss:$4 sm:$0xff] %v459
      %489 = vst [vmem:[%s474] ss:$4 sm:$0xff] %v460
      %v490 = vld.sshfl [vmem:[#allocation1] sm:$0xff pattern:$0x73625140]
      %v494 = vpack.c.bf16 %v485, %v484
      %v495 = vpack.c.bf16 %v490, %v490
      %v496 = vld [vmem:[%s1] sm:$0xf]
      %v497 = vld [vmem:[%s1 + $0x4] sm:$0xf]
      %v498 = vld [vmem:[%s1 + $0x8] sm:$0xf]
      %v499 = vld [vmem:[%s1 + $0xc] sm:$0xf]
      %v500 = vld [vmem:[%s1 + $0x10] sm:$0xf]
      %v501 = vld [vmem:[%s1 + $0x14] sm:$0xf]
      %v502 = vld [vmem:[%s1 + $0x18] sm:$0xf]
      %v503 = vld [vmem:[%s1 + $0x1c] sm:$0xf]
      %v504 = vld [vmem:[%s1 + $0x20] sm:$0xf]
      %v505 = vld [vmem:[%s1 + $0x24] sm:$0xf]
      %v506 = vld [vmem:[%s1 + $0x28] sm:$0xf]
      %v507 = vld [vmem:[%s1 + $0x2c] sm:$0xf]
      %v508 = vld [vmem:[%s2] sm:$0x1]
      %v510 = vperm.slane %v508, 0
      %v524 = vunpack.c.l.b16 %v496
      %v525 = vunpack.c.l.b16 %v497
      %v526 = vunpack.c.l.b16 %v498
      %v527 = vunpack.c.l.b16 %v499
      %v528 = vunpack.c.l.b16 %v500
      %v529 = vunpack.c.l.b16 %v501
      %v530 = vunpack.c.l.b16 %v502
      %v531 = vunpack.c.l.b16 %v503
      %v532 = vunpack.c.l.b16 %v504
      %v533 = vunpack.c.l.b16 %v505
      %v534 = vunpack.c.l.b16 %v506
      %v535 = vunpack.c.l.b16 %v507
      %v536 = vpack.c.b16 %v525, %v524
      %v537 = vpack.c.b16 %v527, %v526
      %v538 = vpack.c.b16 %v529, %v528
      %v539 = vpack.c.b16 %v531, %v530
      %v540 = vpack.c.b16 %v533, %v532
      %v541 = vpack.c.b16 %v535, %v534
      %vm542 = vcmask 261120
      %v544 = vsel %vm542, %v494, 0
      %v547 = vsel %vm542, %v495, 0
      %v550 = vsel %vm542, %v536, 0
      %v553 = vsel %vm542, %v537, 0
      %v556 = vsel %vm542, %v538, 0
      %v559 = vsel %vm542, %v539, 0
      %v562 = vsel %vm542, %v540, 0
      %v565 = vsel %vm542, %v541, 0
      %567 = vmatpush.bf16.xpose.msra.mxu0 0
      %568 = vmatpush.bf16.xpose.msra.mxu0 0
      %569 = vmatpush.bf16.xpose.msra.mxu0 %v565
      %570 = vmatpush.bf16.xpose.msra.mxu0 %v562
      %571 = vmatpush.bf16.xpose.msra.mxu0 %v559
      %572 = vmatpush.bf16.xpose.msra.mxu0 %v556
      %573 = vmatpush.bf16.xpose.msra.mxu0 %v553
      %574 = vmatpush.bf16.xpose.msra.mxu0 %v550
      %575 = vmatmul.bf16.gmra.mxu0 %v544
      %v576 = vpop.f32.mrf.mxu0
      %v577 = vadd.f32 %v510, %v576
      %v578 = vpop.f32.mrf.mxu0
      %v579 = vadd.f32 %v510, %v578
      %580 = vmatmul.bf16.gmra.mxu0 %v547
      %v581 = vpop.f32.mrf.mxu0
      %v582 = vadd.f32 %v510, %v581
      %v583 = vpop.f32.mrf.mxu0
      %584 = vdwg.mxu0
      %v585 = vmul.f32 %v577, 0.35355338
      %v586 = vmul.f32 %v579, 0.35355338
      %v587 = vmul.f32 %v582, 0.35355338
      %v591 = vrot.slane %v585, 2
      %v592 = vrot.slane %v585, 4
      %v593 = vrot.slane %v585, 6
      %v594 = vrot.slane %v586, 2
      %v595 = vrot.slane %v586, 4
      %v596 = vrot.slane %v586, 6
      %v597 = vrot.slane %v587, 2
      %v598 = vrot.slane %v587, 4
      %v599 = vrot.slane %v587, 6
      %v603 = vrot.slane %v577, 2
      %v604 = vrot.slane %v577, 4
      %v605 = vrot.slane %v577, 6
      %v606 = vrot.slane %v579, 2
      %v607 = vrot.slane %v579, 4
      %v608 = vrot.slane %v579, 6
      %v609 = vrot.slane %v582, 2
      %v610 = vrot.slane %v582, 4
      %v611 = vrot.slane %v582, 6
      %612 = vst [vmem:[#allocation1] ss:$4 sm:$0xff] %v585
      %s613 = scalar_lea.vmem [#allocation1], 1
      %614 = vst [vmem:[%s613] ss:$4 sm:$0xff] %v591
      %s615 = scalar_lea.vmem [#allocation1], 2
      %616 = vst [vmem:[%s615] ss:$4 sm:$0xff] %v592
      %v617 = vld.sshfl [vmem:[#allocation1] sm:$0xff pattern:$0x73625140]
      %s618 = scalar_lea.vmem [#allocation1], 32
      %619 = vst [vmem:[%s618] ss:$4 sm:$0xff] %v593
      %s620 = scalar_lea.vmem [#allocation1], 33
      %621 = vst [vmem:[%s620] ss:$4 sm:$0xff] %v586
      %s622 = scalar_lea.vmem [#allocation1], 34
      %623 = vst [vmem:[%s622] ss:$4 sm:$0xff] %v594
      %v624 = vld.sshfl [vmem:[#allocation1 + $0x20] sm:$0xff pattern:$0x73625140]
      %625 = vst [vmem:[#allocation1] ss:$4 sm:$0xff] %v595
      %626 = vst [vmem:[%s613] ss:$4 sm:$0xff] %v596
      %627 = vst [vmem:[%s615] ss:$4 sm:$0xff] %v587
      %v628 = vld.sshfl [vmem:[#allocation1] sm:$0xff pattern:$0x73625140]
      %629 = vst [vmem:[%s618] ss:$4 sm:$0xff] %v597
      %630 = vst [vmem:[%s620] ss:$4 sm:$0xff] %v598
      %631 = vst [vmem:[%s622] ss:$4 sm:$0xff] %v599
      %v632 = vld.sshfl [vmem:[#allocation1 + $0x20] sm:$0xff pattern:$0x73625140]
      %v637 = vpack.c.bf16 %v617, %v617
      %v638 = vpack.c.bf16 %v624, %v624
      %v639 = vpack.c.bf16 %v628, %v628
      %v640 = vpack.c.bf16 %v632, %v632
      %641 = vst [vmem:[#allocation1] ss:$4 sm:$0xff] %v577
      %s642 = scalar_lea.vmem [#allocation1], 1
      %643 = vst [vmem:[%s642] ss:$4 sm:$0xff] %v603
      %s644 = scalar_lea.vmem [#allocation1], 2
      %645 = vst [vmem:[%s644] ss:$4 sm:$0xff] %v604
      %v646 = vld.sshfl [vmem:[#allocation1] sm:$0xff pattern:$0x73625140]
      %s647 = scalar_lea.vmem [#allocation1], 32
      %648 = vst [vmem:[%s647] ss:$4 sm:$0xff] %v605
      %s649 = scalar_lea.vmem [#allocation1], 33
      %650 = vst [vmem:[%s649] ss:$4 sm:$0xff] %v579
      %s651 = scalar_lea.vmem [#allocation1], 34
      %652 = vst [vmem:[%s651] ss:$4 sm:$0xff] %v606
      %v653 = vld.sshfl [vmem:[#allocation1 + $0x20] sm:$0xff pattern:$0x73625140]
      %654 = vst [vmem:[#allocation1] ss:$4 sm:$0xff] %v607
      %655 = vst [vmem:[%s642] ss:$4 sm:$0xff] %v608
      %656 = vst [vmem:[%s644] ss:$4 sm:$0xff] %v582
      %v657 = vld.sshfl [vmem:[#allocation1] sm:$0xff pattern:$0x73625140]
      %658 = vst [vmem:[%s647] ss:$4 sm:$0xff] %v609
      %659 = vst [vmem:[%s649] ss:$4 sm:$0xff] %v610
      %660 = vst [vmem:[%s651] ss:$4 sm:$0xff] %v611
      %v661 = vld.sshfl [vmem:[#allocation1 + $0x20] sm:$0xff pattern:$0x73625140]
      %v666 = vpack.c.bf16 %v646, %v646
      %v667 = vpack.c.bf16 %v653, %v653
      %v668 = vpack.c.bf16 %v657, %v657
      %v669 = vpack.c.bf16 %v661, %v661
      %v671 = vunpack.c.l.b16 %v666
      %v672 = vpack.c.b16 %v671, %v671
      %673 = vrot.lane.b32.xlu0 %v672, 96
      %v674 = vpop.permute.xlu0 %673
      %vm675 = vcmask 64512
      %v677 = vsel %vm675, %v637, 0
      %v680 = vsel %vm675, %v674, 0
      %682 = vmatpush.bf16.xpose.msra.mxu0 0
      %683 = vmatpush.bf16.xpose.msra.mxu0 0
      %684 = vmatpush.bf16.xpose.msra.mxu0 0
      %685 = vmatpush.bf16.xpose.msra.mxu0 0
      %686 = vmatpush.bf16.xpose.msra.mxu0 0
      %687 = vmatpush.bf16.xpose.msra.mxu0 0
      %688 = vmatpush.bf16.xpose.msra.mxu0 0
      %689 = vmatpush.bf16.xpose.msra.mxu0 %v680
      %690 = vmatmul.bf16.gmra.mxu0 %v677
      %v691 = vpop.f32.mrf.mxu0
      %v692 = vadd.f32 0.0, %v691
      %v693 = vpop.f32.mrf.mxu0
      %694 = vdwg.mxu0
      %v696 = vunpack.c.l.b16 %v667
      %v697 = vpack.c.b16 %v696, %v696
      %698 = vrot.lane.b32.xlu0 %v697, 96
      %v699 = vpop.permute.xlu0 %698
      %v701 = vsel %vm675, %v638, 0
      %v704 = vsel %vm675, %v699, 0
      %706 = vmatpush.bf16.xpose.msra.mxu0 0
      %707 = vmatpush.bf16.xpose.msra.mxu0 0
      %708 = vmatpush.bf16.xpose.msra.mxu0 0
      %709 = vmatpush.bf16.xpose.msra.mxu0 0
      %710 = vmatpush.bf16.xpose.msra.mxu0 0
      %711 = vmatpush.bf16.xpose.msra.mxu0 0
      %712 = vmatpush.bf16.xpose.msra.mxu0 0
      %713 = vmatpush.bf16.xpose.msra.mxu0 %v704
      %714 = vmatmul.bf16.gmra.mxu0 %v701
      %v715 = vpop.f32.mrf.mxu0
      %v716 = vadd.f32 0.0, %v715
      %v717 = vpop.f32.mrf.mxu0
      %718 = vdwg.mxu0
      %v720 = vunpack.c.l.b16 %v668
      %v721 = vpack.c.b16 %v720, %v720
      %722 = vrot.lane.b32.xlu0 %v721, 96
      %v723 = vpop.permute.xlu0 %722
      %v725 = vsel %vm675, %v639, 0
      %v728 = vsel %vm675, %v723, 0
      %730 = vmatpush.bf16.xpose.msra.mxu0 0
      %731 = vmatpush.bf16.xpose.msra.mxu0 0
      %732 = vmatpush.bf16.xpose.msra.mxu0 0
      %733 = vmatpush.bf16.xpose.msra.mxu0 0
      %734 = vmatpush.bf16.xpose.msra.mxu0 0
      %735 = vmatpush.bf16.xpose.msra.mxu0 0
      %736 = vmatpush.bf16.xpose.msra.mxu0 0
      %737 = vmatpush.bf16.xpose.msra.mxu0 %v728
      %738 = vmatmul.bf16.gmra.mxu0 %v725
      %v739 = vpop.f32.mrf.mxu0
      %v740 = vadd.f32 0.0, %v739
      %v741 = vpop.f32.mrf.mxu0
      %742 = vdwg.mxu0
      %v744 = vunpack.c.l.b16 %v669
      %v745 = vpack.c.b16 %v744, %v744
      %746 = vrot.lane.b32.xlu0 %v745, 96
      %v747 = vpop.permute.xlu0 %746
      %v749 = vsel %vm675, %v640, 0
      %v752 = vsel %vm675, %v747, 0
      %754 = vmatpush.bf16.xpose.msra.mxu0 0
      %755 = vmatpush.bf16.xpose.msra.mxu0 0
      %756 = vmatpush.bf16.xpose.msra.mxu0 0
      %757 = vmatpush.bf16.xpose.msra.mxu0 0
      %758 = vmatpush.bf16.xpose.msra.mxu0 0
      %759 = vmatpush.bf16.xpose.msra.mxu0 0
      %760 = vmatpush.bf16.xpose.msra.mxu0 0
      %761 = vmatpush.bf16.xpose.msra.mxu0 %v752
      %762 = vmatmul.bf16.gmra.mxu0 %v749
      %v763 = vpop.f32.mrf.mxu0
      %v764 = vadd.f32 0.0, %v763
      %v765 = vpop.f32.mrf.mxu0
      %766 = vdwg.mxu0
      %vm767 = vcmask 46080
      %v768 = vsel %vm767, %v692, -inf
      %769 = vmax.xlane.f32.xlu0 %v768
      %v770 = vpop.xlane.xlu0 %769
      %v771 = vsel %vm767, %v716, -inf
      %772 = vmax.xlane.f32.xlu0 %v771
      %v773 = vpop.xlane.xlu0 %772
      %v774 = vsel %vm767, %v740, -inf
      %775 = vmax.xlane.f32.xlu0 %v774
      %v776 = vpop.xlane.xlu0 %775
      %v777 = vsel %vm767, %v764, -inf
      %778 = vmax.xlane.f32.xlu0 %v777
      %v779 = vpop.xlane.xlu0 %778
      %v780 = vsub.f32 %v692, %v770
      %v781 = vsub.f32 %v716, %v773
      %v782 = vsub.f32 %v740, %v776
      %v783 = vsub.f32 %v764, %v779
      %v784 = vmul.f32 %v780, 1.442695
      %v785 = vpow.pop %v784
      %v786 = vmul.f32 %v781, 1.442695
      %v787 = vpow.pop %v786
      %v788 = vmul.f32 %v782, 1.442695
      %v789 = vpow.pop %v788
      %v790 = vmul.f32 %v783, 1.442695
      %v791 = vpow.pop %v790
      %v792 = vsel %vm767, %v785, 0.0
      %793 = vadd.xlane.f32.xlu0 %v792
      %v794 = vpop.xlane.xlu0 %793
      %v795 = vsel %vm767, %v787, 0.0
      %796 = vadd.xlane.f32.xlu0 %v795
      %v797 = vpop.xlane.xlu0 %796
      %v798 = vsel %vm767, %v789, 0.0
      %799 = vadd.xlane.f32.xlu0 %v798
      %v800 = vpop.xlane.xlu0 %799
      %v801 = vsel %vm767, %v791, 0.0
      %802 = vadd.xlane.f32.xlu0 %v801
      %v803 = vpop.xlane.xlu0 %802
      %v804 = vrcp.pop %v794
      %v805 = vrcp.pop %v797
      %v806 = vrcp.pop %v800
      %v807 = vrcp.pop %v803
      %v808 = vmul.f32 %v785, %v804
      %v809 = vmul.f32 %v787, %v805
      %v810 = vmul.f32 %v789, %v806
      %v811 = vmul.f32 %v791, %v807
      %v812 = vpack.c.bf16 %v808, %v808
      %v813 = vpack.c.bf16 %v809, %v809
      %v814 = vpack.c.bf16 %v810, %v810
      %v815 = vpack.c.bf16 %v811, %v811
      %816 = vst [vmem:[#allocation1] ss:$4 sm:$0xff] %v577
      %s817 = scalar_lea.vmem [#allocation1], 1
      %818 = vst [vmem:[%s817] ss:$4 sm:$0xff] %v603
      %s819 = scalar_lea.vmem [#allocation1], 2
      %820 = vst [vmem:[%s819] ss:$4 sm:$0xff] %v604
      %v821 = vld.sshfl [vmem:[#allocation1] sm:$0xff pattern:$0x73625140]
      %s822 = scalar_lea.vmem [#allocation1], 32
      %823 = vst [vmem:[%s822] ss:$4 sm:$0xff] %v605
      %s824 = scalar_lea.vmem [#allocation1], 33
      %825 = vst [vmem:[%s824] ss:$4 sm:$0xff] %v579
      %s826 = scalar_lea.vmem [#allocation1], 34
      %827 = vst [vmem:[%s826] ss:$4 sm:$0xff] %v606
      %v828 = vld.sshfl [vmem:[#allocation1 + $0x20] sm:$0xff pattern:$0x73625140]
      %829 = vst [vmem:[#allocation1] ss:$4 sm:$0xff] %v607
      %830 = vst [vmem:[%s817] ss:$4 sm:$0xff] %v608
      %831 = vst [vmem:[%s819] ss:$4 sm:$0xff] %v582
      %v832 = vld.sshfl [vmem:[#allocation1] sm:$0xff pattern:$0x73625140]
      %833 = vst [vmem:[%s822] ss:$4 sm:$0xff] %v609
      %834 = vst [vmem:[%s824] ss:$4 sm:$0xff] %v610
      %835 = vst [vmem:[%s826] ss:$4 sm:$0xff] %v611
      %v836 = vld.sshfl [vmem:[#allocation1 + $0x20] sm:$0xff pattern:$0x73625140]
      %v841 = vpack.c.bf16 %v821, %v821
      %v842 = vpack.c.bf16 %v828, %v828
      %v843 = vpack.c.bf16 %v832, %v832
      %v844 = vpack.c.bf16 %v836, %v836
      %v846 = vunpack.c.l.b16 %v841
      %v847 = vpack.c.b16 %v846, %v846
      %848 = vrot.lane.b32.xlu0 %v847, 64
      %v849 = vpop.permute.xlu0 %848
      %vm850 = vcmask 48128
      %v852 = vsel %vm850, %v812, 0
      %vm854 = vcmask 1042432
      %v856 = vsel %vm854, %v849, 0
      %858 = vmatpush.bf16.msra.mxu0 0
      %859 = vmatpush.bf16.msra.mxu0 0
      %860 = vmatpush.bf16.msra.mxu0 0
      %861 = vmatpush.bf16.msra.mxu0 0
      %862 = vmatpush.bf16.msra.mxu0 0
      %863 = vmatpush.bf16.msra.mxu0 0
      %864 = vmatpush.bf16.msra.mxu0 0
      %865 = vmatpush.bf16.msra.mxu0 %v856
      %866 = vmatmul.bf16.gmra.mxu0 %v852
      %v867 = vpop.f32.mrf.mxu0
      %v868 = vadd.f32 0.0, %v867
      %v869 = vpop.f32.mrf.mxu0
      %870 = vdwg.mxu0
      %v872 = vunpack.c.l.b16 %v842
      %v873 = vpack.c.b16 %v872, %v872
      %874 = vrot.lane.b32.xlu0 %v873, 64
      %v875 = vpop.permute.xlu0 %874
      %v877 = vsel %vm850, %v813, 0
      %v880 = vsel %vm854, %v875, 0
      %882 = vmatpush.bf16.msra.mxu0 0
      %883 = vmatpush.bf16.msra.mxu0 0
      %884 = vmatpush.bf16.msra.mxu0 0
      %885 = vmatpush.bf16.msra.mxu0 0
      %886 = vmatpush.bf16.msra.mxu0 0
      %887 = vmatpush.bf16.msra.mxu0 0
      %888 = vmatpush.bf16.msra.mxu0 0
      %889 = vmatpush.bf16.msra.mxu0 %v880
      %890 = vmatmul.bf16.gmra.mxu0 %v877
      %v891 = vpop.f32.mrf.mxu0
      %v892 = vadd.f32 0.0, %v891
      %v893 = vpop.f32.mrf.mxu0
      %894 = vdwg.mxu0
      %v896 = vunpack.c.l.b16 %v843
      %v897 = vpack.c.b16 %v896, %v896
      %898 = vrot.lane.b32.xlu0 %v897, 64
      %v899 = vpop.permute.xlu0 %898
      %v901 = vsel %vm850, %v814, 0
      %v904 = vsel %vm854, %v899, 0
      %906 = vmatpush.bf16.msra.mxu0 0
      %907 = vmatpush.bf16.msra.mxu0 0
      %908 = vmatpush.bf16.msra.mxu0 0
      %909 = vmatpush.bf16.msra.mxu0 0
      %910 = vmatpush.bf16.msra.mxu0 0
      %911 = vmatpush.bf16.msra.mxu0 0
      %912 = vmatpush.bf16.msra.mxu0 0
      %913 = vmatpush.bf16.msra.mxu0 %v904
      %914 = vmatmul.bf16.gmra.mxu0 %v901
      %v915 = vpop.f32.mrf.mxu0
      %v916 = vadd.f32 0.0, %v915
      %v917 = vpop.f32.mrf.mxu0
      %918 = vdwg.mxu0
      %v920 = vunpack.c.l.b16 %v844
      %v921 = vpack.c.b16 %v920, %v920
      %922 = vrot.lane.b32.xlu0 %v921, 64
      %v923 = vpop.permute.xlu0 %922
      %v925 = vsel %vm850, %v815, 0
      %v928 = vsel %vm854, %v923, 0
      %930 = vmatpush.bf16.msra.mxu0 0
      %931 = vmatpush.bf16.msra.mxu0 0
      %932 = vmatpush.bf16.msra.mxu0 0
      %933 = vmatpush.bf16.msra.mxu0 0
      %934 = vmatpush.bf16.msra.mxu0 0
      %935 = vmatpush.bf16.msra.mxu0 0
      %936 = vmatpush.bf16.msra.mxu0 0
      %937 = vmatpush.bf16.msra.mxu0 %v928
      %938 = vmatmul.bf16.gmra.mxu0 %v925
      %v939 = vpop.f32.mrf.mxu0
      %v940 = vadd.f32 0.0, %v939
      %v941 = vpop.f32.mrf.mxu0
      %942 = vdwg.mxu0
      %v947 = vrot.slane %v868, 2
      %v948 = vrot.slane %v868, 4
      %v949 = vrot.slane %v892, 2
      %v950 = vrot.slane %v892, 4
      %v951 = vrot.slane %v916, 2
      %v952 = vrot.slane %v916, 4
      %v953 = vrot.slane %v940, 2
      %v954 = vrot.slane %v940, 4
      %955 = vst [vmem:[#allocation1] ss:$4 sm:$0xff] %v868
      %s956 = scalar_lea.vmem [#allocation1], 1
      %957 = vst [vmem:[%s956] ss:$4 sm:$0xff] %v947
      %s958 = scalar_lea.vmem [#allocation1], 2
      %959 = vst [vmem:[%s958] ss:$4 sm:$0xff] %v948
      %s960 = scalar_lea.vmem [#allocation1], 3
      %961 = vst [vmem:[%s960] ss:$4 sm:$0xff] %v892
      %s962 = scalar_lea.vmem [#allocation1], 32
      %963 = vst [vmem:[%s962] ss:$4 sm:$0xff] %v949
      %s964 = scalar_lea.vmem [#allocation1], 33
      %965 = vst [vmem:[%s964] ss:$4 sm:$0xff] %v950
      %s966 = scalar_lea.vmem [#allocation1], 34
      %967 = vst [vmem:[%s966] ss:$4 sm:$0xff] %v916
      %s968 = scalar_lea.vmem [#allocation1], 35
      %969 = vst [vmem:[%s968] ss:$4 sm:$0xff] %v951
      %v970 = vld.sshfl [vmem:[#allocation1] sm:$0xff pattern:$0x73625140]
      %v971 = vld.sshfl [vmem:[#allocation1 + $0x20] sm:$0xff pattern:$0x73625140]
      %972 = vst [vmem:[#allocation1] ss:$4 sm:$0xff] %v952
      %973 = vst [vmem:[%s956] ss:$4 sm:$0xff] %v940
      %974 = vst [vmem:[%s958] ss:$4 sm:$0xff] %v953
      %975 = vst [vmem:[%s960] ss:$4 sm:$0xff] %v954
      %v976 = vld.sshfl [vmem:[#allocation1] sm:$0xff pattern:$0x73625140]
      %v980 = vpack.c.bf16 %v971, %v970
      %v981 = vpack.c.bf16 %v976, %v976
      %v982 = vld [vmem:[%s3] sm:$0xf]
      %v983 = vld [vmem:[%s3 + $0x4] sm:$0xf]
      %v984 = vld [vmem:[%s3 + $0x8] sm:$0xf]
      %v985 = vld [vmem:[%s3 + $0xc] sm:$0xf]
      %986 = vst [vmem:[#allocation1] ss:$4 sm:$0xff] %v585
      %s987 = scalar_lea.vmem [#allocation1], 1
      %988 = vst [vmem:[%s987] ss:$4 sm:$0xff] %v591
      %s989 = scalar_lea.vmem [#allocation1], 2
      %990 = vst [vmem:[%s989] ss:$4 sm:$0xff] %v592
      %v991 = vld.sshfl [vmem:[#allocation1] sm:$0xff pattern:$0x73625140]
      %s992 = scalar_lea.vmem [#allocation1], 32
      %993 = vst [vmem:[%s992] ss:$4 sm:$0xff] %v593
      %s994 = scalar_lea.vmem [#allocation1], 33
      %995 = vst [vmem:[%s994] ss:$4 sm:$0xff] %v586
      %s996 = scalar_lea.vmem [#allocation1], 34
      %997 = vst [vmem:[%s996] ss:$4 sm:$0xff] %v594
      %v998 = vld.sshfl [vmem:[#allocation1 + $0x20] sm:$0xff pattern:$0x73625140]
      %999 = vst [vmem:[#allocation1] ss:$4 sm:$0xff] %v595
      %1000 = vst [vmem:[%s987] ss:$4 sm:$0xff] %v596
      %1001 = vst [vmem:[%s989] ss:$4 sm:$0xff] %v587
      %v1002 = vld.sshfl [vmem:[#allocation1] sm:$0xff pattern:$0x73625140]
      %1003 = vst [vmem:[%s992] ss:$4 sm:$0xff] %v597
      %1004 = vst [vmem:[%s994] ss:$4 sm:$0xff] %v598
      %1005 = vst [vmem:[%s996] ss:$4 sm:$0xff] %v599
      %v1006 = vld.sshfl [vmem:[#allocation1 + $0x20] sm:$0xff pattern:$0x73625140]
      %v1011 = vpack.c.bf16 %v991, %v991
      %v1012 = vpack.c.bf16 %v998, %v998
      %v1013 = vpack.c.bf16 %v1002, %v1002
      %v1014 = vpack.c.bf16 %v1006, %v1006
      %1015 = vst [vmem:[#allocation1] ss:$4 sm:$0xff] %v577
      %s1016 = scalar_lea.vmem [#allocation1], 1
      %1017 = vst [vmem:[%s1016] ss:$4 sm:$0xff] %v603
      %s1018 = scalar_lea.vmem [#allocation1], 2
      %1019 = vst [vmem:[%s1018] ss:$4 sm:$0xff] %v604
      %v1020 = vld.sshfl [vmem:[#allocation1] sm:$0xff pattern:$0x73625140]
      %s1021 = scalar_lea.vmem [#allocation1], 32
      %1022 = vst [vmem:[%s1021] ss:$4 sm:$0xff] %v605
      %s1023 = scalar_lea.vmem [#allocation1], 33
      %1024 = vst [vmem:[%s1023] ss:$4 sm:$0xff] %v579
      %s1025 = scalar_lea.vmem [#allocation1], 34
      %1026 = vst [vmem:[%s1025] ss:$4 sm:$0xff] %v606
      %v1027 = vld.sshfl [vmem:[#allocation1 + $0x20] sm:$0xff pattern:$0x73625140]
      %1028 = vst [vmem:[#allocation1] ss:$4 sm:$0xff] %v607
      %1029 = vst [vmem:[%s1016] ss:$4 sm:$0xff] %v608
      %1030 = vst [vmem:[%s1018] ss:$4 sm:$0xff] %v582
      %v1031 = vld.sshfl [vmem:[#allocation1] sm:$0xff pattern:$0x73625140]
      %1032 = vst [vmem:[%s1021] ss:$4 sm:$0xff] %v609
      %1033 = vst [vmem:[%s1023] ss:$4 sm:$0xff] %v610
      %1034 = vst [vmem:[%s1025] ss:$4 sm:$0xff] %v611
      %v1035 = vld.sshfl [vmem:[#allocation1 + $0x20] sm:$0xff pattern:$0x73625140]
      %v1040 = vpack.c.bf16 %v1020, %v1020
      %v1041 = vpack.c.bf16 %v1027, %v1027
      %v1042 = vpack.c.bf16 %v1031, %v1031
      %v1043 = vpack.c.bf16 %v1035, %v1035
      %v1045 = vunpack.c.l.b16 %v1011
      %v1046 = vpack.c.b16 %v1045, %v1045
      %1047 = vrot.lane.b32.xlu0 %v1046, 120
      %v1048 = vpop.permute.xlu0 %1047
      %v1050 = vunpack.c.l.b16 %v1040
      %v1051 = vpack.c.b16 %v1050, %v1050
      %1052 = vrot.lane.b32.xlu0 %v1051, 88
      %v1053 = vpop.permute.xlu0 %1052
      %v1055 = vsel %vm675, %v1048, 0
      %v1058 = vsel %vm675, %v1053, 0
      %1060 = vmatpush.bf16.xpose.msra.mxu0 0
      %1061 = vmatpush.bf16.xpose.msra.mxu0 0
      %1062 = vmatpush.bf16.xpose.msra.mxu0 0
      %1063 = vmatpush.bf16.xpose.msra.mxu0 0
      %1064 = vmatpush.bf16.xpose.msra.mxu0 0
      %1065 = vmatpush.bf16.xpose.msra.mxu0 0
      %1066 = vmatpush.bf16.xpose.msra.mxu0 0
      %1067 = vmatpush.bf16.xpose.msra.mxu0 %v1058
      %1068 = vmatmul.bf16.gmra.mxu0 %v1055
      %v1069 = vpop.f32.mrf.mxu0
      %v1070 = vadd.f32 0.0, %v1069
      %v1071 = vpop.f32.mrf.mxu0
      %1072 = vdwg.mxu0
      %v1074 = vunpack.c.l.b16 %v1012
      %v1075 = vpack.c.b16 %v1074, %v1074
      %1076 = vrot.lane.b32.xlu0 %v1075, 120
      %v1077 = vpop.permute.xlu0 %1076
      %v1079 = vunpack.c.l.b16 %v1041
      %v1080 = vpack.c.b16 %v1079, %v1079
      %1081 = vrot.lane.b32.xlu0 %v1080, 88
      %v1082 = vpop.permute.xlu0 %1081
      %v1084 = vsel %vm675, %v1077, 0
      %v1087 = vsel %vm675, %v1082, 0
      %1089 = vmatpush.bf16.xpose.msra.mxu0 0
      %1090 = vmatpush.bf16.xpose.msra.mxu0 0
      %1091 = vmatpush.bf16.xpose.msra.mxu0 0
      %1092 = vmatpush.bf16.xpose.msra.mxu0 0
      %1093 = vmatpush.bf16.xpose.msra.mxu0 0
      %1094 = vmatpush.bf16.xpose.msra.mxu0 0
      %1095 = vmatpush.bf16.xpose.msra.mxu0 0
      %1096 = vmatpush.bf16.xpose.msra.mxu0 %v1087
      %1097 = vmatmul.bf16.gmra.mxu0 %v1084
      %v1098 = vpop.f32.mrf.mxu0
      %v1099 = vadd.f32 0.0, %v1098
      %v1100 = vpop.f32.mrf.mxu0
      %1101 = vdwg.mxu0
      %v1103 = vunpack.c.l.b16 %v1013
      %v1104 = vpack.c.b16 %v1103, %v1103
      %1105 = vrot.lane.b32.xlu0 %v1104, 120
      %v1106 = vpop.permute.xlu0 %1105
      %v1108 = vunpack.c.l.b16 %v1042
      %v1109 = vpack.c.b16 %v1108, %v1108
      %1110 = vrot.lane.b32.xlu0 %v1109, 88
      %v1111 = vpop.permute.xlu0 %1110
      %v1113 = vsel %vm675, %v1106, 0
      %v1116 = vsel %vm675, %v1111, 0
      %1118 = vmatpush.bf16.xpose.msra.mxu0 0
      %1119 = vmatpush.bf16.xpose.msra.mxu0 0
      %1120 = vmatpush.bf16.xpose.msra.mxu0 0
      %1121 = vmatpush.bf16.xpose.msra.mxu0 0
      %1122 = vmatpush.bf16.xpose.msra.mxu0 0
      %1123 = vmatpush.bf16.xpose.msra.mxu0 0
      %1124 = vmatpush.bf16.xpose.msra.mxu0 0
      %1125 = vmatpush.bf16.xpose.msra.mxu0 %v1116
      %1126 = vmatmul.bf16.gmra.mxu0 %v1113
      %v1127 = vpop.f32.mrf.mxu0
      %v1128 = vadd.f32 0.0, %v1127
      %v1129 = vpop.f32.mrf.mxu0
      %1130 = vdwg.mxu0
      %v1132 = vunpack.c.l.b16 %v1014
      %v1133 = vpack.c.b16 %v1132, %v1132
      %1134 = vrot.lane.b32.xlu0 %v1133, 120
      %v1135 = vpop.permute.xlu0 %1134
      %v1137 = vunpack.c.l.b16 %v1043
      %v1138 = vpack.c.b16 %v1137, %v1137
      %1139 = vrot.lane.b32.xlu0 %v1138, 88
      %v1140 = vpop.permute.xlu0 %1139
      %v1142 = vsel %vm675, %v1135, 0
      %v1145 = vsel %vm675, %v1140, 0
      %1147 = vmatpush.bf16.xpose.msra.mxu0 0
      %1148 = vmatpush.bf16.xpose.msra.mxu0 0
      %1149 = vmatpush.bf16.xpose.msra.mxu0 0
      %1150 = vmatpush.bf16.xpose.msra.mxu0 0
      %1151 = vmatpush.bf16.xpose.msra.mxu0 0
      %1152 = vmatpush.bf16.xpose.msra.mxu0 0
      %1153 = vmatpush.bf16.xpose.msra.mxu0 0
      %1154 = vmatpush.bf16.xpose.msra.mxu0 %v1145
      %1155 = vmatmul.bf16.gmra.mxu0 %v1142
      %v1156 = vpop.f32.mrf.mxu0
      %v1157 = vadd.f32 0.0, %v1156
      %v1158 = vpop.f32.mrf.mxu0
      %1159 = vdwg.mxu0
      %v1160 = vsel %vm767, %v1070, -inf
      %1161 = vmax.xlane.f32.xlu0 %v1160
      %v1162 = vpop.xlane.xlu0 %1161
      %v1163 = vsel %vm767, %v1099, -inf
      %1164 = vmax.xlane.f32.xlu0 %v1163
      %v1165 = vpop.xlane.xlu0 %1164
      %v1166 = vsel %vm767, %v1128, -inf
      %1167 = vmax.xlane.f32.xlu0 %v1166
      %v1168 = vpop.xlane.xlu0 %1167
      %v1169 = vsel %vm767, %v1157, -inf
      %1170 = vmax.xlane.f32.xlu0 %v1169
      %v1171 = vpop.xlane.xlu0 %1170
      %v1172 = vsub.f32 %v1070, %v1162
      %v1173 = vsub.f32 %v1099, %v1165
      %v1174 = vsub.f32 %v1128, %v1168
      %v1175 = vsub.f32 %v1157, %v1171
      %v1176 = vmul.f32 %v1172, 1.442695
      %v1177 = vpow.pop %v1176
      %v1178 = vmul.f32 %v1173, 1.442695
      %v1179 = vpow.pop %v1178
      %v1180 = vmul.f32 %v1174, 1.442695
      %v1181 = vpow.pop %v1180
      %v1182 = vmul.f32 %v1175, 1.442695
      %v1183 = vpow.pop %v1182
      %v1184 = vsel %vm767, %v1177, 0.0
      %1185 = vadd.xlane.f32.xlu0 %v1184
      %v1186 = vpop.xlane.xlu0 %1185
      %v1187 = vsel %vm767, %v1179, 0.0
      %1188 = vadd.xlane.f32.xlu0 %v1187
      %v1189 = vpop.xlane.xlu0 %1188
      %v1190 = vsel %vm767, %v1181, 0.0
      %1191 = vadd.xlane.f32.xlu0 %v1190
      %v1192 = vpop.xlane.xlu0 %1191
      %v1193 = vsel %vm767, %v1183, 0.0
      %1194 = vadd.xlane.f32.xlu0 %v1193
      %v1195 = vpop.xlane.xlu0 %1194
      %v1196 = vrcp.pop %v1186
      %v1197 = vrcp.pop %v1189
      %v1198 = vrcp.pop %v1192
      %v1199 = vrcp.pop %v1195
      %v1200 = vmul.f32 %v1177, %v1196
      %v1201 = vmul.f32 %v1179, %v1197
      %v1202 = vmul.f32 %v1181, %v1198
      %v1203 = vmul.f32 %v1183, %v1199
      %v1204 = vpack.c.bf16 %v1200, %v1200
      %v1205 = vpack.c.bf16 %v1201, %v1201
      %v1206 = vpack.c.bf16 %v1202, %v1202
      %v1207 = vpack.c.bf16 %v1203, %v1203
      %1208 = vst [vmem:[#allocation1] ss:$4 sm:$0xff] %v577
      %s1209 = scalar_lea.vmem [#allocation1], 1
      %1210 = vst [vmem:[%s1209] ss:$4 sm:$0xff] %v603
      %s1211 = scalar_lea.vmem [#allocation1], 2
      %1212 = vst [vmem:[%s1211] ss:$4 sm:$0xff] %v604
      %v1213 = vld.sshfl [vmem:[#allocation1] sm:$0xff pattern:$0x73625140]
      %s1214 = scalar_lea.vmem [#allocation1], 32
      %1215 = vst [vmem:[%s1214] ss:$4 sm:$0xff] %v605
      %s1216 = scalar_lea.vmem [#allocation1], 33
      %1217 = vst [vmem:[%s1216] ss:$4 sm:$0xff] %v579
      %s1218 = scalar_lea.vmem [#allocation1], 34
      %1219 = vst [vmem:[%s1218] ss:$4 sm:$0xff] %v606
      %v1220 = vld.sshfl [vmem:[#allocation1 + $0x20] sm:$0xff pattern:$0x73625140]
      %1221 = vst [vmem:[#allocation1] ss:$4 sm:$0xff] %v607
      %1222 = vst [vmem:[%s1209] ss:$4 sm:$0xff] %v608
      %1223 = vst [vmem:[%s1211] ss:$4 sm:$0xff] %v582
      %v1224 = vld.sshfl [vmem:[#allocation1] sm:$0xff pattern:$0x73625140]
      %1225 = vst [vmem:[%s1214] ss:$4 sm:$0xff] %v609
      %1226 = vst [vmem:[%s1216] ss:$4 sm:$0xff] %v610
      %1227 = vst [vmem:[%s1218] ss:$4 sm:$0xff] %v611
      %v1228 = vld.sshfl [vmem:[#allocation1 + $0x20] sm:$0xff pattern:$0x73625140]
      %v1233 = vpack.c.bf16 %v1213, %v1213
      %v1234 = vpack.c.bf16 %v1220, %v1220
      %v1235 = vpack.c.bf16 %v1224, %v1224
      %v1236 = vpack.c.bf16 %v1228, %v1228
      %v1238 = vunpack.c.l.b16 %v1233
      %v1239 = vpack.c.b16 %v1238, %v1238
      %1240 = vrot.lane.b32.xlu0 %v1239, 56
      %v1241 = vpop.permute.xlu0 %1240
      %v1243 = vsel %vm850, %v1204, 0
      %v1246 = vsel %vm854, %v1241, 0
      %1248 = vmatpush.bf16.msra.mxu0 0
      %1249 = vmatpush.bf16.msra.mxu0 0
      %1250 = vmatpush.bf16.msra.mxu0 0
      %1251 = vmatpush.bf16.msra.mxu0 0
      %1252 = vmatpush.bf16.msra.mxu0 0
      %1253 = vmatpush.bf16.msra.mxu0 0
      %1254 = vmatpush.bf16.msra.mxu0 0
      %1255 = vmatpush.bf16.msra.mxu0 %v1246
      %1256 = vmatmul.bf16.gmra.mxu0 %v1243
      %v1257 = vpop.f32.mrf.mxu0
      %v1258 = vadd.f32 0.0, %v1257
      %v1259 = vpop.f32.mrf.mxu0
      %1260 = vdwg.mxu0
      %v1262 = vunpack.c.l.b16 %v1234
      %v1263 = vpack.c.b16 %v1262, %v1262
      %1264 = vrot.lane.b32.xlu0 %v1263, 56
      %v1265 = vpop.permute.xlu0 %1264
      %v1267 = vsel %vm850, %v1205, 0
      %v1270 = vsel %vm854, %v1265, 0
      %1272 = vmatpush.bf16.msra.mxu0 0
      %1273 = vmatpush.bf16.msra.mxu0 0
      %1274 = vmatpush.bf16.msra.mxu0 0
      %1275 = vmatpush.bf16.msra.mxu0 0
      %1276 = vmatpush.bf16.msra.mxu0 0
      %1277 = vmatpush.bf16.msra.mxu0 0
      %1278 = vmatpush.bf16.msra.mxu0 0
      %1279 = vmatpush.bf16.msra.mxu0 %v1270
      %1280 = vmatmul.bf16.gmra.mxu0 %v1267
      %v1281 = vpop.f32.mrf.mxu0
      %v1282 = vadd.f32 0.0, %v1281
      %v1283 = vpop.f32.mrf.mxu0
      %1284 = vdwg.mxu0
      %v1286 = vunpack.c.l.b16 %v1235
      %v1287 = vpack.c.b16 %v1286, %v1286
      %1288 = vrot.lane.b32.xlu0 %v1287, 56
      %v1289 = vpop.permute.xlu0 %1288
      %v1291 = vsel %vm850, %v1206, 0
      %v1294 = vsel %vm854, %v1289, 0
      %1296 = vmatpush.bf16.msra.mxu0 0
      %1297 = vmatpush.bf16.msra.mxu0 0
      %1298 = vmatpush.bf16.msra.mxu0 0
      %1299 = vmatpush.bf16.msra.mxu0 0
      %1300 = vmatpush.bf16.msra.mxu0 0
      %1301 = vmatpush.bf16.msra.mxu0 0
      %1302 = vmatpush.bf16.msra.mxu0 0
      %1303 = vmatpush.bf16.msra.mxu0 %v1294
      %1304 = vmatmul.bf16.gmra.mxu0 %v1291
      %v1305 = vpop.f32.mrf.mxu0
      %v1306 = vadd.f32 0.0, %v1305
      %v1307 = vpop.f32.mrf.mxu0
      %1308 = vdwg.mxu0
      %v1310 = vunpack.c.l.b16 %v1236
      %v1311 = vpack.c.b16 %v1310, %v1310
      %1312 = vrot.lane.b32.xlu0 %v1311, 56
      %v1313 = vpop.permute.xlu0 %1312
      %v1315 = vsel %vm850, %v1207, 0
      %v1318 = vsel %vm854, %v1313, 0
      %1320 = vmatpush.bf16.msra.mxu0 0
      %1321 = vmatpush.bf16.msra.mxu0 0
      %1322 = vmatpush.bf16.msra.mxu0 0
      %1323 = vmatpush.bf16.msra.mxu0 0
      %1324 = vmatpush.bf16.msra.mxu0 0
      %1325 = vmatpush.bf16.msra.mxu0 0
      %1326 = vmatpush.bf16.msra.mxu0 0
      %1327 = vmatpush.bf16.msra.mxu0 %v1318
      %1328 = vmatmul.bf16.gmra.mxu0 %v1315
      %v1329 = vpop.f32.mrf.mxu0
      %v1330 = vadd.f32 0.0, %v1329
      %v1331 = vpop.f32.mrf.mxu0
      %1332 = vdwg.mxu0
      %v1337 = vrot.slane %v1258, 2
      %v1338 = vrot.slane %v1258, 4
      %v1339 = vrot.slane %v1282, 2
      %v1340 = vrot.slane %v1282, 4
      %v1341 = vrot.slane %v1306, 2
      %v1342 = vrot.slane %v1306, 4
      %v1343 = vrot.slane %v1330, 2
      %v1344 = vrot.slane %v1330, 4
      %1345 = vst [vmem:[#allocation1] ss:$4 sm:$0xff] %v1258
      %s1346 = scalar_lea.vmem [#allocation1], 1
      %1347 = vst [vmem:[%s1346] ss:$4 sm:$0xff] %v1337
      %s1348 = scalar_lea.vmem [#allocation1], 2
      %1349 = vst [vmem:[%s1348] ss:$4 sm:$0xff] %v1338
      %s1350 = scalar_lea.vmem [#allocation1], 3
      %1351 = vst [vmem:[%s1350] ss:$4 sm:$0xff] %v1282
      %s1352 = scalar_lea.vmem [#allocation1], 32
      %1353 = vst [vmem:[%s1352] ss:$4 sm:$0xff] %v1339
      %s1354 = scalar_lea.vmem [#allocation1], 33
      %1355 = vst [vmem:[%s1354] ss:$4 sm:$0xff] %v1340
      %s1356 = scalar_lea.vmem [#allocation1], 34
      %1357 = vst [vmem:[%s1356] ss:$4 sm:$0xff] %v1306
      %s1358 = scalar_lea.vmem [#allocation1], 35
      %1359 = vst [vmem:[%s1358] ss:$4 sm:$0xff] %v1341
      %v1360 = vld.sshfl [vmem:[#allocation1] sm:$0xff pattern:$0x73625140]
      %v1361 = vld.sshfl [vmem:[#allocation1 + $0x20] sm:$0xff pattern:$0x73625140]
      %1362 = vst [vmem:[#allocation1] ss:$4 sm:$0xff] %v1342
      %1363 = vst [vmem:[%s1346] ss:$4 sm:$0xff] %v1330
      %1364 = vst [vmem:[%s1348] ss:$4 sm:$0xff] %v1343
      %1365 = vst [vmem:[%s1350] ss:$4 sm:$0xff] %v1344
      %v1366 = vld.sshfl [vmem:[#allocation1] sm:$0xff pattern:$0x73625140]
      %v1370 = vpack.c.bf16 %v1361, %v1360
      %v1371 = vpack.c.bf16 %v1366, %v1366
      %s1372 = scalar_lea.vmem %s3, 16
      %v1373 = vld [vmem:[%s1372] sm:$0xf]
      %v1374 = vld [vmem:[%s1372 + $0x4] sm:$0xf]
      %v1375 = vld [vmem:[%s1372 + $0x8] sm:$0xf]
      %v1376 = vld [vmem:[%s1372 + $0xc] sm:$0xf]
      %v1381 = vunpack.c.l.b16 %v1373
      %v1382 = vunpack.c.l.b16 %v1374
      %v1383 = vunpack.c.l.b16 %v1375
      %v1384 = vunpack.c.l.b16 %v1376
      %v1385 = vpack.c.b16 %v1382, %v1381
      %v1386 = vpack.c.b16 %v1384, %v1383
      %v1388 = vsel %vm675, %v1370, 0
      %v1391 = vsel %vm675, %v1371, 0
      %v1394 = vsel %vm675, %v1385, 0
      %v1397 = vsel %vm675, %v1386, 0
      %1399 = vmatpush.bf16.xpose.msra.mxu0 0
      %1400 = vmatpush.bf16.xpose.msra.mxu0 0
      %1401 = vmatpush.bf16.xpose.msra.mxu0 0
      %1402 = vmatpush.bf16.xpose.msra.mxu0 0
      %1403 = vmatpush.bf16.xpose.msra.mxu0 0
      %1404 = vmatpush.bf16.xpose.msra.mxu0 0
      %1405 = vmatpush.bf16.xpose.msra.mxu0 %v1397
      %1406 = vmatpush.bf16.xpose.msra.mxu0 %v1394
      %1407 = vmatmul.bf16.gmra.mxu0 %v1388
      %v1408 = vpop.f32.mrf.mxu0
      %v1409 = vadd.f32 0.0, %v1408
      %v1410 = vpop.f32.mrf.mxu0
      %v1411 = vadd.f32 0.0, %v1410
      %1412 = vmatmul.bf16.gmra.mxu0 %v1391
      %v1413 = vpop.f32.mrf.mxu0
      %v1414 = vadd.f32 0.0, %v1413
      %v1415 = vpop.f32.mrf.mxu0
      %1416 = vdwg.mxu0
      %v1421 = vunpack.c.l.b16 %v982
      %v1422 = vunpack.c.l.b16 %v983
      %v1423 = vunpack.c.l.b16 %v984
      %v1424 = vunpack.c.l.b16 %v985
      %v1425 = vpack.c.b16 %v1422, %v1421
      %v1426 = vpack.c.b16 %v1424, %v1423
      %v1428 = vsel %vm675, %v980, 0
      %v1431 = vsel %vm675, %v981, 0
      %v1434 = vsel %vm675, %v1425, 0
      %v1437 = vsel %vm675, %v1426, 0
      %1439 = vmatpush.bf16.xpose.msra.mxu0 0
      %1440 = vmatpush.bf16.xpose.msra.mxu0 0
      %1441 = vmatpush.bf16.xpose.msra.mxu0 0
      %1442 = vmatpush.bf16.xpose.msra.mxu0 0
      %1443 = vmatpush.bf16.xpose.msra.mxu0 0
      %1444 = vmatpush.bf16.xpose.msra.mxu0 0
      %1445 = vmatpush.bf16.xpose.msra.mxu0 %v1437
      %1446 = vmatpush.bf16.xpose.msra.mxu0 %v1434
      %1447 = vmatmul.bf16.gmra.mxu0 %v1428
      %v1448 = vpop.f32.mrf.mxu0
      %v1449 = vadd.f32 %v1409, %v1448
      %v1450 = vpop.f32.mrf.mxu0
      %v1451 = vadd.f32 %v1411, %v1450
      %1452 = vmatmul.bf16.gmra.mxu0 %v1431
      %v1453 = vpop.f32.mrf.mxu0
      %v1454 = vadd.f32 %v1414, %v1453
      %v1455 = vpop.f32.mrf.mxu0
      %1456 = vdwg.mxu0
      %1457 = vst [vmem:[#allocation1] ss:$4 sm:$0xff] %v585
      %s1458 = scalar_lea.vmem [#allocation1], 1
      %1459 = vst [vmem:[%s1458] ss:$4 sm:$0xff] %v591
      %s1460 = scalar_lea.vmem [#allocation1], 2
      %1461 = vst [vmem:[%s1460] ss:$4 sm:$0xff] %v592
      %v1462 = vld.sshfl [vmem:[#allocation1] sm:$0xff pattern:$0x73625140]
      %s1463 = scalar_lea.vmem [#allocation1], 32
      %1464 = vst [vmem:[%s1463] ss:$4 sm:$0xff] %v593
      %s1465 = scalar_lea.vmem [#allocation1], 33
      %1466 = vst [vmem:[%s1465] ss:$4 sm:$0xff] %v586
      %s1467 = scalar_lea.vmem [#allocation1], 34
      %1468 = vst [vmem:[%s1467] ss:$4 sm:$0xff] %v594
      %v1469 = vld.sshfl [vmem:[#allocation1 + $0x20] sm:$0xff pattern:$0x73625140]
      %1470 = vst [vmem:[#allocation1] ss:$4 sm:$0xff] %v595
      %1471 = vst [vmem:[%s1458] ss:$4 sm:$0xff] %v596
      %1472 = vst [vmem:[%s1460] ss:$4 sm:$0xff] %v587
      %v1473 = vld.sshfl [vmem:[#allocation1] sm:$0xff pattern:$0x73625140]
      %1474 = vst [vmem:[%s1463] ss:$4 sm:$0xff] %v597
      %1475 = vst [vmem:[%s1465] ss:$4 sm:$0xff] %v598
      %1476 = vst [vmem:[%s1467] ss:$4 sm:$0xff] %v599
      %v1477 = vld.sshfl [vmem:[#allocation1 + $0x20] sm:$0xff pattern:$0x73625140]
      %v1482 = vpack.c.bf16 %v1462, %v1462
      %v1483 = vpack.c.bf16 %v1469, %v1469
      %v1484 = vpack.c.bf16 %v1473, %v1473
      %v1485 = vpack.c.bf16 %v1477, %v1477
      %1486 = vst [vmem:[#allocation1] ss:$4 sm:$0xff] %v577
      %s1487 = scalar_lea.vmem [#allocation1], 1
      %1488 = vst [vmem:[%s1487] ss:$4 sm:$0xff] %v603
      %s1489 = scalar_lea.vmem [#allocation1], 2
      %1490 = vst [vmem:[%s1489] ss:$4 sm:$0xff] %v604
      %v1491 = vld.sshfl [vmem:[#allocation1] sm:$0xff pattern:$0x73625140]
      %s1492 = scalar_lea.vmem [#allocation1], 32
      %1493 = vst [vmem:[%s1492] ss:$4 sm:$0xff] %v605
      %s1494 = scalar_lea.vmem [#allocation1], 33
      %1495 = vst [vmem:[%s1494] ss:$4 sm:$0xff] %v579
      %s1496 = scalar_lea.vmem [#allocation1], 34
      %1497 = vst [vmem:[%s1496] ss:$4 sm:$0xff] %v606
      %v1498 = vld.sshfl [vmem:[#allocation1 + $0x20] sm:$0xff pattern:$0x73625140]
      %1499 = vst [vmem:[#allocation1] ss:$4 sm:$0xff] %v607
      %1500 = vst [vmem:[%s1487] ss:$4 sm:$0xff] %v608
      %1501 = vst [vmem:[%s1489] ss:$4 sm:$0xff] %v582
      %v1502 = vld.sshfl [vmem:[#allocation1] sm:$0xff pattern:$0x73625140]
      %1503 = vst [vmem:[%s1492] ss:$4 sm:$0xff] %v609
      %1504 = vst [vmem:[%s1494] ss:$4 sm:$0xff] %v610
      %1505 = vst [vmem:[%s1496] ss:$4 sm:$0xff] %v611
      %v1506 = vld.sshfl [vmem:[#allocation1 + $0x20] sm:$0xff pattern:$0x73625140]
      %v1511 = vpack.c.bf16 %v1491, %v1491
      %v1512 = vpack.c.bf16 %v1498, %v1498
      %v1513 = vpack.c.bf16 %v1502, %v1502
      %v1514 = vpack.c.bf16 %v1506, %v1506
      %v1516 = vunpack.c.l.b16 %v1482
      %v1517 = vpack.c.b16 %v1516, %v1516
      %1518 = vrot.lane.b32.xlu0 %v1517, 112
      %v1519 = vpop.permute.xlu0 %1518
      %v1521 = vunpack.c.l.b16 %v1511
      %v1522 = vpack.c.b16 %v1521, %v1521
      %1523 = vrot.lane.b32.xlu0 %v1522, 80
      %v1524 = vpop.permute.xlu0 %1523
      %v1526 = vsel %vm675, %v1519, 0
      %v1529 = vsel %vm675, %v1524, 0
      %1531 = vmatpush.bf16.xpose.msra.mxu0 0
      %1532 = vmatpush.bf16.xpose.msra.mxu0 0
      %1533 = vmatpush.bf16.xpose.msra.mxu0 0
      %1534 = vmatpush.bf16.xpose.msra.mxu0 0
      %1535 = vmatpush.bf16.xpose.msra.mxu0 0
      %1536 = vmatpush.bf16.xpose.msra.mxu0 0
      %1537 = vmatpush.bf16.xpose.msra.mxu0 0
      %1538 = vmatpush.bf16.xpose.msra.mxu0 %v1529
      %1539 = vmatmul.bf16.gmra.mxu0 %v1526
      %v1540 = vpop.f32.mrf.mxu0
      %v1541 = vadd.f32 0.0, %v1540
      %v1542 = vpop.f32.mrf.mxu0
      %1543 = vdwg.mxu0
      %v1545 = vunpack.c.l.b16 %v1483
      %v1546 = vpack.c.b16 %v1545, %v1545
      %1547 = vrot.lane.b32.xlu0 %v1546, 112
      %v1548 = vpop.permute.xlu0 %1547
      %v1550 = vunpack.c.l.b16 %v1512
      %v1551 = vpack.c.b16 %v1550, %v1550
      %1552 = vrot.lane.b32.xlu0 %v1551, 80
      %v1553 = vpop.permute.xlu0 %1552
      %v1555 = vsel %vm675, %v1548, 0
      %v1558 = vsel %vm675, %v1553, 0
      %1560 = vmatpush.bf16.xpose.msra.mxu0 0
      %1561 = vmatpush.bf16.xpose.msra.mxu0 0
      %1562 = vmatpush.bf16.xpose.msra.mxu0 0
      %1563 = vmatpush.bf16.xpose.msra.mxu0 0
      %1564 = vmatpush.bf16.xpose.msra.mxu0 0
      %1565 = vmatpush.bf16.xpose.msra.mxu0 0
      %1566 = vmatpush.bf16.xpose.msra.mxu0 0
      %1567 = vmatpush.bf16.xpose.msra.mxu0 %v1558
      %1568 = vmatmul.bf16.gmra.mxu0 %v1555
      %v1569 = vpop.f32.mrf.mxu0
      %v1570 = vadd.f32 0.0, %v1569
      %v1571 = vpop.f32.mrf.mxu0
      %1572 = vdwg.mxu0
      %v1574 = vunpack.c.l.b16 %v1484
      %v1575 = vpack.c.b16 %v1574, %v1574
      %1576 = vrot.lane.b32.xlu0 %v1575, 112
      %v1577 = vpop.permute.xlu0 %1576
      %v1579 = vunpack.c.l.b16 %v1513
      %v1580 = vpack.c.b16 %v1579, %v1579
      %1581 = vrot.lane.b32.xlu0 %v1580, 80
      %v1582 = vpop.permute.xlu0 %1581
      %v1584 = vsel %vm675, %v1577, 0
      %v1587 = vsel %vm675, %v1582, 0
      %1589 = vmatpush.bf16.xpose.msra.mxu0 0
      %1590 = vmatpush.bf16.xpose.msra.mxu0 0
      %1591 = vmatpush.bf16.xpose.msra.mxu0 0
      %1592 = vmatpush.bf16.xpose.msra.mxu0 0
      %1593 = vmatpush.bf16.xpose.msra.mxu0 0
      %1594 = vmatpush.bf16.xpose.msra.mxu0 0
      %1595 = vmatpush.bf16.xpose.msra.mxu0 0
      %1596 = vmatpush.bf16.xpose.msra.mxu0 %v1587
      %1597 = vmatmul.bf16.gmra.mxu0 %v1584
      %v1598 = vpop.f32.mrf.mxu0
      %v1599 = vadd.f32 0.0, %v1598
      %v1600 = vpop.f32.mrf.mxu0
      %1601 = vdwg.mxu0
      %v1603 = vunpack.c.l.b16 %v1485
      %v1604 = vpack.c.b16 %v1603, %v1603
      %1605 = vrot.lane.b32.xlu0 %v1604, 112
      %v1606 = vpop.permute.xlu0 %1605
      %v1608 = vunpack.c.l.b16 %v1514
      %v1609 = vpack.c.b16 %v1608, %v1608
      %1610 = vrot.lane.b32.xlu0 %v1609, 80
      %v1611 = vpop.permute.xlu0 %1610
      %v1613 = vsel %vm675, %v1606, 0
      %v1616 = vsel %vm675, %v1611, 0
      %1618 = vmatpush.bf16.xpose.msra.mxu0 0
      %1619 = vmatpush.bf16.xpose.msra.mxu0 0
      %1620 = vmatpush.bf16.xpose.msra.mxu0 0
      %1621 = vmatpush.bf16.xpose.msra.mxu0 0
      %1622 = vmatpush.bf16.xpose.msra.mxu0 0
      %1623 = vmatpush.bf16.xpose.msra.mxu0 0
      %1624 = vmatpush.bf16.xpose.msra.mxu0 0
      %1625 = vmatpush.bf16.xpose.msra.mxu0 %v1616
      %1626 = vmatmul.bf16.gmra.mxu0 %v1613
      %v1627 = vpop.f32.mrf.mxu0
      %v1628 = vadd.f32 0.0, %v1627
      %v1629 = vpop.f32.mrf.mxu0
      %1630 = vdwg.mxu0
      %v1631 = vsel %vm767, %v1541, -inf
      %1632 = vmax.xlane.f32.xlu0 %v1631
      %v1633 = vpop.xlane.xlu0 %1632
      %v1634 = vsel %vm767, %v1570, -inf
      %1635 = vmax.xlane.f32.xlu0 %v1634
      %v1636 = vpop.xlane.xlu0 %1635
      %v1637 = vsel %vm767, %v1599, -inf
      %1638 = vmax.xlane.f32.xlu0 %v1637
      %v1639 = vpop.xlane.xlu0 %1638
      %v1640 = vsel %vm767, %v1628, -inf
      %1641 = vmax.xlane.f32.xlu0 %v1640
      %v1642 = vpop.xlane.xlu0 %1641
      %v1643 = vsub.f32 %v1541, %v1633
      %v1644 = vsub.f32 %v1570, %v1636
      %v1645 = vsub.f32 %v1599, %v1639
      %v1646 = vsub.f32 %v1628, %v1642
      %v1647 = vmul.f32 %v1643, 1.442695
      %v1648 = vpow.pop %v1647
      %v1649 = vmul.f32 %v1644, 1.442695
      %v1650 = vpow.pop %v1649
      %v1651 = vmul.f32 %v1645, 1.442695
      %v1652 = vpow.pop %v1651
      %v1653 = vmul.f32 %v1646, 1.442695
      %v1654 = vpow.pop %v1653
      %v1655 = vsel %vm767, %v1648, 0.0
      %1656 = vadd.xlane.f32.xlu0 %v1655
      %v1657 = vpop.xlane.xlu0 %1656
      %v1658 = vsel %vm767, %v1650, 0.0
      %1659 = vadd.xlane.f32.xlu0 %v1658
      %v1660 = vpop.xlane.xlu0 %1659
      %v1661 = vsel %vm767, %v1652, 0.0
      %1662 = vadd.xlane.f32.xlu0 %v1661
      %v1663 = vpop.xlane.xlu0 %1662
      %v1664 = vsel %vm767, %v1654, 0.0
      %1665 = vadd.xlane.f32.xlu0 %v1664
      %v1666 = vpop.xlane.xlu0 %1665
      %v1667 = vrcp.pop %v1657
      %v1668 = vrcp.pop %v1660
      %v1669 = vrcp.pop %v1663
      %v1670 = vrcp.pop %v1666
      %v1671 = vmul.f32 %v1648, %v1667
      %v1672 = vmul.f32 %v1650, %v1668
      %v1673 = vmul.f32 %v1652, %v1669
      %v1674 = vmul.f32 %v1654, %v1670
      %v1675 = vpack.c.bf16 %v1671, %v1671
      %v1676 = vpack.c.bf16 %v1672, %v1672
      %v1677 = vpack.c.bf16 %v1673, %v1673
      %v1678 = vpack.c.bf16 %v1674, %v1674
      %1679 = vst [vmem:[#allocation1] ss:$4 sm:$0xff] %v577
      %s1680 = scalar_lea.vmem [#allocation1], 1
      %1681 = vst [vmem:[%s1680] ss:$4 sm:$0xff] %v603
      %s1682 = scalar_lea.vmem [#allocation1], 2
      %1683 = vst [vmem:[%s1682] ss:$4 sm:$0xff] %v604
      %v1684 = vld.sshfl [vmem:[#allocation1] sm:$0xff pattern:$0x73625140]
      %s1685 = scalar_lea.vmem [#allocation1], 32
      %1686 = vst [vmem:[%s1685] ss:$4 sm:$0xff] %v605
      %s1687 = scalar_lea.vmem [#allocation1], 33
      %1688 = vst [vmem:[%s1687] ss:$4 sm:$0xff] %v579
      %s1689 = scalar_lea.vmem [#allocation1], 34
      %1690 = vst [vmem:[%s1689] ss:$4 sm:$0xff] %v606
      %v1691 = vld.sshfl [vmem:[#allocation1 + $0x20] sm:$0xff pattern:$0x73625140]
      %1692 = vst [vmem:[#allocation1] ss:$4 sm:$0xff] %v607
      %1693 = vst [vmem:[%s1680] ss:$4 sm:$0xff] %v608
      %1694 = vst [vmem:[%s1682] ss:$4 sm:$0xff] %v582
      %v1695 = vld.sshfl [vmem:[#allocation1] sm:$0xff pattern:$0x73625140]
      %1696 = vst [vmem:[%s1685] ss:$4 sm:$0xff] %v609
      %1697 = vst [vmem:[%s1687] ss:$4 sm:$0xff] %v610
      %1698 = vst [vmem:[%s1689] ss:$4 sm:$0xff] %v611
      %v1699 = vld.sshfl [vmem:[#allocation1 + $0x20] sm:$0xff pattern:$0x73625140]
      %v1704 = vpack.c.bf16 %v1684, %v1684
      %v1705 = vpack.c.bf16 %v1691, %v1691
      %v1706 = vpack.c.bf16 %v1695, %v1695
      %v1707 = vpack.c.bf16 %v1699, %v1699
      %v1709 = vunpack.c.l.b16 %v1704
      %v1710 = vpack.c.b16 %v1709, %v1709
      %1711 = vrot.lane.b32.xlu0 %v1710, 48
      %v1712 = vpop.permute.xlu0 %1711
      %v1714 = vsel %vm850, %v1675, 0
      %v1717 = vsel %vm854, %v1712, 0
      %1719 = vmatpush.bf16.msra.mxu0 0
      %1720 = vmatpush.bf16.msra.mxu0 0
      %1721 = vmatpush.bf16.msra.mxu0 0
      %1722 = vmatpush.bf16.msra.mxu0 0
      %1723 = vmatpush.bf16.msra.mxu0 0
      %1724 = vmatpush.bf16.msra.mxu0 0
      %1725 = vmatpush.bf16.msra.mxu0 0
      %1726 = vmatpush.bf16.msra.mxu0 %v1717
      %1727 = vmatmul.bf16.gmra.mxu0 %v1714
      %v1728 = vpop.f32.mrf.mxu0
      %v1729 = vadd.f32 0.0, %v1728
      %v1730 = vpop.f32.mrf.mxu0
      %1731 = vdwg.mxu0
      %v1733 = vunpack.c.l.b16 %v1705
      %v1734 = vpack.c.b16 %v1733, %v1733
      %1735 = vrot.lane.b32.xlu0 %v1734, 48
      %v1736 = vpop.permute.xlu0 %1735
      %v1738 = vsel %vm850, %v1676, 0
      %v1741 = vsel %vm854, %v1736, 0
      %1743 = vmatpush.bf16.msra.mxu0 0
      %1744 = vmatpush.bf16.msra.mxu0 0
      %1745 = vmatpush.bf16.msra.mxu0 0
      %1746 = vmatpush.bf16.msra.mxu0 0
      %1747 = vmatpush.bf16.msra.mxu0 0
      %1748 = vmatpush.bf16.msra.mxu0 0
      %1749 = vmatpush.bf16.msra.mxu0 0
      %1750 = vmatpush.bf16.msra.mxu0 %v1741
      %1751 = vmatmul.bf16.gmra.mxu0 %v1738
      %v1752 = vpop.f32.mrf.mxu0
      %v1753 = vadd.f32 0.0, %v1752
      %v1754 = vpop.f32.mrf.mxu0
      %1755 = vdwg.mxu0
      %v1757 = vunpack.c.l.b16 %v1706
      %v1758 = vpack.c.b16 %v1757, %v1757
      %1759 = vrot.lane.b32.xlu0 %v1758, 48
      %v1760 = vpop.permute.xlu0 %1759
      %v1762 = vsel %vm850, %v1677, 0
      %v1765 = vsel %vm854, %v1760, 0
      %1767 = vmatpush.bf16.msra.mxu0 0
      %1768 = vmatpush.bf16.msra.mxu0 0
      %1769 = vmatpush.bf16.msra.mxu0 0
      %1770 = vmatpush.bf16.msra.mxu0 0
      %1771 = vmatpush.bf16.msra.mxu0 0
      %1772 = vmatpush.bf16.msra.mxu0 0
      %1773 = vmatpush.bf16.msra.mxu0 0
      %1774 = vmatpush.bf16.msra.mxu0 %v1765
      %1775 = vmatmul.bf16.gmra.mxu0 %v1762
      %v1776 = vpop.f32.mrf.mxu0
      %v1777 = vadd.f32 0.0, %v1776
      %v1778 = vpop.f32.mrf.mxu0
      %1779 = vdwg.mxu0
      %v1781 = vunpack.c.l.b16 %v1707
      %v1782 = vpack.c.b16 %v1781, %v1781
      %1783 = vrot.lane.b32.xlu0 %v1782, 48
      %v1784 = vpop.permute.xlu0 %1783
      %v1786 = vsel %vm850, %v1678, 0
      %v1789 = vsel %vm854, %v1784, 0
      %1791 = vmatpush.bf16.msra.mxu0 0
      %1792 = vmatpush.bf16.msra.mxu0 0
      %1793 = vmatpush.bf16.msra.mxu0 0
      %1794 = vmatpush.bf16.msra.mxu0 0
      %1795 = vmatpush.bf16.msra.mxu0 0
      %1796 = vmatpush.bf16.msra.mxu0 0
      %1797 = vmatpush.bf16.msra.mxu0 0
      %1798 = vmatpush.bf16.msra.mxu0 %v1789
      %1799 = vmatmul.bf16.gmra.mxu0 %v1786
      %v1800 = vpop.f32.mrf.mxu0
      %v1801 = vadd.f32 0.0, %v1800
      %v1802 = vpop.f32.mrf.mxu0
      %1803 = vdwg.mxu0
      %v1808 = vrot.slane %v1729, 2
      %v1809 = vrot.slane %v1729, 4
      %v1810 = vrot.slane %v1753, 2
      %v1811 = vrot.slane %v1753, 4
      %v1812 = vrot.slane %v1777, 2
      %v1813 = vrot.slane %v1777, 4
      %v1814 = vrot.slane %v1801, 2
      %v1815 = vrot.slane %v1801, 4
      %1816 = vst [vmem:[#allocation1] ss:$4 sm:$0xff] %v1729
      %s1817 = scalar_lea.vmem [#allocation1], 1
      %1818 = vst [vmem:[%s1817] ss:$4 sm:$0xff] %v1808
      %s1819 = scalar_lea.vmem [#allocation1], 2
      %1820 = vst [vmem:[%s1819] ss:$4 sm:$0xff] %v1809
      %s1821 = scalar_lea.vmem [#allocation1], 3
      %1822 = vst [vmem:[%s1821] ss:$4 sm:$0xff] %v1753
      %s1823 = scalar_lea.vmem [#allocation1], 32
      %1824 = vst [vmem:[%s1823] ss:$4 sm:$0xff] %v1810
      %s1825 = scalar_lea.vmem [#allocation1], 33
      %1826 = vst [vmem:[%s1825] ss:$4 sm:$0xff] %v1811
      %s1827 = scalar_lea.vmem [#allocation1], 34
      %1828 = vst [vmem:[%s1827] ss:$4 sm:$0xff] %v1777
      %s1829 = scalar_lea.vmem [#allocation1], 35
      %1830 = vst [vmem:[%s1829] ss:$4 sm:$0xff] %v1812
      %v1831 = vld.sshfl [vmem:[#allocation1] sm:$0xff pattern:$0x73625140]
      %v1832 = vld.sshfl [vmem:[#allocation1 + $0x20] sm:$0xff pattern:$0x73625140]
      %1833 = vst [vmem:[#allocation1] ss:$4 sm:$0xff] %v1813
      %1834 = vst [vmem:[%s1817] ss:$4 sm:$0xff] %v1801
      %1835 = vst [vmem:[%s1819] ss:$4 sm:$0xff] %v1814
      %1836 = vst [vmem:[%s1821] ss:$4 sm:$0xff] %v1815
      %v1837 = vld.sshfl [vmem:[#allocation1] sm:$0xff pattern:$0x73625140]
      %v1841 = vpack.c.bf16 %v1832, %v1831
      %v1842 = vpack.c.bf16 %v1837, %v1837
      %s1843 = scalar_lea.vmem %s3, 32
      %v1844 = vld [vmem:[%s1843] sm:$0xf]
      %v1845 = vld [vmem:[%s1843 + $0x4] sm:$0xf]
      %v1846 = vld [vmem:[%s1843 + $0x8] sm:$0xf]
      %v1847 = vld [vmem:[%s1843 + $0xc] sm:$0xf]
      %v1852 = vunpack.c.l.b16 %v1844
      %v1853 = vunpack.c.l.b16 %v1845
      %v1854 = vunpack.c.l.b16 %v1846
      %v1855 = vunpack.c.l.b16 %v1847
      %v1856 = vpack.c.b16 %v1853, %v1852
      %v1857 = vpack.c.b16 %v1855, %v1854
      %v1859 = vsel %vm675, %v1841, 0
      %v1862 = vsel %vm675, %v1842, 0
      %v1865 = vsel %vm675, %v1856, 0
      %v1868 = vsel %vm675, %v1857, 0
      %1870 = vmatpush.bf16.xpose.msra.mxu0 0
      %1871 = vmatpush.bf16.xpose.msra.mxu0 0
      %1872 = vmatpush.bf16.xpose.msra.mxu0 0
      %1873 = vmatpush.bf16.xpose.msra.mxu0 0
      %1874 = vmatpush.bf16.xpose.msra.mxu0 0
      %1875 = vmatpush.bf16.xpose.msra.mxu0 0
      %1876 = vmatpush.bf16.xpose.msra.mxu0 %v1868
      %1877 = vmatpush.bf16.xpose.msra.mxu0 %v1865
      %1878 = vmatmul.bf16.gmra.mxu0 %v1859
      %v1879 = vpop.f32.mrf.mxu0
      %v1880 = vadd.f32 0.0, %v1879
      %v1881 = vpop.f32.mrf.mxu0
      %v1882 = vadd.f32 0.0, %v1881
      %1883 = vmatmul.bf16.gmra.mxu0 %v1862
      %v1884 = vpop.f32.mrf.mxu0
      %v1885 = vadd.f32 0.0, %v1884
      %v1886 = vpop.f32.mrf.mxu0
      %1887 = vdwg.mxu0
      %v1888 = vadd.f32 %v1449, %v1880
      %v1889 = vadd.f32 %v1451, %v1882
      %v1890 = vadd.f32 %v1454, %v1885
      %1891 = vst [vmem:[#allocation1] ss:$4 sm:$0xff] %v585
      %s1892 = scalar_lea.vmem [#allocation1], 1
      %1893 = vst [vmem:[%s1892] ss:$4 sm:$0xff] %v591
      %s1894 = scalar_lea.vmem [#allocation1], 2
      %1895 = vst [vmem:[%s1894] ss:$4 sm:$0xff] %v592
      %v1896 = vld.sshfl [vmem:[#allocation1] sm:$0xff pattern:$0x73625140]
      %s1897 = scalar_lea.vmem [#allocation1], 32
      %1898 = vst [vmem:[%s1897] ss:$4 sm:$0xff] %v593
      %s1899 = scalar_lea.vmem [#allocation1], 33
      %1900 = vst [vmem:[%s1899] ss:$4 sm:$0xff] %v586
      %s1901 = scalar_lea.vmem [#allocation1], 34
      %1902 = vst [vmem:[%s1901] ss:$4 sm:$0xff] %v594
      %v1903 = vld.sshfl [vmem:[#allocation1 + $0x20] sm:$0xff pattern:$0x73625140]
      %1904 = vst [vmem:[#allocation1] ss:$4 sm:$0xff] %v595
      %1905 = vst [vmem:[%s1892] ss:$4 sm:$0xff] %v596
      %1906 = vst [vmem:[%s1894] ss:$4 sm:$0xff] %v587
      %v1907 = vld.sshfl [vmem:[#allocation1] sm:$0xff pattern:$0x73625140]
      %1908 = vst [vmem:[%s1897] ss:$4 sm:$0xff] %v597
      %1909 = vst [vmem:[%s1899] ss:$4 sm:$0xff] %v598
      %1910 = vst [vmem:[%s1901] ss:$4 sm:$0xff] %v599
      %v1911 = vld.sshfl [vmem:[#allocation1 + $0x20] sm:$0xff pattern:$0x73625140]
      %v1916 = vpack.c.bf16 %v1896, %v1896
      %v1917 = vpack.c.bf16 %v1903, %v1903
      %v1918 = vpack.c.bf16 %v1907, %v1907
      %v1919 = vpack.c.bf16 %v1911, %v1911
      %1920 = vst [vmem:[#allocation1] ss:$4 sm:$0xff] %v577
      %s1921 = scalar_lea.vmem [#allocation1], 1
      %1922 = vst [vmem:[%s1921] ss:$4 sm:$0xff] %v603
      %s1923 = scalar_lea.vmem [#allocation1], 2
      %1924 = vst [vmem:[%s1923] ss:$4 sm:$0xff] %v604
      %v1925 = vld.sshfl [vmem:[#allocation1] sm:$0xff pattern:$0x73625140]
      %s1926 = scalar_lea.vmem [#allocation1], 32
      %1927 = vst [vmem:[%s1926] ss:$4 sm:$0xff] %v605
      %s1928 = scalar_lea.vmem [#allocation1], 33
      %1929 = vst [vmem:[%s1928] ss:$4 sm:$0xff] %v579
      %s1930 = scalar_lea.vmem [#allocation1], 34
      %1931 = vst [vmem:[%s1930] ss:$4 sm:$0xff] %v606
      %v1932 = vld.sshfl [vmem:[#allocation1 + $0x20] sm:$0xff pattern:$0x73625140]
      %1933 = vst [vmem:[#allocation1] ss:$4 sm:$0xff] %v607
      %1934 = vst [vmem:[%s1921] ss:$4 sm:$0xff] %v608
      %1935 = vst [vmem:[%s1923] ss:$4 sm:$0xff] %v582
      %v1936 = vld.sshfl [vmem:[#allocation1] sm:$0xff pattern:$0x73625140]
      %1937 = vst [vmem:[%s1926] ss:$4 sm:$0xff] %v609
      %1938 = vst [vmem:[%s1928] ss:$4 sm:$0xff] %v610
      %1939 = vst [vmem:[%s1930] ss:$4 sm:$0xff] %v611
      %v1940 = vld.sshfl [vmem:[#allocation1 + $0x20] sm:$0xff pattern:$0x73625140]
      %v1945 = vpack.c.bf16 %v1925, %v1925
      %v1946 = vpack.c.bf16 %v1932, %v1932
      %v1947 = vpack.c.bf16 %v1936, %v1936
      %v1948 = vpack.c.bf16 %v1940, %v1940
      %v1950 = vunpack.c.l.b16 %v1916
      %v1951 = vpack.c.b16 %v1950, %v1950
      %1952 = vrot.lane.b32.xlu0 %v1951, 104
      %v1953 = vpop.permute.xlu0 %1952
      %v1955 = vunpack.c.l.b16 %v1945
      %v1956 = vpack.c.b16 %v1955, %v1955
      %1957 = vrot.lane.b32.xlu0 %v1956, 72
      %v1958 = vpop.permute.xlu0 %1957
      %v1960 = vsel %vm675, %v1953, 0
      %v1963 = vsel %vm675, %v1958, 0
      %1965 = vmatpush.bf16.xpose.msra.mxu0 0
      %1966 = vmatpush.bf16.xpose.msra.mxu0 0
      %1967 = vmatpush.bf16.xpose.msra.mxu0 0
      %1968 = vmatpush.bf16.xpose.msra.mxu0 0
      %1969 = vmatpush.bf16.xpose.msra.mxu0 0
      %1970 = vmatpush.bf16.xpose.msra.mxu0 0
      %1971 = vmatpush.bf16.xpose.msra.mxu0 0
      %1972 = vmatpush.bf16.xpose.msra.mxu0 %v1963
      %1973 = vmatmul.bf16.gmra.mxu0 %v1960
      %v1974 = vpop.f32.mrf.mxu0
      %v1975 = vadd.f32 0.0, %v1974
      %v1976 = vpop.f32.mrf.mxu0
      %1977 = vdwg.mxu0
      %v1979 = vunpack.c.l.b16 %v1917
      %v1980 = vpack.c.b16 %v1979, %v1979
      %1981 = vrot.lane.b32.xlu0 %v1980, 104
      %v1982 = vpop.permute.xlu0 %1981
      %v1984 = vunpack.c.l.b16 %v1946
      %v1985 = vpack.c.b16 %v1984, %v1984
      %1986 = vrot.lane.b32.xlu0 %v1985, 72
      %v1987 = vpop.permute.xlu0 %1986
      %v1989 = vsel %vm675, %v1982, 0
      %v1992 = vsel %vm675, %v1987, 0
      %1994 = vmatpush.bf16.xpose.msra.mxu0 0
      %1995 = vmatpush.bf16.xpose.msra.mxu0 0
      %1996 = vmatpush.bf16.xpose.msra.mxu0 0
      %1997 = vmatpush.bf16.xpose.msra.mxu0 0
      %1998 = vmatpush.bf16.xpose.msra.mxu0 0
      %1999 = vmatpush.bf16.xpose.msra.mxu0 0
      %2000 = vmatpush.bf16.xpose.msra.mxu0 0
      %2001 = vmatpush.bf16.xpose.msra.mxu0 %v1992
      %2002 = vmatmul.bf16.gmra.mxu0 %v1989
      %v2003 = vpop.f32.mrf.mxu0
      %v2004 = vadd.f32 0.0, %v2003
      %v2005 = vpop.f32.mrf.mxu0
      %2006 = vdwg.mxu0
      %v2008 = vunpack.c.l.b16 %v1918
      %v2009 = vpack.c.b16 %v2008, %v2008
      %2010 = vrot.lane.b32.xlu0 %v2009, 104
      %v2011 = vpop.permute.xlu0 %2010
      %v2013 = vunpack.c.l.b16 %v1947
      %v2014 = vpack.c.b16 %v2013, %v2013
      %2015 = vrot.lane.b32.xlu0 %v2014, 72
      %v2016 = vpop.permute.xlu0 %2015
      %v2018 = vsel %vm675, %v2011, 0
      %v2021 = vsel %vm675, %v2016, 0
      %2023 = vmatpush.bf16.xpose.msra.mxu0 0
      %2024 = vmatpush.bf16.xpose.msra.mxu0 0
      %2025 = vmatpush.bf16.xpose.msra.mxu0 0
      %2026 = vmatpush.bf16.xpose.msra.mxu0 0
      %2027 = vmatpush.bf16.xpose.msra.mxu0 0
      %2028 = vmatpush.bf16.xpose.msra.mxu0 0
      %2029 = vmatpush.bf16.xpose.msra.mxu0 0
      %2030 = vmatpush.bf16.xpose.msra.mxu0 %v2021
      %2031 = vmatmul.bf16.gmra.mxu0 %v2018
      %v2032 = vpop.f32.mrf.mxu0
      %v2033 = vadd.f32 0.0, %v2032
      %v2034 = vpop.f32.mrf.mxu0
      %2035 = vdwg.mxu0
      %v2037 = vunpack.c.l.b16 %v1919
      %v2038 = vpack.c.b16 %v2037, %v2037
      %2039 = vrot.lane.b32.xlu0 %v2038, 104
      %v2040 = vpop.permute.xlu0 %2039
      %v2042 = vunpack.c.l.b16 %v1948
      %v2043 = vpack.c.b16 %v2042, %v2042
      %2044 = vrot.lane.b32.xlu0 %v2043, 72
      %v2045 = vpop.permute.xlu0 %2044
      %v2047 = vsel %vm675, %v2040, 0
      %v2050 = vsel %vm675, %v2045, 0
      %2052 = vmatpush.bf16.xpose.msra.mxu0 0
      %2053 = vmatpush.bf16.xpose.msra.mxu0 0
      %2054 = vmatpush.bf16.xpose.msra.mxu0 0
      %2055 = vmatpush.bf16.xpose.msra.mxu0 0
      %2056 = vmatpush.bf16.xpose.msra.mxu0 0
      %2057 = vmatpush.bf16.xpose.msra.mxu0 0
      %2058 = vmatpush.bf16.xpose.msra.mxu0 0
      %2059 = vmatpush.bf16.xpose.msra.mxu0 %v2050
      %2060 = vmatmul.bf16.gmra.mxu0 %v2047
      %v2061 = vpop.f32.mrf.mxu0
      %v2062 = vadd.f32 0.0, %v2061
      %v2063 = vpop.f32.mrf.mxu0
      %2064 = vdwg.mxu0
      %v2065 = vsel %vm767, %v1975, -inf
      %2066 = vmax.xlane.f32.xlu0 %v2065
      %v2067 = vpop.xlane.xlu0 %2066
      %v2068 = vsel %vm767, %v2004, -inf
      %2069 = vmax.xlane.f32.xlu0 %v2068
      %v2070 = vpop.xlane.xlu0 %2069
      %v2071 = vsel %vm767, %v2033, -inf
      %2072 = vmax.xlane.f32.xlu0 %v2071
      %v2073 = vpop.xlane.xlu0 %2072
      %v2074 = vsel %vm767, %v2062, -inf
      %2075 = vmax.xlane.f32.xlu0 %v2074
      %v2076 = vpop.xlane.xlu0 %2075
      %v2077 = vsub.f32 %v1975, %v2067
      %v2078 = vsub.f32 %v2004, %v2070
      %v2079 = vsub.f32 %v2033, %v2073
      %v2080 = vsub.f32 %v2062, %v2076
      %v2081 = vmul.f32 %v2077, 1.442695
      %v2082 = vpow.pop %v2081
      %v2083 = vmul.f32 %v2078, 1.442695
      %v2084 = vpow.pop %v2083
      %v2085 = vmul.f32 %v2079, 1.442695
      %v2086 = vpow.pop %v2085
      %v2087 = vmul.f32 %v2080, 1.442695
      %v2088 = vpow.pop %v2087
      %v2089 = vsel %vm767, %v2082, 0.0
      %2090 = vadd.xlane.f32.xlu0 %v2089
      %v2091 = vpop.xlane.xlu0 %2090
      %v2092 = vsel %vm767, %v2084, 0.0
      %2093 = vadd.xlane.f32.xlu0 %v2092
      %v2094 = vpop.xlane.xlu0 %2093
      %v2095 = vsel %vm767, %v2086, 0.0
      %2096 = vadd.xlane.f32.xlu0 %v2095
      %v2097 = vpop.xlane.xlu0 %2096
      %v2098 = vsel %vm767, %v2088, 0.0
      %2099 = vadd.xlane.f32.xlu0 %v2098
      %v2100 = vpop.xlane.xlu0 %2099
      %v2101 = vrcp.pop %v2091
      %v2102 = vrcp.pop %v2094
      %v2103 = vrcp.pop %v2097
      %v2104 = vrcp.pop %v2100
      %v2105 = vmul.f32 %v2082, %v2101
      %v2106 = vmul.f32 %v2084, %v2102
      %v2107 = vmul.f32 %v2086, %v2103
      %v2108 = vmul.f32 %v2088, %v2104
      %v2109 = vpack.c.bf16 %v2105, %v2105
      %v2110 = vpack.c.bf16 %v2106, %v2106
      %v2111 = vpack.c.bf16 %v2107, %v2107
      %v2112 = vpack.c.bf16 %v2108, %v2108
      %2113 = vst [vmem:[#allocation1] ss:$4 sm:$0xff] %v577
      %s2114 = scalar_lea.vmem [#allocation1], 1
      %2115 = vst [vmem:[%s2114] ss:$4 sm:$0xff] %v603
      %s2116 = scalar_lea.vmem [#allocation1], 2
      %2117 = vst [vmem:[%s2116] ss:$4 sm:$0xff] %v604
      %v2118 = vld.sshfl [vmem:[#allocation1] sm:$0xff pattern:$0x73625140]
      %s2119 = scalar_lea.vmem [#allocation1], 32
      %2120 = vst [vmem:[%s2119] ss:$4 sm:$0xff] %v605
      %s2121 = scalar_lea.vmem [#allocation1], 33
      %2122 = vst [vmem:[%s2121] ss:$4 sm:$0xff] %v579
      %s2123 = scalar_lea.vmem [#allocation1], 34
      %2124 = vst [vmem:[%s2123] ss:$4 sm:$0xff] %v606
      %v2125 = vld.sshfl [vmem:[#allocation1 + $0x20] sm:$0xff pattern:$0x73625140]
      %2126 = vst [vmem:[#allocation1] ss:$4 sm:$0xff] %v607
      %2127 = vst [vmem:[%s2114] ss:$4 sm:$0xff] %v608
      %2128 = vst [vmem:[%s2116] ss:$4 sm:$0xff] %v582
      %v2129 = vld.sshfl [vmem:[#allocation1] sm:$0xff pattern:$0x73625140]
      %2130 = vst [vmem:[%s2119] ss:$4 sm:$0xff] %v609
      %2131 = vst [vmem:[%s2121] ss:$4 sm:$0xff] %v610
      %2132 = vst [vmem:[%s2123] ss:$4 sm:$0xff] %v611
      %v2133 = vld.sshfl [vmem:[#allocation1 + $0x20] sm:$0xff pattern:$0x73625140]
      %v2138 = vpack.c.bf16 %v2118, %v2118
      %v2139 = vpack.c.bf16 %v2125, %v2125
      %v2140 = vpack.c.bf16 %v2129, %v2129
      %v2141 = vpack.c.bf16 %v2133, %v2133
      %v2143 = vunpack.c.l.b16 %v2138
      %v2144 = vpack.c.b16 %v2143, %v2143
      %2145 = vrot.lane.b32.xlu0 %v2144, 40
      %v2146 = vpop.permute.xlu0 %2145
      %v2148 = vsel %vm850, %v2109, 0
      %v2151 = vsel %vm854, %v2146, 0
      %2153 = vmatpush.bf16.msra.mxu0 0
      %2154 = vmatpush.bf16.msra.mxu0 0
      %2155 = vmatpush.bf16.msra.mxu0 0
      %2156 = vmatpush.bf16.msra.mxu0 0
      %2157 = vmatpush.bf16.msra.mxu0 0
      %2158 = vmatpush.bf16.msra.mxu0 0
      %2159 = vmatpush.bf16.msra.mxu0 0
      %2160 = vmatpush.bf16.msra.mxu0 %v2151
      %2161 = vmatmul.bf16.gmra.mxu0 %v2148
      %v2162 = vpop.f32.mrf.mxu0
      %v2163 = vadd.f32 0.0, %v2162
      %v2164 = vpop.f32.mrf.mxu0
      %2165 = vdwg.mxu0
      %v2167 = vunpack.c.l.b16 %v2139
      %v2168 = vpack.c.b16 %v2167, %v2167
      %2169 = vrot.lane.b32.xlu0 %v2168, 40
      %v2170 = vpop.permute.xlu0 %2169
      %v2172 = vsel %vm850, %v2110, 0
      %v2175 = vsel %vm854, %v2170, 0
      %2177 = vmatpush.bf16.msra.mxu0 0
      %2178 = vmatpush.bf16.msra.mxu0 0
      %2179 = vmatpush.bf16.msra.mxu0 0
      %2180 = vmatpush.bf16.msra.mxu0 0
      %2181 = vmatpush.bf16.msra.mxu0 0
      %2182 = vmatpush.bf16.msra.mxu0 0
      %2183 = vmatpush.bf16.msra.mxu0 0
      %2184 = vmatpush.bf16.msra.mxu0 %v2175
      %2185 = vmatmul.bf16.gmra.mxu0 %v2172
      %v2186 = vpop.f32.mrf.mxu0
      %v2187 = vadd.f32 0.0, %v2186
      %v2188 = vpop.f32.mrf.mxu0
      %2189 = vdwg.mxu0
      %v2191 = vunpack.c.l.b16 %v2140
      %v2192 = vpack.c.b16 %v2191, %v2191
      %2193 = vrot.lane.b32.xlu0 %v2192, 40
      %v2194 = vpop.permute.xlu0 %2193
      %v2196 = vsel %vm850, %v2111, 0
      %v2199 = vsel %vm854, %v2194, 0
      %2201 = vmatpush.bf16.msra.mxu0 0
      %2202 = vmatpush.bf16.msra.mxu0 0
      %2203 = vmatpush.bf16.msra.mxu0 0
      %2204 = vmatpush.bf16.msra.mxu0 0
      %2205 = vmatpush.bf16.msra.mxu0 0
      %2206 = vmatpush.bf16.msra.mxu0 0
      %2207 = vmatpush.bf16.msra.mxu0 0
      %2208 = vmatpush.bf16.msra.mxu0 %v2199
      %2209 = vmatmul.bf16.gmra.mxu0 %v2196
      %v2210 = vpop.f32.mrf.mxu0
      %v2211 = vadd.f32 0.0, %v2210
      %v2212 = vpop.f32.mrf.mxu0
      %2213 = vdwg.mxu0
      %v2215 = vunpack.c.l.b16 %v2141
      %v2216 = vpack.c.b16 %v2215, %v2215
      %2217 = vrot.lane.b32.xlu0 %v2216, 40
      %v2218 = vpop.permute.xlu0 %2217
      %v2220 = vsel %vm850, %v2112, 0
      %v2223 = vsel %vm854, %v2218, 0
      %2225 = vmatpush.bf16.msra.mxu0 0
      %2226 = vmatpush.bf16.msra.mxu0 0
      %2227 = vmatpush.bf16.msra.mxu0 0
      %2228 = vmatpush.bf16.msra.mxu0 0
      %2229 = vmatpush.bf16.msra.mxu0 0
      %2230 = vmatpush.bf16.msra.mxu0 0
      %2231 = vmatpush.bf16.msra.mxu0 0
      %2232 = vmatpush.bf16.msra.mxu0 %v2223
      %2233 = vmatmul.bf16.gmra.mxu0 %v2220
      %v2234 = vpop.f32.mrf.mxu0
      %v2235 = vadd.f32 0.0, %v2234
      %v2236 = vpop.f32.mrf.mxu0
      %2237 = vdwg.mxu0
      %v2242 = vrot.slane %v2163, 2
      %v2243 = vrot.slane %v2163, 4
      %v2244 = vrot.slane %v2187, 2
      %v2245 = vrot.slane %v2187, 4
      %v2246 = vrot.slane %v2211, 2
      %v2247 = vrot.slane %v2211, 4
      %v2248 = vrot.slane %v2235, 2
      %v2249 = vrot.slane %v2235, 4
      %2250 = vst [vmem:[#allocation1] ss:$4 sm:$0xff] %v2163
      %s2251 = scalar_lea.vmem [#allocation1], 1
      %2252 = vst [vmem:[%s2251] ss:$4 sm:$0xff] %v2242
      %s2253 = scalar_lea.vmem [#allocation1], 2
      %2254 = vst [vmem:[%s2253] ss:$4 sm:$0xff] %v2243
      %s2255 = scalar_lea.vmem [#allocation1], 3
      %2256 = vst [vmem:[%s2255] ss:$4 sm:$0xff] %v2187
      %s2257 = scalar_lea.vmem [#allocation1], 32
      %2258 = vst [vmem:[%s2257] ss:$4 sm:$0xff] %v2244
      %s2259 = scalar_lea.vmem [#allocation1], 33
      %2260 = vst [vmem:[%s2259] ss:$4 sm:$0xff] %v2245
      %s2261 = scalar_lea.vmem [#allocation1], 34
      %2262 = vst [vmem:[%s2261] ss:$4 sm:$0xff] %v2211
      %s2263 = scalar_lea.vmem [#allocation1], 35
      %2264 = vst [vmem:[%s2263] ss:$4 sm:$0xff] %v2246
      %v2265 = vld.sshfl [vmem:[#allocation1] sm:$0xff pattern:$0x73625140]
      %v2266 = vld.sshfl [vmem:[#allocation1 + $0x20] sm:$0xff pattern:$0x73625140]
      %2267 = vst [vmem:[#allocation1] ss:$4 sm:$0xff] %v2247
      %2268 = vst [vmem:[%s2251] ss:$4 sm:$0xff] %v2235
      %2269 = vst [vmem:[%s2253] ss:$4 sm:$0xff] %v2248
      %2270 = vst [vmem:[%s2255] ss:$4 sm:$0xff] %v2249
      %v2271 = vld.sshfl [vmem:[#allocation1] sm:$0xff pattern:$0x73625140]
      %v2275 = vpack.c.bf16 %v2266, %v2265
      %v2276 = vpack.c.bf16 %v2271, %v2271
      %s2277 = scalar_lea.vmem %s3, 48
      %v2278 = vld [vmem:[%s2277] sm:$0xf]
      %v2279 = vld [vmem:[%s2277 + $0x4] sm:$0xf]
      %v2280 = vld [vmem:[%s2277 + $0x8] sm:$0xf]
      %v2281 = vld [vmem:[%s2277 + $0xc] sm:$0xf]
      %v2286 = vunpack.c.l.b16 %v2278
      %v2287 = vunpack.c.l.b16 %v2279
      %v2288 = vunpack.c.l.b16 %v2280
      %v2289 = vunpack.c.l.b16 %v2281
      %v2290 = vpack.c.b16 %v2287, %v2286
      %v2291 = vpack.c.b16 %v2289, %v2288
      %v2293 = vsel %vm675, %v2275, 0
      %v2296 = vsel %vm675, %v2276, 0
      %v2299 = vsel %vm675, %v2290, 0
      %v2302 = vsel %vm675, %v2291, 0
      %2304 = vmatpush.bf16.xpose.msra.mxu0 0
      %2305 = vmatpush.bf16.xpose.msra.mxu0 0
      %2306 = vmatpush.bf16.xpose.msra.mxu0 0
      %2307 = vmatpush.bf16.xpose.msra.mxu0 0
      %2308 = vmatpush.bf16.xpose.msra.mxu0 0
      %2309 = vmatpush.bf16.xpose.msra.mxu0 0
      %2310 = vmatpush.bf16.xpose.msra.mxu0 %v2302
      %2311 = vmatpush.bf16.xpose.msra.mxu0 %v2299
      %2312 = vmatmul.bf16.gmra.mxu0 %v2293
      %v2313 = vpop.f32.mrf.mxu0
      %v2314 = vadd.f32 0.0, %v2313
      %v2315 = vpop.f32.mrf.mxu0
      %v2316 = vadd.f32 0.0, %v2315
      %2317 = vmatmul.bf16.gmra.mxu0 %v2296
      %v2318 = vpop.f32.mrf.mxu0
      %v2319 = vadd.f32 0.0, %v2318
      %v2320 = vpop.f32.mrf.mxu0
      %2321 = vdwg.mxu0
      %v2322 = vadd.f32 %v1888, %v2314
      %v2323 = vadd.f32 %v1889, %v2316
      %v2324 = vadd.f32 %v1890, %v2319
      %v2325 = vld [vmem:[%s4] sm:$0x1]
      %v2327 = vperm.slane %v2325, 0
      %v2329 = vadd.f32 %v2322, %v2327
      %v2330 = vadd.f32 %v2323, %v2327
      %v2331 = vadd.f32 %v2324, %v2327
      %v2335 = vrot.slane %v2329, 2
      %v2336 = vrot.slane %v2329, 4
      %v2337 = vrot.slane %v2329, 6
      %v2338 = vrot.slane %v2330, 2
      %v2339 = vrot.slane %v2330, 4
      %v2340 = vrot.slane %v2330, 6
      %v2341 = vrot.slane %v2331, 2
      %v2342 = vrot.slane %v2331, 4
      %v2343 = vrot.slane %v2331, 6
      %v2353 = vadd.f32 %v445, %v2329
      %v2354 = vadd.f32 %v453, %v2335
      %v2355 = vadd.f32 %v454, %v2336
      %v2356 = vadd.f32 %v446, %v2337
      %v2357 = vadd.f32 %v455, %v2330
      %v2358 = vadd.f32 %v456, %v2338
      %v2359 = vadd.f32 %v447, %v2339
      %v2360 = vadd.f32 %v457, %v2340
      %v2361 = vadd.f32 %v458, %v2331
      %v2362 = vadd.f32 %v448, %v2341
      %v2363 = vadd.f32 %v459, %v2342
      %v2364 = vadd.f32 %v460, %v2343
      %v2365 = vld [vmem:[%s5] sm:$0x1]
      %v2366 = vld [vmem:[%s6] sm:$0x1]
      %2379 = vst [vmem:[#allocation1] ss:$4 sm:$0xff] %v2353
      %s2380 = scalar_lea.vmem [#allocation1], 1
      %2381 = vst [vmem:[%s2380] ss:$4 sm:$0xff] %v2354
      %s2382 = scalar_lea.vmem [#allocation1], 2
      %2383 = vst [vmem:[%s2382] ss:$4 sm:$0xff] %v2355
      %s2384 = scalar_lea.vmem [#allocation1], 3
      %2385 = vst [vmem:[%s2384] ss:$4 sm:$0xff] %v2356
      %s2386 = scalar_lea.vmem [#allocation1], 32
      %2387 = vst [vmem:[%s2386] ss:$4 sm:$0xff] %v2357
      %s2388 = scalar_lea.vmem [#allocation1], 33
      %2389 = vst [vmem:[%s2388] ss:$4 sm:$0xff] %v2358
      %s2390 = scalar_lea.vmem [#allocation1], 34
      %2391 = vst [vmem:[%s2390] ss:$4 sm:$0xff] %v2359
      %s2392 = scalar_lea.vmem [#allocation1], 35
      %2393 = vst [vmem:[%s2392] ss:$4 sm:$0xff] %v2360
      %v2394 = vld.sshfl [vmem:[#allocation1] sm:$0xff pattern:$0x73625140]
      %v2395 = vld.sshfl [vmem:[#allocation1 + $0x20] sm:$0xff pattern:$0x73625140]
      %2396 = vst [vmem:[#allocation1] ss:$4 sm:$0xff] %v2361
      %2397 = vst [vmem:[%s2380] ss:$4 sm:$0xff] %v2362
      %2398 = vst [vmem:[%s2382] ss:$4 sm:$0xff] %v2363
      %2399 = vst [vmem:[%s2384] ss:$4 sm:$0xff] %v2364
      %v2400 = vld.sshfl [vmem:[#allocation1] sm:$0xff pattern:$0x73625140]
      %v2404 = vsel %vm542, %v2394, 0.0
      %2405 = vadd.xlane.f32.xlu0 %v2404
      %v2406 = vpop.xlane.xlu0 %2405
      %v2407 = vsel %vm542, %v2395, 0.0
      %2408 = vadd.xlane.f32.xlu0 %v2407
      %v2409 = vpop.xlane.xlu0 %2408
      %v2410 = vsel %vm542, %v2400, 0.0
      %2411 = vadd.xlane.f32.xlu0 %v2410
      %v2412 = vpop.xlane.xlu0 %2411
      %v2413 = vrcp.pop 32.0
      %v2414 = vmul.f32 32.0, %v2413
      %v2415 = vsub.f32 1.0, %v2414
      %v2416 = vmul.f32 %v2413, %v2415
      %v2417 = vadd.f32 %v2413, %v2416
      %vm2418 = vweird.f32 %v2413
      %v2419 = vsel %vm2418, %v2413, %v2417
      %v2420 = vmul.f32 %v2406, %v2419
      %v2421 = vmul.f32 %v2409, %v2419
      %v2422 = vmul.f32 %v2412, %v2419
      %v2427 = vunpack.c.l.s4 269488144
      %v2428 = vunpack.c.0.s8 %v2427
      %v2429 = vperm.slane %v2420, %v2428
      %v2431 = vunpack.c.l.s4 842150450
      %v2432 = vunpack.c.0.s8 %v2431
      %v2433 = vperm.slane %v2420, %v2432
      %v2435 = vunpack.c.l.s4 1414812756
      %v2436 = vunpack.c.0.s8 %v2435
      %v2437 = vperm.slane %v2420, %v2436
      %v2439 = vunpack.c.l.s4 1987475062
      %v2440 = vunpack.c.0.s8 %v2439
      %v2441 = vperm.slane %v2420, %v2440
      %v2443 = vunpack.c.l.s4 269488144
      %v2444 = vunpack.c.0.s8 %v2443
      %v2445 = vperm.slane %v2421, %v2444
      %v2447 = vunpack.c.l.s4 842150450
      %v2448 = vunpack.c.0.s8 %v2447
      %v2449 = vperm.slane %v2421, %v2448
      %v2451 = vunpack.c.l.s4 1414812756
      %v2452 = vunpack.c.0.s8 %v2451
      %v2453 = vperm.slane %v2421, %v2452
      %v2455 = vunpack.c.l.s4 1987475062
      %v2456 = vunpack.c.0.s8 %v2455
      %v2457 = vperm.slane %v2421, %v2456
      %v2459 = vunpack.c.l.s4 269488144
      %v2460 = vunpack.c.0.s8 %v2459
      %v2461 = vperm.slane %v2422, %v2460
      %v2463 = vunpack.c.l.s4 842150450
      %v2464 = vunpack.c.0.s8 %v2463
      %v2465 = vperm.slane %v2422, %v2464
      %v2467 = vunpack.c.l.s4 1414812756
      %v2468 = vunpack.c.0.s8 %v2467
      %v2469 = vperm.slane %v2422, %v2468
      %v2471 = vunpack.c.l.s4 1987475062
      %v2472 = vunpack.c.0.s8 %v2471
      %v2473 = vperm.slane %v2422, %v2472
      %v2486 = vsub.f32 %v2353, %v2429
      %v2487 = vsub.f32 %v2354, %v2433
      %v2488 = vsub.f32 %v2355, %v2437
      %v2489 = vsub.f32 %v2356, %v2441
      %v2490 = vsub.f32 %v2357, %v2445
      %v2491 = vsub.f32 %v2358, %v2449
      %v2492 = vsub.f32 %v2359, %v2453
      %v2493 = vsub.f32 %v2360, %v2457
      %v2494 = vsub.f32 %v2361, %v2461
      %v2495 = vsub.f32 %v2362, %v2465
      %v2496 = vsub.f32 %v2363, %v2469
      %v2497 = vsub.f32 %v2364, %v2473
      %v2498 = vmul.f32 %v2486, %v2486
      %v2499 = vmul.f32 %v2487, %v2487
      %v2500 = vmul.f32 %v2488, %v2488
      %v2501 = vmul.f32 %v2489, %v2489
      %v2502 = vmul.f32 %v2490, %v2490
      %v2503 = vmul.f32 %v2491, %v2491
      %v2504 = vmul.f32 %v2492, %v2492
      %v2505 = vmul.f32 %v2493, %v2493
      %v2506 = vmul.f32 %v2494, %v2494
      %v2507 = vmul.f32 %v2495, %v2495
      %v2508 = vmul.f32 %v2496, %v2496
      %v2509 = vmul.f32 %v2497, %v2497
      %2522 = vst [vmem:[#allocation1] ss:$4 sm:$0xff] %v2498
      %s2523 = scalar_lea.vmem [#allocation1], 1
      %2524 = vst [vmem:[%s2523] ss:$4 sm:$0xff] %v2499
      %s2525 = scalar_lea.vmem [#allocation1], 2
      %2526 = vst [vmem:[%s2525] ss:$4 sm:$0xff] %v2500
      %s2527 = scalar_lea.vmem [#allocation1], 3
      %2528 = vst [vmem:[%s2527] ss:$4 sm:$0xff] %v2501
      %s2529 = scalar_lea.vmem [#allocation1], 32
      %2530 = vst [vmem:[%s2529] ss:$4 sm:$0xff] %v2502
      %s2531 = scalar_lea.vmem [#allocation1], 33
      %2532 = vst [vmem:[%s2531] ss:$4 sm:$0xff] %v2503
      %s2533 = scalar_lea.vmem [#allocation1], 34
      %2534 = vst [vmem:[%s2533] ss:$4 sm:$0xff] %v2504
      %s2535 = scalar_lea.vmem [#allocation1], 35
      %2536 = vst [vmem:[%s2535] ss:$4 sm:$0xff] %v2505
      %v2537 = vld.sshfl [vmem:[#allocation1] sm:$0xff pattern:$0x73625140]
      %v2538 = vld.sshfl [vmem:[#allocation1 + $0x20] sm:$0xff pattern:$0x73625140]
      %2539 = vst [vmem:[#allocation1] ss:$4 sm:$0xff] %v2506
      %2540 = vst [vmem:[%s2523] ss:$4 sm:$0xff] %v2507
      %2541 = vst [vmem:[%s2525] ss:$4 sm:$0xff] %v2508
      %2542 = vst [vmem:[%s2527] ss:$4 sm:$0xff] %v2509
      %v2543 = vld.sshfl [vmem:[#allocation1] sm:$0xff pattern:$0x73625140]
      %v2547 = vsel %vm542, %v2537, 0.0
      %2548 = vadd.xlane.f32.xlu0 %v2547
      %v2549 = vpop.xlane.xlu0 %2548
      %v2550 = vsel %vm542, %v2538, 0.0
      %2551 = vadd.xlane.f32.xlu0 %v2550
      %v2552 = vpop.xlane.xlu0 %2551
      %v2553 = vsel %vm542, %v2543, 0.0
      %2554 = vadd.xlane.f32.xlu0 %v2553
      %v2555 = vpop.xlane.xlu0 %2554
      %v2556 = vmul.f32 %v2549, %v2419
      %v2557 = vmul.f32 %v2552, %v2419
      %v2558 = vmul.f32 %v2555, %v2419
      %v2559 = vadd.f32 %v2556, 1e-05
      %v2560 = vadd.f32 %v2557, 1e-05
      %v2561 = vadd.f32 %v2558, 1e-05
      %v2562 = vrsqrt.pop %v2559
      %v2563 = vmul.f32 %v2562, %v2559
      %v2564 = vmul.f32 %v2563, %v2562
      %v2565 = vmul.f32 0.5, %v2564
      %v2566 = vsub.f32 1.5, %v2565
      %v2567 = vmul.f32 %v2562, %v2566
      %vm2568 = vweird.f32 %v2559
      %vm2569 = vweird.f32 %v2562
      %vm2570 = vmor %vm2568, %vm2569
      %v2571 = vsel %vm2570, %v2562, %v2567
      %v2572 = vrsqrt.pop %v2560
      %v2573 = vmul.f32 %v2572, %v2560
      %v2574 = vmul.f32 %v2573, %v2572
      %v2575 = vmul.f32 0.5, %v2574
      %v2576 = vsub.f32 1.5, %v2575
      %v2577 = vmul.f32 %v2572, %v2576
      %vm2578 = vweird.f32 %v2560
      %vm2579 = vweird.f32 %v2572
      %vm2580 = vmor %vm2578, %vm2579
      %v2581 = vsel %vm2580, %v2572, %v2577
      %v2582 = vrsqrt.pop %v2561
      %v2583 = vmul.f32 %v2582, %v2561
      %v2584 = vmul.f32 %v2583, %v2582
      %v2585 = vmul.f32 0.5, %v2584
      %v2586 = vsub.f32 1.5, %v2585
      %v2587 = vmul.f32 %v2582, %v2586
      %vm2588 = vweird.f32 %v2561
      %vm2589 = vweird.f32 %v2582
      %vm2590 = vmor %vm2588, %vm2589
      %v2591 = vsel %vm2590, %v2582, %v2587
      %v2596 = vunpack.c.l.s4 269488144
      %v2597 = vunpack.c.0.s8 %v2596
      %v2598 = vperm.slane %v2571, %v2597
      %v2600 = vunpack.c.l.s4 842150450
      %v2601 = vunpack.c.0.s8 %v2600
      %v2602 = vperm.slane %v2571, %v2601
      %v2604 = vunpack.c.l.s4 1414812756
      %v2605 = vunpack.c.0.s8 %v2604
      %v2606 = vperm.slane %v2571, %v2605
      %v2608 = vunpack.c.l.s4 1987475062
      %v2609 = vunpack.c.0.s8 %v2608
      %v2610 = vperm.slane %v2571, %v2609
      %v2612 = vunpack.c.l.s4 269488144
      %v2613 = vunpack.c.0.s8 %v2612
      %v2614 = vperm.slane %v2581, %v2613
      %v2616 = vunpack.c.l.s4 842150450
      %v2617 = vunpack.c.0.s8 %v2616
      %v2618 = vperm.slane %v2581, %v2617
      %v2620 = vunpack.c.l.s4 1414812756
      %v2621 = vunpack.c.0.s8 %v2620
      %v2622 = vperm.slane %v2581, %v2621
      %v2624 = vunpack.c.l.s4 1987475062
      %v2625 = vunpack.c.0.s8 %v2624
      %v2626 = vperm.slane %v2581, %v2625
      %v2628 = vunpack.c.l.s4 269488144
      %v2629 = vunpack.c.0.s8 %v2628
      %v2630 = vperm.slane %v2591, %v2629
      %v2632 = vunpack.c.l.s4 842150450
      %v2633 = vunpack.c.0.s8 %v2632
      %v2634 = vperm.slane %v2591, %v2633
      %v2636 = vunpack.c.l.s4 1414812756
      %v2637 = vunpack.c.0.s8 %v2636
      %v2638 = vperm.slane %v2591, %v2637
      %v2640 = vunpack.c.l.s4 1987475062
      %v2641 = vunpack.c.0.s8 %v2640
      %v2642 = vperm.slane %v2591, %v2641
      %v2655 = vmul.f32 %v2486, %v2598
      %v2656 = vmul.f32 %v2487, %v2602
      %v2657 = vmul.f32 %v2488, %v2606
      %v2658 = vmul.f32 %v2489, %v2610
      %v2659 = vmul.f32 %v2490, %v2614
      %v2660 = vmul.f32 %v2491, %v2618
      %v2661 = vmul.f32 %v2492, %v2622
      %v2662 = vmul.f32 %v2493, %v2626
      %v2663 = vmul.f32 %v2494, %v2630
      %v2664 = vmul.f32 %v2495, %v2634
      %v2665 = vmul.f32 %v2496, %v2638
      %v2666 = vmul.f32 %v2497, %v2642
      %v2668 = vperm.slane %v2365, 0
      %v2670 = vrot.slane %v2668, 2
      %v2671 = vrot.slane %v2668, 4
      %v2672 = vrot.slane %v2668, 6
      %v2676 = vmul.f32 %v2655, %v2668
      %v2677 = vmul.f32 %v2656, %v2670
      %v2678 = vmul.f32 %v2657, %v2671
      %v2679 = vmul.f32 %v2658, %v2672
      %v2680 = vmul.f32 %v2659, %v2668
      %v2681 = vmul.f32 %v2660, %v2670
      %v2682 = vmul.f32 %v2661, %v2671
      %v2683 = vmul.f32 %v2662, %v2672
      %v2684 = vmul.f32 %v2663, %v2668
      %v2685 = vmul.f32 %v2664, %v2670
      %v2686 = vmul.f32 %v2665, %v2671
      %v2687 = vmul.f32 %v2666, %v2672
      %v2689 = vperm.slane %v2366, 0
      %v2691 = vrot.slane %v2689, 2
      %v2692 = vrot.slane %v2689, 4
      %v2693 = vrot.slane %v2689, 6
      %v2697 = vadd.f32 %v2676, %v2689
      %v2698 = vadd.f32 %v2677, %v2691
      %v2699 = vadd.f32 %v2678, %v2692
      %v2700 = vadd.f32 %v2679, %v2693
      %v2701 = vadd.f32 %v2680, %v2689
      %v2702 = vadd.f32 %v2681, %v2691
      %v2703 = vadd.f32 %v2682, %v2692
      %v2704 = vadd.f32 %v2683, %v2693
      %v2705 = vadd.f32 %v2684, %v2689
      %v2706 = vadd.f32 %v2685, %v2691
      %v2707 = vadd.f32 %v2686, %v2692
      %v2708 = vadd.f32 %v2687, %v2693
      %2721 = vst [vmem:[#allocation1] ss:$4 sm:$0xff] %v2697
      %s2722 = scalar_lea.vmem [#allocation1], 1
      %2723 = vst [vmem:[%s2722] ss:$4 sm:$0xff] %v2698
      %s2724 = scalar_lea.vmem [#allocation1], 2
      %2725 = vst [vmem:[%s2724] ss:$4 sm:$0xff] %v2699
      %s2726 = scalar_lea.vmem [#allocation1], 3
      %2727 = vst [vmem:[%s2726] ss:$4 sm:$0xff] %v2700
      %s2728 = scalar_lea.vmem [#allocation1], 32
      %2729 = vst [vmem:[%s2728] ss:$4 sm:$0xff] %v2701
      %s2730 = scalar_lea.vmem [#allocation1], 33
      %2731 = vst [vmem:[%s2730] ss:$4 sm:$0xff] %v2702
      %s2732 = scalar_lea.vmem [#allocation1], 34
      %2733 = vst [vmem:[%s2732] ss:$4 sm:$0xff] %v2703
      %s2734 = scalar_lea.vmem [#allocation1], 35
      %2735 = vst [vmem:[%s2734] ss:$4 sm:$0xff] %v2704
      %v2736 = vld.sshfl [vmem:[#allocation1] sm:$0xff pattern:$0x73625140]
      %v2737 = vld.sshfl [vmem:[#allocation1 + $0x20] sm:$0xff pattern:$0x73625140]
      %2738 = vst [vmem:[#allocation1] ss:$4 sm:$0xff] %v2705
      %2739 = vst [vmem:[%s2722] ss:$4 sm:$0xff] %v2706
      %2740 = vst [vmem:[%s2724] ss:$4 sm:$0xff] %v2707
      %2741 = vst [vmem:[%s2726] ss:$4 sm:$0xff] %v2708
      %v2742 = vld.sshfl [vmem:[#allocation1] sm:$0xff pattern:$0x73625140]
      %v2746 = vpack.c.bf16 %v2737, %v2736
      %v2747 = vpack.c.bf16 %v2742, %v2742
      %v2748 = vld [vmem:[%s7] sm:$0xf]
      %v2749 = vld [vmem:[%s7 + $0x4] sm:$0xf]
      %v2750 = vld [vmem:[%s7 + $0x8] sm:$0xf]
      %v2751 = vld [vmem:[%s7 + $0xc] sm:$0xf]
      %v2752 = vld [vmem:[%s7 + $0x10] sm:$0xf]
      %v2753 = vld [vmem:[%s7 + $0x14] sm:$0xf]
      %v2754 = vld [vmem:[%s7 + $0x18] sm:$0xf]
      %v2755 = vld [vmem:[%s7 + $0x1c] sm:$0xf]
      %v2756 = vld [vmem:[%s7 + $0x20] sm:$0xf]
      %v2757 = vld [vmem:[%s7 + $0x24] sm:$0xf]
      %v2758 = vld [vmem:[%s7 + $0x28] sm:$0xf]
      %v2759 = vld [vmem:[%s7 + $0x2c] sm:$0xf]
      %v2760 = vld [vmem:[%s7 + $0x30] sm:$0xf]
      %v2761 = vld [vmem:[%s7 + $0x34] sm:$0xf]
      %v2762 = vld [vmem:[%s7 + $0x38] sm:$0xf]
      %v2763 = vld [vmem:[%s7 + $0x3c] sm:$0xf]
      %v2764 = vld [vmem:[%s7 + $0x40] sm:$0xf]
      %v2765 = vld [vmem:[%s7 + $0x44] sm:$0xf]
      %v2766 = vld [vmem:[%s7 + $0x48] sm:$0xf]
      %v2767 = vld [vmem:[%s7 + $0x4c] sm:$0xf]
      %v2768 = vld [vmem:[%s7 + $0x50] sm:$0xf]
      %v2769 = vld [vmem:[%s7 + $0x54] sm:$0xf]
      %v2770 = vld [vmem:[%s7 + $0x58] sm:$0xf]
      %v2771 = vld [vmem:[%s7 + $0x5c] sm:$0xf]
      %v2772 = vld [vmem:[%s7 + $0x60] sm:$0xf]
      %v2773 = vld [vmem:[%s7 + $0x64] sm:$0xf]
      %v2774 = vld [vmem:[%s7 + $0x68] sm:$0xf]
      %v2775 = vld [vmem:[%s7 + $0x6c] sm:$0xf]
      %v2776 = vld [vmem:[%s7 + $0x70] sm:$0xf]
      %v2777 = vld [vmem:[%s7 + $0x74] sm:$0xf]
      %v2778 = vld [vmem:[%s7 + $0x78] sm:$0xf]
      %v2779 = vld [vmem:[%s7 + $0x7c] sm:$0xf]
      %v2780 = vld [vmem:[%s7 + $0x80] sm:$0xf]
      %v2781 = vld [vmem:[%s7 + $0x84] sm:$0xf]
      %v2782 = vld [vmem:[%s7 + $0x88] sm:$0xf]
      %v2783 = vld [vmem:[%s7 + $0x8c] sm:$0xf]
      %v2784 = vld [vmem:[%s7 + $0x90] sm:$0xf]
      %v2785 = vld [vmem:[%s7 + $0x94] sm:$0xf]
      %v2786 = vld [vmem:[%s7 + $0x98] sm:$0xf]
      %v2787 = vld [vmem:[%s7 + $0x9c] sm:$0xf]
      %v2788 = vld [vmem:[%s7 + $0xa0] sm:$0xf]
      %v2789 = vld [vmem:[%s7 + $0xa4] sm:$0xf]
      %v2790 = vld [vmem:[%s7 + $0xa8] sm:$0xf]
      %v2791 = vld [vmem:[%s7 + $0xac] sm:$0xf]
      %v2792 = vld [vmem:[%s7 + $0xb0] sm:$0xf]
      %v2793 = vld [vmem:[%s7 + $0xb4] sm:$0xf]
      %v2794 = vld [vmem:[%s7 + $0xb8] sm:$0xf]
      %v2795 = vld [vmem:[%s7 + $0xbc] sm:$0xf]
      %v2796 = vld [vmem:[%s7 + $0xc0] sm:$0xf]
      %v2797 = vld [vmem:[%s7 + $0xc4] sm:$0xf]
      %v2798 = vld [vmem:[%s7 + $0xc8] sm:$0xf]
      %v2799 = vld [vmem:[%s7 + $0xcc] sm:$0xf]
      %v2800 = vld [vmem:[%s7 + $0xd0] sm:$0xf]
      %v2801 = vld [vmem:[%s7 + $0xd4] sm:$0xf]
      %v2802 = vld [vmem:[%s7 + $0xd8] sm:$0xf]
      %v2803 = vld [vmem:[%s7 + $0xdc] sm:$0xf]
      %v2804 = vld [vmem:[%s7 + $0xe0] sm:$0xf]
      %v2805 = vld [vmem:[%s7 + $0xe4] sm:$0xf]
      %v2806 = vld [vmem:[%s7 + $0xe8] sm:$0xf]
      %v2807 = vld [vmem:[%s7 + $0xec] sm:$0xf]
      %v2808 = vld [vmem:[%s7 + $0xf0] sm:$0xf]
      %v2809 = vld [vmem:[%s7 + $0xf4] sm:$0xf]
      %v2810 = vld [vmem:[%s7 + $0xf8] sm:$0xf]
      %v2811 = vld [vmem:[%s7 + $0xfc] sm:$0xf]
      %v2812 = vld [vmem:[%s7 + $0x100] sm:$0xf]
      %v2813 = vld [vmem:[%s7 + $0x104] sm:$0xf]
      %v2814 = vld [vmem:[%s7 + $0x108] sm:$0xf]
      %v2815 = vld [vmem:[%s7 + $0x10c] sm:$0xf]
      %v2816 = vld [vmem:[%s7 + $0x110] sm:$0xf]
      %v2817 = vld [vmem:[%s7 + $0x114] sm:$0xf]
      %v2818 = vld [vmem:[%s7 + $0x118] sm:$0xf]
      %v2819 = vld [vmem:[%s7 + $0x11c] sm:$0xf]
      %v2820 = vld [vmem:[%s7 + $0x120] sm:$0xf]
      %v2821 = vld [vmem:[%s7 + $0x124] sm:$0xf]
      %v2822 = vld [vmem:[%s7 + $0x128] sm:$0xf]
      %v2823 = vld [vmem:[%s7 + $0x12c] sm:$0xf]
      %v2824 = vld [vmem:[%s7 + $0x130] sm:$0xf]
      %v2825 = vld [vmem:[%s7 + $0x134] sm:$0xf]
      %v2826 = vld [vmem:[%s7 + $0x138] sm:$0xf]
      %v2827 = vld [vmem:[%s7 + $0x13c] sm:$0xf]
      %v2828 = vld [vmem:[%s7 + $0x140] sm:$0xf]
      %v2829 = vld [vmem:[%s7 + $0x144] sm:$0xf]
      %v2830 = vld [vmem:[%s7 + $0x148] sm:$0xf]
      %v2831 = vld [vmem:[%s7 + $0x14c] sm:$0xf]
      %v2832 = vld [vmem:[%s7 + $0x150] sm:$0xf]
      %v2833 = vld [vmem:[%s7 + $0x154] sm:$0xf]
      %v2834 = vld [vmem:[%s7 + $0x158] sm:$0xf]
      %v2835 = vld [vmem:[%s7 + $0x15c] sm:$0xf]
      %v2836 = vld [vmem:[%s7 + $0x160] sm:$0xf]
      %v2837 = vld [vmem:[%s7 + $0x164] sm:$0xf]
      %v2838 = vld [vmem:[%s7 + $0x168] sm:$0xf]
      %v2839 = vld [vmem:[%s7 + $0x16c] sm:$0xf]
      %v2840 = vld [vmem:[%s7 + $0x170] sm:$0xf]
      %v2841 = vld [vmem:[%s7 + $0x174] sm:$0xf]
      %v2842 = vld [vmem:[%s7 + $0x178] sm:$0xf]
      %v2843 = vld [vmem:[%s7 + $0x17c] sm:$0xf]
      %v2844 = vld [vmem:[%s7 + $0x180] sm:$0xf]
      %v2845 = vld [vmem:[%s7 + $0x184] sm:$0xf]
      %v2846 = vld [vmem:[%s7 + $0x188] sm:$0xf]
      %v2847 = vld [vmem:[%s7 + $0x18c] sm:$0xf]
      %v2848 = vld [vmem:[%s7 + $0x190] sm:$0xf]
      %v2849 = vld [vmem:[%s7 + $0x194] sm:$0xf]
      %v2850 = vld [vmem:[%s7 + $0x198] sm:$0xf]
      %v2851 = vld [vmem:[%s7 + $0x19c] sm:$0xf]
      %v2852 = vld [vmem:[%s7 + $0x1a0] sm:$0xf]
      %v2853 = vld [vmem:[%s7 + $0x1a4] sm:$0xf]
      %v2854 = vld [vmem:[%s7 + $0x1a8] sm:$0xf]
      %v2855 = vld [vmem:[%s7 + $0x1ac] sm:$0xf]
      %v2856 = vld [vmem:[%s7 + $0x1b0] sm:$0xf]
      %v2857 = vld [vmem:[%s7 + $0x1b4] sm:$0xf]
      %v2858 = vld [vmem:[%s7 + $0x1b8] sm:$0xf]
      %v2859 = vld [vmem:[%s7 + $0x1bc] sm:$0xf]
      %v2860 = vld [vmem:[%s7 + $0x1c0] sm:$0xf]
      %v2861 = vld [vmem:[%s7 + $0x1c4] sm:$0xf]
      %v2862 = vld [vmem:[%s7 + $0x1c8] sm:$0xf]
      %v2863 = vld [vmem:[%s7 + $0x1cc] sm:$0xf]
      %v2864 = vld [vmem:[%s7 + $0x1d0] sm:$0xf]
      %v2865 = vld [vmem:[%s7 + $0x1d4] sm:$0xf]
      %v2866 = vld [vmem:[%s7 + $0x1d8] sm:$0xf]
      %v2867 = vld [vmem:[%s7 + $0x1dc] sm:$0xf]
      %v2868 = vld [vmem:[%s7 + $0x1e0] sm:$0xf]
      %v2869 = vld [vmem:[%s7 + $0x1e4] sm:$0xf]
      %v2870 = vld [vmem:[%s7 + $0x1e8] sm:$0xf]
      %v2871 = vld [vmem:[%s7 + $0x1ec] sm:$0xf]
      %v2872 = vld [vmem:[%s7 + $0x1f0] sm:$0xf]
      %v2873 = vld [vmem:[%s7 + $0x1f4] sm:$0xf]
      %v2874 = vld [vmem:[%s7 + $0x1f8] sm:$0xf]
      %v2875 = vld [vmem:[%s7 + $0x1fc] sm:$0xf]
      %v2876 = vld [vmem:[%s7 + $0x200] sm:$0xf]
      %v2877 = vld [vmem:[%s7 + $0x204] sm:$0xf]
      %v2878 = vld [vmem:[%s7 + $0x208] sm:$0xf]
      %v2879 = vld [vmem:[%s7 + $0x20c] sm:$0xf]
      %v2880 = vld [vmem:[%s7 + $0x210] sm:$0xf]
      %v2881 = vld [vmem:[%s7 + $0x214] sm:$0xf]
      %v2882 = vld [vmem:[%s7 + $0x218] sm:$0xf]
      %v2883 = vld [vmem:[%s7 + $0x21c] sm:$0xf]
      %v2884 = vld [vmem:[%s7 + $0x220] sm:$0xf]
      %v2885 = vld [vmem:[%s7 + $0x224] sm:$0xf]
      %v2886 = vld [vmem:[%s7 + $0x228] sm:$0xf]
      %v2887 = vld [vmem:[%s7 + $0x22c] sm:$0xf]
      %v2888 = vld [vmem:[%s7 + $0x230] sm:$0xf]
      %v2889 = vld [vmem:[%s7 + $0x234] sm:$0xf]
      %v2890 = vld [vmem:[%s7 + $0x238] sm:$0xf]
      %v2891 = vld [vmem:[%s7 + $0x23c] sm:$0xf]
      %v2892 = vld [vmem:[%s7 + $0x240] sm:$0xf]
      %v2893 = vld [vmem:[%s7 + $0x244] sm:$0xf]
      %v2894 = vld [vmem:[%s7 + $0x248] sm:$0xf]
      %v2895 = vld [vmem:[%s7 + $0x24c] sm:$0xf]
      %v2896 = vld [vmem:[%s7 + $0x250] sm:$0xf]
      %v2897 = vld [vmem:[%s7 + $0x254] sm:$0xf]
      %v2898 = vld [vmem:[%s7 + $0x258] sm:$0xf]
      %v2899 = vld [vmem:[%s7 + $0x25c] sm:$0xf]
      %v2900 = vld [vmem:[%s7 + $0x260] sm:$0xf]
      %v2901 = vld [vmem:[%s7 + $0x264] sm:$0xf]
      %v2902 = vld [vmem:[%s7 + $0x268] sm:$0xf]
      %v2903 = vld [vmem:[%s7 + $0x26c] sm:$0xf]
      %v2904 = vld [vmem:[%s7 + $0x270] sm:$0xf]
      %v2905 = vld [vmem:[%s7 + $0x274] sm:$0xf]
      %v2906 = vld [vmem:[%s7 + $0x278] sm:$0xf]
      %v2907 = vld [vmem:[%s7 + $0x27c] sm:$0xf]
      %v2908 = vld [vmem:[%s7 + $0x280] sm:$0xf]
      %v2909 = vld [vmem:[%s7 + $0x284] sm:$0xf]
      %v2910 = vld [vmem:[%s7 + $0x288] sm:$0xf]
      %v2911 = vld [vmem:[%s7 + $0x28c] sm:$0xf]
      %v2912 = vld [vmem:[%s7 + $0x290] sm:$0xf]
      %v2913 = vld [vmem:[%s7 + $0x294] sm:$0xf]
      %v2914 = vld [vmem:[%s7 + $0x298] sm:$0xf]
      %v2915 = vld [vmem:[%s7 + $0x29c] sm:$0xf]
      %v2916 = vld [vmem:[%s7 + $0x2a0] sm:$0xf]
      %v2917 = vld [vmem:[%s7 + $0x2a4] sm:$0xf]
      %v2918 = vld [vmem:[%s7 + $0x2a8] sm:$0xf]
      %v2919 = vld [vmem:[%s7 + $0x2ac] sm:$0xf]
      %v2920 = vld [vmem:[%s7 + $0x2b0] sm:$0xf]
      %v2921 = vld [vmem:[%s7 + $0x2b4] sm:$0xf]
      %v2922 = vld [vmem:[%s7 + $0x2b8] sm:$0xf]
      %v2923 = vld [vmem:[%s7 + $0x2bc] sm:$0xf]
      %v2924 = vld [vmem:[%s7 + $0x2c0] sm:$0xf]
      %v2925 = vld [vmem:[%s7 + $0x2c4] sm:$0xf]
      %v2926 = vld [vmem:[%s7 + $0x2c8] sm:$0xf]
      %v2927 = vld [vmem:[%s7 + $0x2cc] sm:$0xf]
      %v2928 = vld [vmem:[%s7 + $0x2d0] sm:$0xf]
      %v2929 = vld [vmem:[%s7 + $0x2d4] sm:$0xf]
      %v2930 = vld [vmem:[%s7 + $0x2d8] sm:$0xf]
      %v2931 = vld [vmem:[%s7 + $0x2dc] sm:$0xf]
      %v2932 = vld [vmem:[%s7 + $0x2e0] sm:$0xf]
      %v2933 = vld [vmem:[%s7 + $0x2e4] sm:$0xf]
      %v2934 = vld [vmem:[%s7 + $0x2e8] sm:$0xf]
      %v2935 = vld [vmem:[%s7 + $0x2ec] sm:$0xf]
      %v2936 = vld [vmem:[%s7 + $0x2f0] sm:$0xf]
      %v2937 = vld [vmem:[%s7 + $0x2f4] sm:$0xf]
      %v2938 = vld [vmem:[%s7 + $0x2f8] sm:$0xf]
      %v2939 = vld [vmem:[%s7 + $0x2fc] sm:$0xf]
      %v2940 = vld [vmem:[%s7 + $0x300] sm:$0xf]
      %v2941 = vld [vmem:[%s7 + $0x304] sm:$0xf]
      %v2942 = vld [vmem:[%s7 + $0x308] sm:$0xf]
      %v2943 = vld [vmem:[%s7 + $0x30c] sm:$0xf]
      %v2944 = vld [vmem:[%s7 + $0x310] sm:$0xf]
      %v2945 = vld [vmem:[%s7 + $0x314] sm:$0xf]
      %v2946 = vld [vmem:[%s7 + $0x318] sm:$0xf]
      %v2947 = vld [vmem:[%s7 + $0x31c] sm:$0xf]
      %v2948 = vld [vmem:[%s7 + $0x320] sm:$0xf]
      %v2949 = vld [vmem:[%s7 + $0x324] sm:$0xf]
      %v2950 = vld [vmem:[%s7 + $0x328] sm:$0xf]
      %v2951 = vld [vmem:[%s7 + $0x32c] sm:$0xf]
      %v2952 = vld [vmem:[%s7 + $0x330] sm:$0xf]
      %v2953 = vld [vmem:[%s7 + $0x334] sm:$0xf]
      %v2954 = vld [vmem:[%s7 + $0x338] sm:$0xf]
      %v2955 = vld [vmem:[%s7 + $0x33c] sm:$0xf]
      %v2956 = vld [vmem:[%s7 + $0x340] sm:$0xf]
      %v2957 = vld [vmem:[%s7 + $0x344] sm:$0xf]
      %v2958 = vld [vmem:[%s7 + $0x348] sm:$0xf]
      %v2959 = vld [vmem:[%s7 + $0x34c] sm:$0xf]
      %v2960 = vld [vmem:[%s7 + $0x350] sm:$0xf]
      %v2961 = vld [vmem:[%s7 + $0x354] sm:$0xf]
      %v2962 = vld [vmem:[%s7 + $0x358] sm:$0xf]
      %v2963 = vld [vmem:[%s7 + $0x35c] sm:$0xf]
      %v2964 = vld [vmem:[%s7 + $0x360] sm:$0xf]
      %v2965 = vld [vmem:[%s7 + $0x364] sm:$0xf]
      %v2966 = vld [vmem:[%s7 + $0x368] sm:$0xf]
      %v2967 = vld [vmem:[%s7 + $0x36c] sm:$0xf]
      %v2968 = vld [vmem:[%s7 + $0x370] sm:$0xf]
      %v2969 = vld [vmem:[%s7 + $0x374] sm:$0xf]
      %v2970 = vld [vmem:[%s7 + $0x378] sm:$0xf]
      %v2971 = vld [vmem:[%s7 + $0x37c] sm:$0xf]
      %v2972 = vld [vmem:[%s7 + $0x380] sm:$0xf]
      %v2973 = vld [vmem:[%s7 + $0x384] sm:$0xf]
      %v2974 = vld [vmem:[%s7 + $0x388] sm:$0xf]
      %v2975 = vld [vmem:[%s7 + $0x38c] sm:$0xf]
      %v2976 = vld [vmem:[%s7 + $0x390] sm:$0xf]
      %v2977 = vld [vmem:[%s7 + $0x394] sm:$0xf]
      %v2978 = vld [vmem:[%s7 + $0x398] sm:$0xf]
      %v2979 = vld [vmem:[%s7 + $0x39c] sm:$0xf]
      %v2980 = vld [vmem:[%s7 + $0x3a0] sm:$0xf]
      %v2981 = vld [vmem:[%s7 + $0x3a4] sm:$0xf]
      %v2982 = vld [vmem:[%s7 + $0x3a8] sm:$0xf]
      %v2983 = vld [vmem:[%s7 + $0x3ac] sm:$0xf]
      %v2984 = vld [vmem:[%s7 + $0x3b0] sm:$0xf]
      %v2985 = vld [vmem:[%s7 + $0x3b4] sm:$0xf]
      %v2986 = vld [vmem:[%s7 + $0x3b8] sm:$0xf]
      %v2987 = vld [vmem:[%s7 + $0x3bc] sm:$0xf]
      %v2988 = vld [vmem:[%s7 + $0x3c0] sm:$0xf]
      %v2989 = vld [vmem:[%s7 + $0x3c4] sm:$0xf]
      %v2990 = vld [vmem:[%s7 + $0x3c8] sm:$0xf]
      %v2991 = vld [vmem:[%s7 + $0x3cc] sm:$0xf]
      %v2992 = vld [vmem:[%s7 + $0x3d0] sm:$0xf]
      %v2993 = vld [vmem:[%s7 + $0x3d4] sm:$0xf]
      %v2994 = vld [vmem:[%s7 + $0x3d8] sm:$0xf]
      %v2995 = vld [vmem:[%s7 + $0x3dc] sm:$0xf]
      %v2996 = vld [vmem:[%s7 + $0x3e0] sm:$0xf]
      %v2997 = vld [vmem:[%s7 + $0x3e4] sm:$0xf]
      %v2998 = vld [vmem:[%s7 + $0x3e8] sm:$0xf]
      %v2999 = vld [vmem:[%s7 + $0x3ec] sm:$0xf]
      %v3000 = vld [vmem:[%s7 + $0x3f0] sm:$0xf]
      %v3001 = vld [vmem:[%s7 + $0x3f4] sm:$0xf]
      %v3002 = vld [vmem:[%s7 + $0x3f8] sm:$0xf]
      %v3003 = vld [vmem:[%s7 + $0x3fc] sm:$0xf]
      %v3004 = vld [vmem:[%s8] sm:$0xff]
      %v3005 = vld [vmem:[%s8 + $0x8] sm:$0xff]
      %v3008 = vperm.slane %v3004, 0
      %v3009 = vperm.slane %v3004, 1
      %v3010 = vperm.slane %v3004, 2
      %v3011 = vperm.slane %v3004, 3
      %v3012 = vperm.slane %v3004, 4
      %v3013 = vperm.slane %v3004, 5
      %v3014 = vperm.slane %v3004, 6
      %v3015 = vperm.slane %v3004, 7
      %v3016 = vperm.slane %v3005, 0
      %v3017 = vperm.slane %v3005, 1
      %v3018 = vperm.slane %v3005, 2
      %v3019 = vperm.slane %v3005, 3
      %v3020 = vperm.slane %v3005, 4
      %v3021 = vperm.slane %v3005, 5
      %v3022 = vperm.slane %v3005, 6
      %v3023 = vperm.slane %v3005, 7
      %v3296 = vunpack.c.l.b16 %v2748
      %v3297 = vunpack.c.l.b16 %v2749
      %v3298 = vunpack.c.l.b16 %v2750
      %v3299 = vunpack.c.l.b16 %v2751
      %v3300 = vunpack.c.l.b16 %v2752
      %v3301 = vunpack.c.l.b16 %v2753
      %v3302 = vunpack.c.l.b16 %v2754
      %v3303 = vunpack.c.l.b16 %v2755
      %v3304 = vunpack.c.l.b16 %v2756
      %v3305 = vunpack.c.l.b16 %v2757
      %v3306 = vunpack.c.l.b16 %v2758
      %v3307 = vunpack.c.l.b16 %v2759
      %v3308 = vunpack.c.l.b16 %v2760
      %v3309 = vunpack.c.l.b16 %v2761
      %v3310 = vunpack.c.l.b16 %v2762
      %v3311 = vunpack.c.l.b16 %v2763
      %v3312 = vunpack.c.l.b16 %v2764
      %v3313 = vunpack.c.l.b16 %v2765
      %v3314 = vunpack.c.l.b16 %v2766
      %v3315 = vunpack.c.l.b16 %v2767
      %v3316 = vunpack.c.l.b16 %v2768
      %v3317 = vunpack.c.l.b16 %v2769
      %v3318 = vunpack.c.l.b16 %v2770
      %v3319 = vunpack.c.l.b16 %v2771
      %v3320 = vunpack.c.l.b16 %v2772
      %v3321 = vunpack.c.l.b16 %v2773
      %v3322 = vunpack.c.l.b16 %v2774
      %v3323 = vunpack.c.l.b16 %v2775
      %v3324 = vunpack.c.l.b16 %v2776
      %v3325 = vunpack.c.l.b16 %v2777
      %v3326 = vunpack.c.l.b16 %v2778
      %v3327 = vunpack.c.l.b16 %v2779
      %v3328 = vunpack.c.l.b16 %v2780
      %v3329 = vunpack.c.l.b16 %v2781
      %v3330 = vunpack.c.l.b16 %v2782
      %v3331 = vunpack.c.l.b16 %v2783
      %v3332 = vunpack.c.l.b16 %v2784
      %v3333 = vunpack.c.l.b16 %v2785
      %v3334 = vunpack.c.l.b16 %v2786
      %v3335 = vunpack.c.l.b16 %v2787
      %v3336 = vunpack.c.l.b16 %v2788
      %v3337 = vunpack.c.l.b16 %v2789
      %v3338 = vunpack.c.l.b16 %v2790
      %v3339 = vunpack.c.l.b16 %v2791
      %v3340 = vunpack.c.l.b16 %v2792
      %v3341 = vunpack.c.l.b16 %v2793
      %v3342 = vunpack.c.l.b16 %v2794
      %v3343 = vunpack.c.l.b16 %v2795
      %v3344 = vunpack.c.l.b16 %v2796
      %v3345 = vunpack.c.l.b16 %v2797
      %v3346 = vunpack.c.l.b16 %v2798
      %v3347 = vunpack.c.l.b16 %v2799
      %v3348 = vunpack.c.l.b16 %v2800
      %v3349 = vunpack.c.l.b16 %v2801
      %v3350 = vunpack.c.l.b16 %v2802
      %v3351 = vunpack.c.l.b16 %v2803
      %v3352 = vunpack.c.l.b16 %v2804
      %v3353 = vunpack.c.l.b16 %v2805
      %v3354 = vunpack.c.l.b16 %v2806
      %v3355 = vunpack.c.l.b16 %v2807
      %v3356 = vunpack.c.l.b16 %v2808
      %v3357 = vunpack.c.l.b16 %v2809
      %v3358 = vunpack.c.l.b16 %v2810
      %v3359 = vunpack.c.l.b16 %v2811
      %v3360 = vunpack.c.l.b16 %v2812
      %v3361 = vunpack.c.l.b16 %v2813
      %v3362 = vunpack.c.l.b16 %v2814
      %v3363 = vunpack.c.l.b16 %v2815
      %v3364 = vunpack.c.l.b16 %v2816
      %v3365 = vunpack.c.l.b16 %v2817
      %v3366 = vunpack.c.l.b16 %v2818
      %v3367 = vunpack.c.l.b16 %v2819
      %v3368 = vunpack.c.l.b16 %v2820
      %v3369 = vunpack.c.l.b16 %v2821
      %v3370 = vunpack.c.l.b16 %v2822
      %v3371 = vunpack.c.l.b16 %v2823
      %v3372 = vunpack.c.l.b16 %v2824
      %v3373 = vunpack.c.l.b16 %v2825
      %v3374 = vunpack.c.l.b16 %v2826
      %v3375 = vunpack.c.l.b16 %v2827
      %v3376 = vunpack.c.l.b16 %v2828
      %v3377 = vunpack.c.l.b16 %v2829
      %v3378 = vunpack.c.l.b16 %v2830
      %v3379 = vunpack.c.l.b16 %v2831
      %v3380 = vunpack.c.l.b16 %v2832
      %v3381 = vunpack.c.l.b16 %v2833
      %v3382 = vunpack.c.l.b16 %v2834
      %v3383 = vunpack.c.l.b16 %v2835
      %v3384 = vunpack.c.l.b16 %v2836
      %v3385 = vunpack.c.l.b16 %v2837
      %v3386 = vunpack.c.l.b16 %v2838
      %v3387 = vunpack.c.l.b16 %v2839
      %v3388 = vunpack.c.l.b16 %v2840
      %v3389 = vunpack.c.l.b16 %v2841
      %v3390 = vunpack.c.l.b16 %v2842
      %v3391 = vunpack.c.l.b16 %v2843
      %v3392 = vunpack.c.l.b16 %v2844
      %v3393 = vunpack.c.l.b16 %v2845
      %v3394 = vunpack.c.l.b16 %v2846
      %v3395 = vunpack.c.l.b16 %v2847
      %v3396 = vunpack.c.l.b16 %v2848
      %v3397 = vunpack.c.l.b16 %v2849
      %v3398 = vunpack.c.l.b16 %v2850
      %v3399 = vunpack.c.l.b16 %v2851
      %v3400 = vunpack.c.l.b16 %v2852
      %v3401 = vunpack.c.l.b16 %v2853
      %v3402 = vunpack.c.l.b16 %v2854
      %v3403 = vunpack.c.l.b16 %v2855
      %v3404 = vunpack.c.l.b16 %v2856
      %v3405 = vunpack.c.l.b16 %v2857
      %v3406 = vunpack.c.l.b16 %v2858
      %v3407 = vunpack.c.l.b16 %v2859
      %v3408 = vunpack.c.l.b16 %v2860
      %v3409 = vunpack.c.l.b16 %v2861
      %v3410 = vunpack.c.l.b16 %v2862
      %v3411 = vunpack.c.l.b16 %v2863
      %v3412 = vunpack.c.l.b16 %v2864
      %v3413 = vunpack.c.l.b16 %v2865
      %v3414 = vunpack.c.l.b16 %v2866
      %v3415 = vunpack.c.l.b16 %v2867
      %v3416 = vunpack.c.l.b16 %v2868
      %v3417 = vunpack.c.l.b16 %v2869
      %v3418 = vunpack.c.l.b16 %v2870
      %v3419 = vunpack.c.l.b16 %v2871
      %v3420 = vunpack.c.l.b16 %v2872
      %v3421 = vunpack.c.l.b16 %v2873
      %v3422 = vunpack.c.l.b16 %v2874
      %v3423 = vunpack.c.l.b16 %v2875
      %v3424 = vunpack.c.l.b16 %v2876
      %v3425 = vunpack.c.l.b16 %v2877
      %v3426 = vunpack.c.l.b16 %v2878
      %v3427 = vunpack.c.l.b16 %v2879
      %v3428 = vunpack.c.l.b16 %v2880
      %v3429 = vunpack.c.l.b16 %v2881
      %v3430 = vunpack.c.l.b16 %v2882
      %v3431 = vunpack.c.l.b16 %v2883
      %v3432 = vunpack.c.l.b16 %v2884
      %v3433 = vunpack.c.l.b16 %v2885
      %v3434 = vunpack.c.l.b16 %v2886
      %v3435 = vunpack.c.l.b16 %v2887
      %v3436 = vunpack.c.l.b16 %v2888
      %v3437 = vunpack.c.l.b16 %v2889
      %v3438 = vunpack.c.l.b16 %v2890
      %v3439 = vunpack.c.l.b16 %v2891
      %v3440 = vunpack.c.l.b16 %v2892
      %v3441 = vunpack.c.l.b16 %v2893
      %v3442 = vunpack.c.l.b16 %v2894
      %v3443 = vunpack.c.l.b16 %v2895
      %v3444 = vunpack.c.l.b16 %v2896
      %v3445 = vunpack.c.l.b16 %v2897
      %v3446 = vunpack.c.l.b16 %v2898
      %v3447 = vunpack.c.l.b16 %v2899
      %v3448 = vunpack.c.l.b16 %v2900
      %v3449 = vunpack.c.l.b16 %v2901
      %v3450 = vunpack.c.l.b16 %v2902
      %v3451 = vunpack.c.l.b16 %v2903
      %v3452 = vunpack.c.l.b16 %v2904
      %v3453 = vunpack.c.l.b16 %v2905
      %v3454 = vunpack.c.l.b16 %v2906
      %v3455 = vunpack.c.l.b16 %v2907
      %v3456 = vunpack.c.l.b16 %v2908
      %v3457 = vunpack.c.l.b16 %v2909
      %v3458 = vunpack.c.l.b16 %v2910
      %v3459 = vunpack.c.l.b16 %v2911
      %v3460 = vunpack.c.l.b16 %v2912
      %v3461 = vunpack.c.l.b16 %v2913
      %v3462 = vunpack.c.l.b16 %v2914
      %v3463 = vunpack.c.l.b16 %v2915
      %v3464 = vunpack.c.l.b16 %v2916
      %v3465 = vunpack.c.l.b16 %v2917
      %v3466 = vunpack.c.l.b16 %v2918
      %v3467 = vunpack.c.l.b16 %v2919
      %v3468 = vunpack.c.l.b16 %v2920
      %v3469 = vunpack.c.l.b16 %v2921
      %v3470 = vunpack.c.l.b16 %v2922
      %v3471 = vunpack.c.l.b16 %v2923
      %v3472 = vunpack.c.l.b16 %v2924
      %v3473 = vunpack.c.l.b16 %v2925
      %v3474 = vunpack.c.l.b16 %v2926
      %v3475 = vunpack.c.l.b16 %v2927
      %v3476 = vunpack.c.l.b16 %v2928
      %v3477 = vunpack.c.l.b16 %v2929
      %v3478 = vunpack.c.l.b16 %v2930
      %v3479 = vunpack.c.l.b16 %v2931
      %v3480 = vunpack.c.l.b16 %v2932
      %v3481 = vunpack.c.l.b16 %v2933
      %v3482 = vunpack.c.l.b16 %v2934
      %v3483 = vunpack.c.l.b16 %v2935
      %v3484 = vunpack.c.l.b16 %v2936
      %v3485 = vunpack.c.l.b16 %v2937
      %v3486 = vunpack.c.l.b16 %v2938
      %v3487 = vunpack.c.l.b16 %v2939
      %v3488 = vunpack.c.l.b16 %v2940
      %v3489 = vunpack.c.l.b16 %v2941
      %v3490 = vunpack.c.l.b16 %v2942
      %v3491 = vunpack.c.l.b16 %v2943
      %v3492 = vunpack.c.l.b16 %v2944
      %v3493 = vunpack.c.l.b16 %v2945
      %v3494 = vunpack.c.l.b16 %v2946
      %v3495 = vunpack.c.l.b16 %v2947
      %v3496 = vunpack.c.l.b16 %v2948
      %v3497 = vunpack.c.l.b16 %v2949
      %v3498 = vunpack.c.l.b16 %v2950
      %v3499 = vunpack.c.l.b16 %v2951
      %v3500 = vunpack.c.l.b16 %v2952
      %v3501 = vunpack.c.l.b16 %v2953
      %v3502 = vunpack.c.l.b16 %v2954
      %v3503 = vunpack.c.l.b16 %v2955
      %v3504 = vunpack.c.l.b16 %v2956
      %v3505 = vunpack.c.l.b16 %v2957
      %v3506 = vunpack.c.l.b16 %v2958
      %v3507 = vunpack.c.l.b16 %v2959
      %v3508 = vunpack.c.l.b16 %v2960
      %v3509 = vunpack.c.l.b16 %v2961
      %v3510 = vunpack.c.l.b16 %v2962
      %v3511 = vunpack.c.l.b16 %v2963
      %v3512 = vunpack.c.l.b16 %v2964
      %v3513 = vunpack.c.l.b16 %v2965
      %v3514 = vunpack.c.l.b16 %v2966
      %v3515 = vunpack.c.l.b16 %v2967
      %v3516 = vunpack.c.l.b16 %v2968
      %v3517 = vunpack.c.l.b16 %v2969
      %v3518 = vunpack.c.l.b16 %v2970
      %v3519 = vunpack.c.l.b16 %v2971
      %v3520 = vunpack.c.l.b16 %v2972
      %v3521 = vunpack.c.l.b16 %v2973
      %v3522 = vunpack.c.l.b16 %v2974
      %v3523 = vunpack.c.l.b16 %v2975
      %v3524 = vunpack.c.l.b16 %v2976
      %v3525 = vunpack.c.l.b16 %v2977
      %v3526 = vunpack.c.l.b16 %v2978
      %v3527 = vunpack.c.l.b16 %v2979
      %v3528 = vunpack.c.l.b16 %v2980
      %v3529 = vunpack.c.l.b16 %v2981
      %v3530 = vunpack.c.l.b16 %v2982
      %v3531 = vunpack.c.l.b16 %v2983
      %v3532 = vunpack.c.l.b16 %v2984
      %v3533 = vunpack.c.l.b16 %v2985
      %v3534 = vunpack.c.l.b16 %v2986
      %v3535 = vunpack.c.l.b16 %v2987
      %v3536 = vunpack.c.l.b16 %v2988
      %v3537 = vunpack.c.l.b16 %v2989
      %v3538 = vunpack.c.l.b16 %v2990
      %v3539 = vunpack.c.l.b16 %v2991
      %v3540 = vunpack.c.l.b16 %v2992
      %v3541 = vunpack.c.l.b16 %v2993
      %v3542 = vunpack.c.l.b16 %v2994
      %v3543 = vunpack.c.l.b16 %v2995
      %v3544 = vunpack.c.l.b16 %v2996
      %v3545 = vunpack.c.l.b16 %v2997
      %v3546 = vunpack.c.l.b16 %v2998
      %v3547 = vunpack.c.l.b16 %v2999
      %v3548 = vunpack.c.l.b16 %v3000
      %v3549 = vunpack.c.l.b16 %v3001
      %v3550 = vunpack.c.l.b16 %v3002
      %v3551 = vunpack.c.l.b16 %v3003
      %v3552 = vpack.c.b16 %v3297, %v3296
      %v3553 = vpack.c.b16 %v3299, %v3298
      %v3554 = vpack.c.b16 %v3301, %v3300
      %v3555 = vpack.c.b16 %v3303, %v3302
      %v3556 = vpack.c.b16 %v3305, %v3304
      %v3557 = vpack.c.b16 %v3307, %v3306
      %v3558 = vpack.c.b16 %v3309, %v3308
      %v3559 = vpack.c.b16 %v3311, %v3310
      %v3560 = vpack.c.b16 %v3313, %v3312
      %v3561 = vpack.c.b16 %v3315, %v3314
      %v3562 = vpack.c.b16 %v3317, %v3316
      %v3563 = vpack.c.b16 %v3319, %v3318
      %v3564 = vpack.c.b16 %v3321, %v3320
      %v3565 = vpack.c.b16 %v3323, %v3322
      %v3566 = vpack.c.b16 %v3325, %v3324
      %v3567 = vpack.c.b16 %v3327, %v3326
      %v3568 = vpack.c.b16 %v3329, %v3328
      %v3569 = vpack.c.b16 %v3331, %v3330
      %v3570 = vpack.c.b16 %v3333, %v3332
      %v3571 = vpack.c.b16 %v3335, %v3334
      %v3572 = vpack.c.b16 %v3337, %v3336
      %v3573 = vpack.c.b16 %v3339, %v3338
      %v3574 = vpack.c.b16 %v3341, %v3340
      %v3575 = vpack.c.b16 %v3343, %v3342
      %v3576 = vpack.c.b16 %v3345, %v3344
      %v3577 = vpack.c.b16 %v3347, %v3346
      %v3578 = vpack.c.b16 %v3349, %v3348
      %v3579 = vpack.c.b16 %v3351, %v3350
      %v3580 = vpack.c.b16 %v3353, %v3352
      %v3581 = vpack.c.b16 %v3355, %v3354
      %v3582 = vpack.c.b16 %v3357, %v3356
      %v3583 = vpack.c.b16 %v3359, %v3358
      %v3584 = vpack.c.b16 %v3361, %v3360
      %v3585 = vpack.c.b16 %v3363, %v3362
      %v3586 = vpack.c.b16 %v3365, %v3364
      %v3587 = vpack.c.b16 %v3367, %v3366
      %v3588 = vpack.c.b16 %v3369, %v3368
      %v3589 = vpack.c.b16 %v3371, %v3370
      %v3590 = vpack.c.b16 %v3373, %v3372
      %v3591 = vpack.c.b16 %v3375, %v3374
      %v3592 = vpack.c.b16 %v3377, %v3376
      %v3593 = vpack.c.b16 %v3379, %v3378
      %v3594 = vpack.c.b16 %v3381, %v3380
      %v3595 = vpack.c.b16 %v3383, %v3382
      %v3596 = vpack.c.b16 %v3385, %v3384
      %v3597 = vpack.c.b16 %v3387, %v3386
      %v3598 = vpack.c.b16 %v3389, %v3388
      %v3599 = vpack.c.b16 %v3391, %v3390
      %v3600 = vpack.c.b16 %v3393, %v3392
      %v3601 = vpack.c.b16 %v3395, %v3394
      %v3602 = vpack.c.b16 %v3397, %v3396
      %v3603 = vpack.c.b16 %v3399, %v3398
      %v3604 = vpack.c.b16 %v3401, %v3400
      %v3605 = vpack.c.b16 %v3403, %v3402
      %v3606 = vpack.c.b16 %v3405, %v3404
      %v3607 = vpack.c.b16 %v3407, %v3406
      %v3608 = vpack.c.b16 %v3409, %v3408
      %v3609 = vpack.c.b16 %v3411, %v3410
      %v3610 = vpack.c.b16 %v3413, %v3412
      %v3611 = vpack.c.b16 %v3415, %v3414
      %v3612 = vpack.c.b16 %v3417, %v3416
      %v3613 = vpack.c.b16 %v3419, %v3418
      %v3614 = vpack.c.b16 %v3421, %v3420
      %v3615 = vpack.c.b16 %v3423, %v3422
      %v3616 = vpack.c.b16 %v3425, %v3424
      %v3617 = vpack.c.b16 %v3427, %v3426
      %v3618 = vpack.c.b16 %v3429, %v3428
      %v3619 = vpack.c.b16 %v3431, %v3430
      %v3620 = vpack.c.b16 %v3433, %v3432
      %v3621 = vpack.c.b16 %v3435, %v3434
      %v3622 = vpack.c.b16 %v3437, %v3436
      %v3623 = vpack.c.b16 %v3439, %v3438
      %v3624 = vpack.c.b16 %v3441, %v3440
      %v3625 = vpack.c.b16 %v3443, %v3442
      %v3626 = vpack.c.b16 %v3445, %v3444
      %v3627 = vpack.c.b16 %v3447, %v3446
      %v3628 = vpack.c.b16 %v3449, %v3448
      %v3629 = vpack.c.b16 %v3451, %v3450
      %v3630 = vpack.c.b16 %v3453, %v3452
      %v3631 = vpack.c.b16 %v3455, %v3454
      %v3632 = vpack.c.b16 %v3457, %v3456
      %v3633 = vpack.c.b16 %v3459, %v3458
      %v3634 = vpack.c.b16 %v3461, %v3460
      %v3635 = vpack.c.b16 %v3463, %v3462
      %v3636 = vpack.c.b16 %v3465, %v3464
      %v3637 = vpack.c.b16 %v3467, %v3466
      %v3638 = vpack.c.b16 %v3469, %v3468
      %v3639 = vpack.c.b16 %v3471, %v3470
      %v3640 = vpack.c.b16 %v3473, %v3472
      %v3641 = vpack.c.b16 %v3475, %v3474
      %v3642 = vpack.c.b16 %v3477, %v3476
      %v3643 = vpack.c.b16 %v3479, %v3478
      %v3644 = vpack.c.b16 %v3481, %v3480
      %v3645 = vpack.c.b16 %v3483, %v3482
      %v3646 = vpack.c.b16 %v3485, %v3484
      %v3647 = vpack.c.b16 %v3487, %v3486
      %v3648 = vpack.c.b16 %v3489, %v3488
      %v3649 = vpack.c.b16 %v3491, %v3490
      %v3650 = vpack.c.b16 %v3493, %v3492
      %v3651 = vpack.c.b16 %v3495, %v3494
      %v3652 = vpack.c.b16 %v3497, %v3496
      %v3653 = vpack.c.b16 %v3499, %v3498
      %v3654 = vpack.c.b16 %v3501, %v3500
      %v3655 = vpack.c.b16 %v3503, %v3502
      %v3656 = vpack.c.b16 %v3505, %v3504
      %v3657 = vpack.c.b16 %v3507, %v3506
      %v3658 = vpack.c.b16 %v3509, %v3508
      %v3659 = vpack.c.b16 %v3511, %v3510
      %v3660 = vpack.c.b16 %v3513, %v3512
      %v3661 = vpack.c.b16 %v3515, %v3514
      %v3662 = vpack.c.b16 %v3517, %v3516
      %v3663 = vpack.c.b16 %v3519, %v3518
      %v3664 = vpack.c.b16 %v3521, %v3520
      %v3665 = vpack.c.b16 %v3523, %v3522
      %v3666 = vpack.c.b16 %v3525, %v3524
      %v3667 = vpack.c.b16 %v3527, %v3526
      %v3668 = vpack.c.b16 %v3529, %v3528
      %v3669 = vpack.c.b16 %v3531, %v3530
      %v3670 = vpack.c.b16 %v3533, %v3532
      %v3671 = vpack.c.b16 %v3535, %v3534
      %v3672 = vpack.c.b16 %v3537, %v3536
      %v3673 = vpack.c.b16 %v3539, %v3538
      %v3674 = vpack.c.b16 %v3541, %v3540
      %v3675 = vpack.c.b16 %v3543, %v3542
      %v3676 = vpack.c.b16 %v3545, %v3544
      %v3677 = vpack.c.b16 %v3547, %v3546
      %v3678 = vpack.c.b16 %v3549, %v3548
      %v3679 = vpack.c.b16 %v3551, %v3550
      %v3681 = vsel %vm542, %v2746, 0
      %v3684 = vsel %vm542, %v2747, 0
      %v3687 = vsel %vm542, %v3552, 0
      %v3690 = vsel %vm542, %v3553, 0
      %v3693 = vsel %vm542, %v3554, 0
      %v3696 = vsel %vm542, %v3555, 0
      %v3699 = vsel %vm542, %v3556, 0
      %v3702 = vsel %vm542, %v3557, 0
      %v3705 = vsel %vm542, %v3558, 0
      %v3708 = vsel %vm542, %v3559, 0
      %v3711 = vsel %vm542, %v3560, 0
      %v3714 = vsel %vm542, %v3561, 0
      %v3717 = vsel %vm542, %v3562, 0
      %v3720 = vsel %vm542, %v3563, 0
      %v3723 = vsel %vm542, %v3564, 0
      %v3726 = vsel %vm542, %v3565, 0
      %v3729 = vsel %vm542, %v3566, 0
      %v3732 = vsel %vm542, %v3567, 0
      %v3735 = vsel %vm542, %v3568, 0
      %v3738 = vsel %vm542, %v3569, 0
      %v3741 = vsel %vm542, %v3570, 0
      %v3744 = vsel %vm542, %v3571, 0
      %v3747 = vsel %vm542, %v3572, 0
      %v3750 = vsel %vm542, %v3573, 0
      %v3753 = vsel %vm542, %v3574, 0
      %v3756 = vsel %vm542, %v3575, 0
      %v3759 = vsel %vm542, %v3576, 0
      %v3762 = vsel %vm542, %v3577, 0
      %v3765 = vsel %vm542, %v3578, 0
      %v3768 = vsel %vm542, %v3579, 0
      %v3771 = vsel %vm542, %v3580, 0
      %v3774 = vsel %vm542, %v3581, 0
      %v3777 = vsel %vm542, %v3582, 0
      %v3780 = vsel %vm542, %v3583, 0
      %v3783 = vsel %vm542, %v3584, 0
      %v3786 = vsel %vm542, %v3585, 0
      %v3789 = vsel %vm542, %v3586, 0
      %v3792 = vsel %vm542, %v3587, 0
      %v3795 = vsel %vm542, %v3588, 0
      %v3798 = vsel %vm542, %v3589, 0
      %v3801 = vsel %vm542, %v3590, 0
      %v3804 = vsel %vm542, %v3591, 0
      %v3807 = vsel %vm542, %v3592, 0
      %v3810 = vsel %vm542, %v3593, 0
      %v3813 = vsel %vm542, %v3594, 0
      %v3816 = vsel %vm542, %v3595, 0
      %v3819 = vsel %vm542, %v3596, 0
      %v3822 = vsel %vm542, %v3597, 0
      %v3825 = vsel %vm542, %v3598, 0
      %v3828 = vsel %vm542, %v3599, 0
      %v3831 = vsel %vm542, %v3600, 0
      %v3834 = vsel %vm542, %v3601, 0
      %v3837 = vsel %vm542, %v3602, 0
      %v3840 = vsel %vm542, %v3603, 0
      %v3843 = vsel %vm542, %v3604, 0
      %v3846 = vsel %vm542, %v3605, 0
      %v3849 = vsel %vm542, %v3606, 0
      %v3852 = vsel %vm542, %v3607, 0
      %v3855 = vsel %vm542, %v3608, 0
      %v3858 = vsel %vm542, %v3609, 0
      %v3861 = vsel %vm542, %v3610, 0
      %v3864 = vsel %vm542, %v3611, 0
      %v3867 = vsel %vm542, %v3612, 0
      %v3870 = vsel %vm542, %v3613, 0
      %v3873 = vsel %vm542, %v3614, 0
      %v3876 = vsel %vm542, %v3615, 0
      %v3879 = vsel %vm542, %v3616, 0
      %v3882 = vsel %vm542, %v3617, 0
      %v3885 = vsel %vm542, %v3618, 0
      %v3888 = vsel %vm542, %v3619, 0
      %v3891 = vsel %vm542, %v3620, 0
      %v3894 = vsel %vm542, %v3621, 0
      %v3897 = vsel %vm542, %v3622, 0
      %v3900 = vsel %vm542, %v3623, 0
      %v3903 = vsel %vm542, %v3624, 0
      %v3906 = vsel %vm542, %v3625, 0
      %v3909 = vsel %vm542, %v3626, 0
      %v3912 = vsel %vm542, %v3627, 0
      %v3915 = vsel %vm542, %v3628, 0
      %v3918 = vsel %vm542, %v3629, 0
      %v3921 = vsel %vm542, %v3630, 0
      %v3924 = vsel %vm542, %v3631, 0
      %v3927 = vsel %vm542, %v3632, 0
      %v3930 = vsel %vm542, %v3633, 0
      %v3933 = vsel %vm542, %v3634, 0
      %v3936 = vsel %vm542, %v3635, 0
      %v3939 = vsel %vm542, %v3636, 0
      %v3942 = vsel %vm542, %v3637, 0
      %v3945 = vsel %vm542, %v3638, 0
      %v3948 = vsel %vm542, %v3639, 0
      %v3951 = vsel %vm542, %v3640, 0
      %v3954 = vsel %vm542, %v3641, 0
      %v3957 = vsel %vm542, %v3642, 0
      %v3960 = vsel %vm542, %v3643, 0
      %v3963 = vsel %vm542, %v3644, 0
      %v3966 = vsel %vm542, %v3645, 0
      %v3969 = vsel %vm542, %v3646, 0
      %v3972 = vsel %vm542, %v3647, 0
      %v3975 = vsel %vm542, %v3648, 0
      %v3978 = vsel %vm542, %v3649, 0
      %v3981 = vsel %vm542, %v3650, 0
      %v3984 = vsel %vm542, %v3651, 0
      %v3987 = vsel %vm542, %v3652, 0
      %v3990 = vsel %vm542, %v3653, 0
      %v3993 = vsel %vm542, %v3654, 0
      %v3996 = vsel %vm542, %v3655, 0
      %v3999 = vsel %vm542, %v3656, 0
      %v4002 = vsel %vm542, %v3657, 0
      %v4005 = vsel %vm542, %v3658, 0
      %v4008 = vsel %vm542, %v3659, 0
      %v4011 = vsel %vm542, %v3660, 0
      %v4014 = vsel %vm542, %v3661, 0
      %v4017 = vsel %vm542, %v3662, 0
      %v4020 = vsel %vm542, %v3663, 0
      %v4023 = vsel %vm542, %v3664, 0
      %v4026 = vsel %vm542, %v3665, 0
      %v4029 = vsel %vm542, %v3666, 0
      %v4032 = vsel %vm542, %v3667, 0
      %v4035 = vsel %vm542, %v3668, 0
      %v4038 = vsel %vm542, %v3669, 0
      %v4041 = vsel %vm542, %v3670, 0
      %v4044 = vsel %vm542, %v3671, 0
      %v4047 = vsel %vm542, %v3672, 0
      %v4050 = vsel %vm542, %v3673, 0
      %v4053 = vsel %vm542, %v3674, 0
      %v4056 = vsel %vm542, %v3675, 0
      %v4059 = vsel %vm542, %v3676, 0
      %v4062 = vsel %vm542, %v3677, 0
      %v4065 = vsel %vm542, %v3678, 0
      %v4068 = vsel %vm542, %v3679, 0
      %4070 = vmatpush.bf16.xpose.msra.mxu0 %v3708
      %4071 = vmatpush.bf16.xpose.msra.mxu0 %v3705
      %4072 = vmatpush.bf16.xpose.msra.mxu0 %v3702
      %4073 = vmatpush.bf16.xpose.msra.mxu0 %v3699
      %4074 = vmatpush.bf16.xpose.msra.mxu0 %v3696
      %4075 = vmatpush.bf16.xpose.msra.mxu0 %v3693
      %4076 = vmatpush.bf16.xpose.msra.mxu0 %v3690
      %4077 = vmatpush.bf16.xpose.msra.mxu0 %v3687
      %4078 = vmatmul.bf16.gmra.mxu0 %v3681
      %v4079 = vpop.f32.mrf.mxu0
      %v4080 = vadd.f32 %v3008, %v4079
      %v4081 = vpop.f32.mrf.mxu0
      %v4082 = vadd.f32 %v3008, %v4081
      %4083 = vmatmul.bf16.gmra.mxu0 %v3684
      %v4084 = vpop.f32.mrf.mxu0
      %v4085 = vadd.f32 %v3008, %v4084
      %v4086 = vpop.f32.mrf.mxu0
      %4087 = vdwg.mxu0
      %4088 = vmatpush.bf16.xpose.msra.mxu0 %v3732
      %4089 = vmatpush.bf16.xpose.msra.mxu0 %v3729
      %4090 = vmatpush.bf16.xpose.msra.mxu0 %v3726
      %4091 = vmatpush.bf16.xpose.msra.mxu0 %v3723
      %4092 = vmatpush.bf16.xpose.msra.mxu0 %v3720
      %4093 = vmatpush.bf16.xpose.msra.mxu0 %v3717
      %4094 = vmatpush.bf16.xpose.msra.mxu0 %v3714
      %4095 = vmatpush.bf16.xpose.msra.mxu0 %v3711
      %4096 = vmatmul.bf16.gmra.mxu0 %v3681
      %v4097 = vpop.f32.mrf.mxu0
      %v4098 = vadd.f32 %v3009, %v4097
      %v4099 = vpop.f32.mrf.mxu0
      %v4100 = vadd.f32 %v3009, %v4099
      %4101 = vmatmul.bf16.gmra.mxu0 %v3684
      %v4102 = vpop.f32.mrf.mxu0
      %v4103 = vadd.f32 %v3009, %v4102
      %v4104 = vpop.f32.mrf.mxu0
      %4105 = vdwg.mxu0
      %4106 = vmatpush.bf16.xpose.msra.mxu0 %v3756
      %4107 = vmatpush.bf16.xpose.msra.mxu0 %v3753
      %4108 = vmatpush.bf16.xpose.msra.mxu0 %v3750
      %4109 = vmatpush.bf16.xpose.msra.mxu0 %v3747
      %4110 = vmatpush.bf16.xpose.msra.mxu0 %v3744
      %4111 = vmatpush.bf16.xpose.msra.mxu0 %v3741
      %4112 = vmatpush.bf16.xpose.msra.mxu0 %v3738
      %4113 = vmatpush.bf16.xpose.msra.mxu0 %v3735
      %4114 = vmatmul.bf16.gmra.mxu0 %v3681
      %v4115 = vpop.f32.mrf.mxu0
      %v4116 = vadd.f32 %v3010, %v4115
      %v4117 = vpop.f32.mrf.mxu0
      %v4118 = vadd.f32 %v3010, %v4117
      %4119 = vmatmul.bf16.gmra.mxu0 %v3684
      %v4120 = vpop.f32.mrf.mxu0
      %v4121 = vadd.f32 %v3010, %v4120
      %v4122 = vpop.f32.mrf.mxu0
      %4123 = vdwg.mxu0
      %4124 = vmatpush.bf16.xpose.msra.mxu0 %v3780
      %4125 = vmatpush.bf16.xpose.msra.mxu0 %v3777
      %4126 = vmatpush.bf16.xpose.msra.mxu0 %v3774
      %4127 = vmatpush.bf16.xpose.msra.mxu0 %v3771
      %4128 = vmatpush.bf16.xpose.msra.mxu0 %v3768
      %4129 = vmatpush.bf16.xpose.msra.mxu0 %v3765
      %4130 = vmatpush.bf16.xpose.msra.mxu0 %v3762
      %4131 = vmatpush.bf16.xpose.msra.mxu0 %v3759
      %4132 = vmatmul.bf16.gmra.mxu0 %v3681
      %v4133 = vpop.f32.mrf.mxu0
      %v4134 = vadd.f32 %v3011, %v4133
      %v4135 = vpop.f32.mrf.mxu0
      %v4136 = vadd.f32 %v3011, %v4135
      %4137 = vmatmul.bf16.gmra.mxu0 %v3684
      %v4138 = vpop.f32.mrf.mxu0
      %v4139 = vadd.f32 %v3011, %v4138
      %v4140 = vpop.f32.mrf.mxu0
      %4141 = vdwg.mxu0
      %4142 = vmatpush.bf16.xpose.msra.mxu0 %v3804
      %4143 = vmatpush.bf16.xpose.msra.mxu0 %v3801
      %4144 = vmatpush.bf16.xpose.msra.mxu0 %v3798
      %4145 = vmatpush.bf16.xpose.msra.mxu0 %v3795
      %4146 = vmatpush.bf16.xpose.msra.mxu0 %v3792
      %4147 = vmatpush.bf16.xpose.msra.mxu0 %v3789
      %4148 = vmatpush.bf16.xpose.msra.mxu0 %v3786
      %4149 = vmatpush.bf16.xpose.msra.mxu0 %v3783
      %4150 = vmatmul.bf16.gmra.mxu0 %v3681
      %v4151 = vpop.f32.mrf.mxu0
      %v4152 = vadd.f32 %v3012, %v4151
      %v4153 = vpop.f32.mrf.mxu0
      %v4154 = vadd.f32 %v3012, %v4153
      %4155 = vmatmul.bf16.gmra.mxu0 %v3684
      %v4156 = vpop.f32.mrf.mxu0
      %v4157 = vadd.f32 %v3012, %v4156
      %v4158 = vpop.f32.mrf.mxu0
      %4159 = vdwg.mxu0
      %4160 = vmatpush.bf16.xpose.msra.mxu0 %v3828
      %4161 = vmatpush.bf16.xpose.msra.mxu0 %v3825
      %4162 = vmatpush.bf16.xpose.msra.mxu0 %v3822
      %4163 = vmatpush.bf16.xpose.msra.mxu0 %v3819
      %4164 = vmatpush.bf16.xpose.msra.mxu0 %v3816
      %4165 = vmatpush.bf16.xpose.msra.mxu0 %v3813
      %4166 = vmatpush.bf16.xpose.msra.mxu0 %v3810
      %4167 = vmatpush.bf16.xpose.msra.mxu0 %v3807
      %4168 = vmatmul.bf16.gmra.mxu0 %v3681
      %v4169 = vpop.f32.mrf.mxu0
      %v4170 = vadd.f32 %v3013, %v4169
      %v4171 = vpop.f32.mrf.mxu0
      %v4172 = vadd.f32 %v3013, %v4171
      %4173 = vmatmul.bf16.gmra.mxu0 %v3684
      %v4174 = vpop.f32.mrf.mxu0
      %v4175 = vadd.f32 %v3013, %v4174
      %v4176 = vpop.f32.mrf.mxu0
      %4177 = vdwg.mxu0
      %4178 = vmatpush.bf16.xpose.msra.mxu0 %v3852
      %4179 = vmatpush.bf16.xpose.msra.mxu0 %v3849
      %4180 = vmatpush.bf16.xpose.msra.mxu0 %v3846
      %4181 = vmatpush.bf16.xpose.msra.mxu0 %v3843
      %4182 = vmatpush.bf16.xpose.msra.mxu0 %v3840
      %4183 = vmatpush.bf16.xpose.msra.mxu0 %v3837
      %4184 = vmatpush.bf16.xpose.msra.mxu0 %v3834
      %4185 = vmatpush.bf16.xpose.msra.mxu0 %v3831
      %4186 = vmatmul.bf16.gmra.mxu0 %v3681
      %v4187 = vpop.f32.mrf.mxu0
      %v4188 = vadd.f32 %v3014, %v4187
      %v4189 = vpop.f32.mrf.mxu0
      %v4190 = vadd.f32 %v3014, %v4189
      %4191 = vmatmul.bf16.gmra.mxu0 %v3684
      %v4192 = vpop.f32.mrf.mxu0
      %v4193 = vadd.f32 %v3014, %v4192
      %v4194 = vpop.f32.mrf.mxu0
      %4195 = vdwg.mxu0
      %4196 = vmatpush.bf16.xpose.msra.mxu0 %v3876
      %4197 = vmatpush.bf16.xpose.msra.mxu0 %v3873
      %4198 = vmatpush.bf16.xpose.msra.mxu0 %v3870
      %4199 = vmatpush.bf16.xpose.msra.mxu0 %v3867
      %4200 = vmatpush.bf16.xpose.msra.mxu0 %v3864
      %4201 = vmatpush.bf16.xpose.msra.mxu0 %v3861
      %4202 = vmatpush.bf16.xpose.msra.mxu0 %v3858
      %4203 = vmatpush.bf16.xpose.msra.mxu0 %v3855
      %4204 = vmatmul.bf16.gmra.mxu0 %v3681
      %v4205 = vpop.f32.mrf.mxu0
      %v4206 = vadd.f32 %v3015, %v4205
      %v4207 = vpop.f32.mrf.mxu0
      %v4208 = vadd.f32 %v3015, %v4207
      %4209 = vmatmul.bf16.gmra.mxu0 %v3684
      %v4210 = vpop.f32.mrf.mxu0
      %v4211 = vadd.f32 %v3015, %v4210
      %v4212 = vpop.f32.mrf.mxu0
      %4213 = vdwg.mxu0
      %4214 = vmatpush.bf16.xpose.msra.mxu0 %v3900
      %4215 = vmatpush.bf16.xpose.msra.mxu0 %v3897
      %4216 = vmatpush.bf16.xpose.msra.mxu0 %v3894
      %4217 = vmatpush.bf16.xpose.msra.mxu0 %v3891
      %4218 = vmatpush.bf16.xpose.msra.mxu0 %v3888
      %4219 = vmatpush.bf16.xpose.msra.mxu0 %v3885
      %4220 = vmatpush.bf16.xpose.msra.mxu0 %v3882
      %4221 = vmatpush.bf16.xpose.msra.mxu0 %v3879
      %4222 = vmatmul.bf16.gmra.mxu0 %v3681
      %v4223 = vpop.f32.mrf.mxu0
      %v4224 = vadd.f32 %v3016, %v4223
      %v4225 = vpop.f32.mrf.mxu0
      %v4226 = vadd.f32 %v3016, %v4225
      %4227 = vmatmul.bf16.gmra.mxu0 %v3684
      %v4228 = vpop.f32.mrf.mxu0
      %v4229 = vadd.f32 %v3016, %v4228
      %v4230 = vpop.f32.mrf.mxu0
      %4231 = vdwg.mxu0
      %4232 = vmatpush.bf16.xpose.msra.mxu0 %v3924
      %4233 = vmatpush.bf16.xpose.msra.mxu0 %v3921
      %4234 = vmatpush.bf16.xpose.msra.mxu0 %v3918
      %4235 = vmatpush.bf16.xpose.msra.mxu0 %v3915
      %4236 = vmatpush.bf16.xpose.msra.mxu0 %v3912
      %4237 = vmatpush.bf16.xpose.msra.mxu0 %v3909
      %4238 = vmatpush.bf16.xpose.msra.mxu0 %v3906
      %4239 = vmatpush.bf16.xpose.msra.mxu0 %v3903
      %4240 = vmatmul.bf16.gmra.mxu0 %v3681
      %v4241 = vpop.f32.mrf.mxu0
      %v4242 = vadd.f32 %v3017, %v4241
      %v4243 = vpop.f32.mrf.mxu0
      %v4244 = vadd.f32 %v3017, %v4243
      %4245 = vmatmul.bf16.gmra.mxu0 %v3684
      %v4246 = vpop.f32.mrf.mxu0
      %v4247 = vadd.f32 %v3017, %v4246
      %v4248 = vpop.f32.mrf.mxu0
      %4249 = vdwg.mxu0
      %4250 = vmatpush.bf16.xpose.msra.mxu0 %v3948
      %4251 = vmatpush.bf16.xpose.msra.mxu0 %v3945
      %4252 = vmatpush.bf16.xpose.msra.mxu0 %v3942
      %4253 = vmatpush.bf16.xpose.msra.mxu0 %v3939
      %4254 = vmatpush.bf16.xpose.msra.mxu0 %v3936
      %4255 = vmatpush.bf16.xpose.msra.mxu0 %v3933
      %4256 = vmatpush.bf16.xpose.msra.mxu0 %v3930
      %4257 = vmatpush.bf16.xpose.msra.mxu0 %v3927
      %4258 = vmatmul.bf16.gmra.mxu0 %v3681
      %v4259 = vpop.f32.mrf.mxu0
      %v4260 = vadd.f32 %v3018, %v4259
      %v4261 = vpop.f32.mrf.mxu0
      %v4262 = vadd.f32 %v3018, %v4261
      %4263 = vmatmul.bf16.gmra.mxu0 %v3684
      %v4264 = vpop.f32.mrf.mxu0
      %v4265 = vadd.f32 %v3018, %v4264
      %v4266 = vpop.f32.mrf.mxu0
      %4267 = vdwg.mxu0
      %4268 = vmatpush.bf16.xpose.msra.mxu0 %v3972
      %4269 = vmatpush.bf16.xpose.msra.mxu0 %v3969
      %4270 = vmatpush.bf16.xpose.msra.mxu0 %v3966
      %4271 = vmatpush.bf16.xpose.msra.mxu0 %v3963
      %4272 = vmatpush.bf16.xpose.msra.mxu0 %v3960
      %4273 = vmatpush.bf16.xpose.msra.mxu0 %v3957
      %4274 = vmatpush.bf16.xpose.msra.mxu0 %v3954
      %4275 = vmatpush.bf16.xpose.msra.mxu0 %v3951
      %4276 = vmatmul.bf16.gmra.mxu0 %v3681
      %v4277 = vpop.f32.mrf.mxu0
      %v4278 = vadd.f32 %v3019, %v4277
      %v4279 = vpop.f32.mrf.mxu0
      %v4280 = vadd.f32 %v3019, %v4279
      %4281 = vmatmul.bf16.gmra.mxu0 %v3684
      %v4282 = vpop.f32.mrf.mxu0
      %v4283 = vadd.f32 %v3019, %v4282
      %v4284 = vpop.f32.mrf.mxu0
      %4285 = vdwg.mxu0
      %4286 = vmatpush.bf16.xpose.msra.mxu0 %v3996
      %4287 = vmatpush.bf16.xpose.msra.mxu0 %v3993
      %4288 = vmatpush.bf16.xpose.msra.mxu0 %v3990
      %4289 = vmatpush.bf16.xpose.msra.mxu0 %v3987
      %4290 = vmatpush.bf16.xpose.msra.mxu0 %v3984
      %4291 = vmatpush.bf16.xpose.msra.mxu0 %v3981
      %4292 = vmatpush.bf16.xpose.msra.mxu0 %v3978
      %4293 = vmatpush.bf16.xpose.msra.mxu0 %v3975
      %4294 = vmatmul.bf16.gmra.mxu0 %v3681
      %v4295 = vpop.f32.mrf.mxu0
      %v4296 = vadd.f32 %v3020, %v4295
      %v4297 = vpop.f32.mrf.mxu0
      %v4298 = vadd.f32 %v3020, %v4297
      %4299 = vmatmul.bf16.gmra.mxu0 %v3684
      %v4300 = vpop.f32.mrf.mxu0
      %v4301 = vadd.f32 %v3020, %v4300
      %v4302 = vpop.f32.mrf.mxu0
      %4303 = vdwg.mxu0
      %4304 = vmatpush.bf16.xpose.msra.mxu0 %v4020
      %4305 = vmatpush.bf16.xpose.msra.mxu0 %v4017
      %4306 = vmatpush.bf16.xpose.msra.mxu0 %v4014
      %4307 = vmatpush.bf16.xpose.msra.mxu0 %v4011
      %4308 = vmatpush.bf16.xpose.msra.mxu0 %v4008
      %4309 = vmatpush.bf16.xpose.msra.mxu0 %v4005
      %4310 = vmatpush.bf16.xpose.msra.mxu0 %v4002
      %4311 = vmatpush.bf16.xpose.msra.mxu0 %v3999
      %4312 = vmatmul.bf16.gmra.mxu0 %v3681
      %v4313 = vpop.f32.mrf.mxu0
      %v4314 = vadd.f32 %v3021, %v4313
      %v4315 = vpop.f32.mrf.mxu0
      %v4316 = vadd.f32 %v3021, %v4315
      %4317 = vmatmul.bf16.gmra.mxu0 %v3684
      %v4318 = vpop.f32.mrf.mxu0
      %v4319 = vadd.f32 %v3021, %v4318
      %v4320 = vpop.f32.mrf.mxu0
      %4321 = vdwg.mxu0
      %4322 = vmatpush.bf16.xpose.msra.mxu0 %v4044
      %4323 = vmatpush.bf16.xpose.msra.mxu0 %v4041
      %4324 = vmatpush.bf16.xpose.msra.mxu0 %v4038
      %4325 = vmatpush.bf16.xpose.msra.mxu0 %v4035
      %4326 = vmatpush.bf16.xpose.msra.mxu0 %v4032
      %4327 = vmatpush.bf16.xpose.msra.mxu0 %v4029
      %4328 = vmatpush.bf16.xpose.msra.mxu0 %v4026
      %4329 = vmatpush.bf16.xpose.msra.mxu0 %v4023
      %4330 = vmatmul.bf16.gmra.mxu0 %v3681
      %v4331 = vpop.f32.mrf.mxu0
      %v4332 = vadd.f32 %v3022, %v4331
      %v4333 = vpop.f32.mrf.mxu0
      %v4334 = vadd.f32 %v3022, %v4333
      %4335 = vmatmul.bf16.gmra.mxu0 %v3684
      %v4336 = vpop.f32.mrf.mxu0
      %v4337 = vadd.f32 %v3022, %v4336
      %v4338 = vpop.f32.mrf.mxu0
      %4339 = vdwg.mxu0
      %4340 = vmatpush.bf16.xpose.msra.mxu0 %v4068
      %4341 = vmatpush.bf16.xpose.msra.mxu0 %v4065
      %4342 = vmatpush.bf16.xpose.msra.mxu0 %v4062
      %4343 = vmatpush.bf16.xpose.msra.mxu0 %v4059
      %4344 = vmatpush.bf16.xpose.msra.mxu0 %v4056
      %4345 = vmatpush.bf16.xpose.msra.mxu0 %v4053
      %4346 = vmatpush.bf16.xpose.msra.mxu0 %v4050
      %4347 = vmatpush.bf16.xpose.msra.mxu0 %v4047
      %4348 = vmatmul.bf16.gmra.mxu0 %v3681
      %v4349 = vpop.f32.mrf.mxu0
      %v4350 = vadd.f32 %v3023, %v4349
      %v4351 = vpop.f32.mrf.mxu0
      %v4352 = vadd.f32 %v3023, %v4351
      %4353 = vmatmul.bf16.gmra.mxu0 %v3684
      %v4354 = vpop.f32.mrf.mxu0
      %v4355 = vadd.f32 %v3023, %v4354
      %v4356 = vpop.f32.mrf.mxu0
      %4357 = vdwg.mxu0
      %v4358 = vmax.f32 %v4080, 0.0
      %v4359 = vmax.f32 %v4098, 0.0
      %v4360 = vmax.f32 %v4116, 0.0
      %v4361 = vmax.f32 %v4134, 0.0
      %v4362 = vmax.f32 %v4152, 0.0
      %v4363 = vmax.f32 %v4170, 0.0
      %v4364 = vmax.f32 %v4188, 0.0
      %v4365 = vmax.f32 %v4206, 0.0
      %v4366 = vmax.f32 %v4224, 0.0
      %v4367 = vmax.f32 %v4242, 0.0
      %v4368 = vmax.f32 %v4260, 0.0
      %v4369 = vmax.f32 %v4278, 0.0
      %v4370 = vmax.f32 %v4296, 0.0
      %v4371 = vmax.f32 %v4314, 0.0
      %v4372 = vmax.f32 %v4332, 0.0
      %v4373 = vmax.f32 %v4350, 0.0
      %v4374 = vmax.f32 %v4082, 0.0
      %v4375 = vmax.f32 %v4100, 0.0
      %v4376 = vmax.f32 %v4118, 0.0
      %v4377 = vmax.f32 %v4136, 0.0
      %v4378 = vmax.f32 %v4154, 0.0
      %v4379 = vmax.f32 %v4172, 0.0
      %v4380 = vmax.f32 %v4190, 0.0
      %v4381 = vmax.f32 %v4208, 0.0
      %v4382 = vmax.f32 %v4226, 0.0
      %v4383 = vmax.f32 %v4244, 0.0
      %v4384 = vmax.f32 %v4262, 0.0
      %v4385 = vmax.f32 %v4280, 0.0
      %v4386 = vmax.f32 %v4298, 0.0
      %v4387 = vmax.f32 %v4316, 0.0
      %v4388 = vmax.f32 %v4334, 0.0
      %v4389 = vmax.f32 %v4352, 0.0
      %v4390 = vmax.f32 %v4085, 0.0
      %v4391 = vmax.f32 %v4103, 0.0
      %v4392 = vmax.f32 %v4121, 0.0
      %v4393 = vmax.f32 %v4139, 0.0
      %v4394 = vmax.f32 %v4157, 0.0
      %v4395 = vmax.f32 %v4175, 0.0
      %v4396 = vmax.f32 %v4193, 0.0
      %v4397 = vmax.f32 %v4211, 0.0
      %v4398 = vmax.f32 %v4229, 0.0
      %v4399 = vmax.f32 %v4247, 0.0
      %v4400 = vmax.f32 %v4265, 0.0
      %v4401 = vmax.f32 %v4283, 0.0
      %v4402 = vmax.f32 %v4301, 0.0
      %v4403 = vmax.f32 %v4319, 0.0
      %v4404 = vmax.f32 %v4337, 0.0
      %v4405 = vmax.f32 %v4355, 0.0
      %v4406 = vpack.c.bf16 %v4374, %v4358
      %v4407 = vpack.c.bf16 %v4375, %v4359
      %v4408 = vpack.c.bf16 %v4376, %v4360
      %v4409 = vpack.c.bf16 %v4377, %v4361
      %v4410 = vpack.c.bf16 %v4378, %v4362
      %v4411 = vpack.c.bf16 %v4379, %v4363
      %v4412 = vpack.c.bf16 %v4380, %v4364
      %v4413 = vpack.c.bf16 %v4381, %v4365
      %v4414 = vpack.c.bf16 %v4382, %v4366
      %v4415 = vpack.c.bf16 %v4383, %v4367
      %v4416 = vpack.c.bf16 %v4384, %v4368
      %v4417 = vpack.c.bf16 %v4385, %v4369
      %v4418 = vpack.c.bf16 %v4386, %v4370
      %v4419 = vpack.c.bf16 %v4387, %v4371
      %v4420 = vpack.c.bf16 %v4388, %v4372
      %v4421 = vpack.c.bf16 %v4389, %v4373
      %v4422 = vpack.c.bf16 %v4390, %v4390
      %v4423 = vpack.c.bf16 %v4391, %v4391
      %v4424 = vpack.c.bf16 %v4392, %v4392
      %v4425 = vpack.c.bf16 %v4393, %v4393
      %v4426 = vpack.c.bf16 %v4394, %v4394
      %v4427 = vpack.c.bf16 %v4395, %v4395
      %v4428 = vpack.c.bf16 %v4396, %v4396
      %v4429 = vpack.c.bf16 %v4397, %v4397
      %v4430 = vpack.c.bf16 %v4398, %v4398
      %v4431 = vpack.c.bf16 %v4399, %v4399
      %v4432 = vpack.c.bf16 %v4400, %v4400
      %v4433 = vpack.c.bf16 %v4401, %v4401
      %v4434 = vpack.c.bf16 %v4402, %v4402
      %v4435 = vpack.c.bf16 %v4403, %v4403
      %v4436 = vpack.c.bf16 %v4404, %v4404
      %v4437 = vpack.c.bf16 %v4405, %v4405
      %v4438 = vld [vmem:[%s9] sm:$0xff]
      %v4439 = vld [vmem:[%s9 + $0x8] sm:$0xff]
      %v4440 = vld [vmem:[%s9 + $0x10] sm:$0xff]
      %v4441 = vld [vmem:[%s9 + $0x18] sm:$0xff]
      %v4442 = vld [vmem:[%s9 + $0x20] sm:$0xff]
      %v4443 = vld [vmem:[%s9 + $0x28] sm:$0xff]
      %v4444 = vld [vmem:[%s9 + $0x30] sm:$0xff]
      %v4445 = vld [vmem:[%s9 + $0x38] sm:$0xff]
      %v4446 = vld [vmem:[%s9 + $0x40] sm:$0xff]
      %v4447 = vld [vmem:[%s9 + $0x48] sm:$0xff]
      %v4448 = vld [vmem:[%s9 + $0x50] sm:$0xff]
      %v4449 = vld [vmem:[%s9 + $0x58] sm:$0xff]
      %v4450 = vld [vmem:[%s9 + $0x60] sm:$0xff]
      %v4451 = vld [vmem:[%s9 + $0x68] sm:$0xff]
      %v4452 = vld [vmem:[%s9 + $0x70] sm:$0xff]
      %v4453 = vld [vmem:[%s9 + $0x78] sm:$0xff]
      %v4454 = vld [vmem:[%s9 + $0x80] sm:$0xff]
      %v4455 = vld [vmem:[%s9 + $0x88] sm:$0xff]
      %v4456 = vld [vmem:[%s9 + $0x90] sm:$0xff]
      %v4457 = vld [vmem:[%s9 + $0x98] sm:$0xff]
      %v4458 = vld [vmem:[%s9 + $0xa0] sm:$0xff]
      %v4459 = vld [vmem:[%s9 + $0xa8] sm:$0xff]
      %v4460 = vld [vmem:[%s9 + $0xb0] sm:$0xff]
      %v4461 = vld [vmem:[%s9 + $0xb8] sm:$0xff]
      %v4462 = vld [vmem:[%s9 + $0xc0] sm:$0xff]
      %v4463 = vld [vmem:[%s9 + $0xc8] sm:$0xff]
      %v4464 = vld [vmem:[%s9 + $0xd0] sm:$0xff]
      %v4465 = vld [vmem:[%s9 + $0xd8] sm:$0xff]
      %v4466 = vld [vmem:[%s9 + $0xe0] sm:$0xff]
      %v4467 = vld [vmem:[%s9 + $0xe8] sm:$0xff]
      %v4468 = vld [vmem:[%s9 + $0xf0] sm:$0xff]
      %v4469 = vld [vmem:[%s9 + $0xf8] sm:$0xff]
      %v4470 = vld [vmem:[%s10] sm:$0x1]
      %v4472 = vperm.slane %v4470, 0
      %v4506 = vunpack.c.l.b16 %v4438
      %v4507 = vunpack.c.h.b16 %v4438
      %v4508 = vunpack.c.l.b16 %v4439
      %v4509 = vunpack.c.h.b16 %v4439
      %v4510 = vunpack.c.l.b16 %v4440
      %v4511 = vunpack.c.h.b16 %v4440
      %v4512 = vunpack.c.l.b16 %v4441
      %v4513 = vunpack.c.h.b16 %v4441
      %v4514 = vunpack.c.l.b16 %v4442
      %v4515 = vunpack.c.h.b16 %v4442
      %v4516 = vunpack.c.l.b16 %v4443
      %v4517 = vunpack.c.h.b16 %v4443
      %v4518 = vunpack.c.l.b16 %v4444
      %v4519 = vunpack.c.h.b16 %v4444
      %v4520 = vunpack.c.l.b16 %v4445
      %v4521 = vunpack.c.h.b16 %v4445
      %v4522 = vunpack.c.l.b16 %v4446
      %v4523 = vunpack.c.h.b16 %v4446
      %v4524 = vunpack.c.l.b16 %v4447
      %v4525 = vunpack.c.h.b16 %v4447
      %v4526 = vunpack.c.l.b16 %v4448
      %v4527 = vunpack.c.h.b16 %v4448
      %v4528 = vunpack.c.l.b16 %v4449
      %v4529 = vunpack.c.h.b16 %v4449
      %v4530 = vunpack.c.l.b16 %v4450
      %v4531 = vunpack.c.h.b16 %v4450
      %v4532 = vunpack.c.l.b16 %v4451
      %v4533 = vunpack.c.h.b16 %v4451
      %v4534 = vunpack.c.l.b16 %v4452
      %v4535 = vunpack.c.h.b16 %v4452
      %v4536 = vunpack.c.l.b16 %v4453
      %v4537 = vunpack.c.h.b16 %v4453
      %v4538 = vunpack.c.l.b16 %v4454
      %v4539 = vunpack.c.h.b16 %v4454
      %v4540 = vunpack.c.l.b16 %v4455
      %v4541 = vunpack.c.h.b16 %v4455
      %v4542 = vunpack.c.l.b16 %v4456
      %v4543 = vunpack.c.h.b16 %v4456
      %v4544 = vunpack.c.l.b16 %v4457
      %v4545 = vunpack.c.h.b16 %v4457
      %v4546 = vunpack.c.l.b16 %v4458
      %v4547 = vunpack.c.h.b16 %v4458
      %v4548 = vunpack.c.l.b16 %v4459
      %v4549 = vunpack.c.h.b16 %v4459
      %v4550 = vunpack.c.l.b16 %v4460
      %v4551 = vunpack.c.h.b16 %v4460
      %v4552 = vunpack.c.l.b16 %v4461
      %v4553 = vunpack.c.h.b16 %v4461
      %v4554 = vunpack.c.l.b16 %v4462
      %v4555 = vunpack.c.h.b16 %v4462
      %v4556 = vunpack.c.l.b16 %v4463
      %v4557 = vunpack.c.h.b16 %v4463
      %v4558 = vunpack.c.l.b16 %v4464
      %v4559 = vunpack.c.h.b16 %v4464
      %v4560 = vunpack.c.l.b16 %v4465
      %v4561 = vunpack.c.h.b16 %v4465
      %v4562 = vunpack.c.l.b16 %v4466
      %v4563 = vunpack.c.h.b16 %v4466
      %v4564 = vunpack.c.l.b16 %v4467
      %v4565 = vunpack.c.h.b16 %v4467
      %v4566 = vunpack.c.l.b16 %v4468
      %v4567 = vunpack.c.h.b16 %v4468
      %v4568 = vunpack.c.l.b16 %v4469
      %v4569 = vunpack.c.h.b16 %v4469
      %v4570 = vpack.c.b16 %v4522, %v4506
      %v4571 = vpack.c.b16 %v4523, %v4507
      %v4572 = vpack.c.b16 %v4524, %v4508
      %v4573 = vpack.c.b16 %v4525, %v4509
      %v4574 = vpack.c.b16 %v4526, %v4510
      %v4575 = vpack.c.b16 %v4527, %v4511
      %v4576 = vpack.c.b16 %v4528, %v4512
      %v4577 = vpack.c.b16 %v4529, %v4513
      %v4578 = vpack.c.b16 %v4530, %v4514
      %v4579 = vpack.c.b16 %v4531, %v4515
      %v4580 = vpack.c.b16 %v4532, %v4516
      %v4581 = vpack.c.b16 %v4533, %v4517
      %v4582 = vpack.c.b16 %v4534, %v4518
      %v4583 = vpack.c.b16 %v4535, %v4519
      %v4584 = vpack.c.b16 %v4536, %v4520
      %v4585 = vpack.c.b16 %v4537, %v4521
      %v4586 = vpack.c.b16 %v4554, %v4538
      %v4587 = vpack.c.b16 %v4555, %v4539
      %v4588 = vpack.c.b16 %v4556, %v4540
      %v4589 = vpack.c.b16 %v4557, %v4541
      %v4590 = vpack.c.b16 %v4558, %v4542
      %v4591 = vpack.c.b16 %v4559, %v4543
      %v4592 = vpack.c.b16 %v4560, %v4544
      %v4593 = vpack.c.b16 %v4561, %v4545
      %v4594 = vpack.c.b16 %v4562, %v4546
      %v4595 = vpack.c.b16 %v4563, %v4547
      %v4596 = vpack.c.b16 %v4564, %v4548
      %v4597 = vpack.c.b16 %v4565, %v4549
      %v4598 = vpack.c.b16 %v4566, %v4550
      %v4599 = vpack.c.b16 %v4567, %v4551
      %v4600 = vpack.c.b16 %v4568, %v4552
      %v4601 = vpack.c.b16 %v4569, %v4553
      %4634 = vmatpush.bf16.xpose.msra.mxu0 0
      %4635 = vmatpush.bf16.xpose.msra.mxu0 0
      %4636 = vmatpush.bf16.xpose.msra.mxu0 0
      %4637 = vmatpush.bf16.xpose.msra.mxu0 0
      %4638 = vmatpush.bf16.xpose.msra.mxu0 0
      %4639 = vmatpush.bf16.xpose.msra.mxu0 0
      %4640 = vmatpush.bf16.xpose.msra.mxu0 %v4586
      %4641 = vmatpush.bf16.xpose.msra.mxu0 %v4570
      %4642 = vmatmul.bf16.gmra.mxu0 %v4406
      %v4643 = vpop.f32.mrf.mxu0
      %v4644 = vadd.f32 %v4472, %v4643
      %v4645 = vpop.f32.mrf.mxu0
      %v4646 = vadd.f32 %v4472, %v4645
      %4647 = vmatmul.bf16.gmra.mxu0 %v4422
      %v4648 = vpop.f32.mrf.mxu0
      %v4649 = vadd.f32 %v4472, %v4648
      %v4650 = vpop.f32.mrf.mxu0
      %4651 = vdwg.mxu0
      %4652 = vmatpush.bf16.xpose.msra.mxu0 0
      %4653 = vmatpush.bf16.xpose.msra.mxu0 0
      %4654 = vmatpush.bf16.xpose.msra.mxu0 0
      %4655 = vmatpush.bf16.xpose.msra.mxu0 0
      %4656 = vmatpush.bf16.xpose.msra.mxu0 0
      %4657 = vmatpush.bf16.xpose.msra.mxu0 0
      %4658 = vmatpush.bf16.xpose.msra.mxu0 %v4587
      %4659 = vmatpush.bf16.xpose.msra.mxu0 %v4571
      %4660 = vmatmul.bf16.gmra.mxu0 %v4407
      %v4661 = vpop.f32.mrf.mxu0
      %v4662 = vadd.f32 %v4644, %v4661
      %v4663 = vpop.f32.mrf.mxu0
      %v4664 = vadd.f32 %v4646, %v4663
      %4665 = vmatmul.bf16.gmra.mxu0 %v4423
      %v4666 = vpop.f32.mrf.mxu0
      %v4667 = vadd.f32 %v4649, %v4666
      %v4668 = vpop.f32.mrf.mxu0
      %4669 = vdwg.mxu0
      %4670 = vmatpush.bf16.xpose.msra.mxu0 0
      %4671 = vmatpush.bf16.xpose.msra.mxu0 0
      %4672 = vmatpush.bf16.xpose.msra.mxu0 0
      %4673 = vmatpush.bf16.xpose.msra.mxu0 0
      %4674 = vmatpush.bf16.xpose.msra.mxu0 0
      %4675 = vmatpush.bf16.xpose.msra.mxu0 0
      %4676 = vmatpush.bf16.xpose.msra.mxu0 %v4588
      %4677 = vmatpush.bf16.xpose.msra.mxu0 %v4572
      %4678 = vmatmul.bf16.gmra.mxu0 %v4408
      %v4679 = vpop.f32.mrf.mxu0
      %v4680 = vadd.f32 %v4662, %v4679
      %v4681 = vpop.f32.mrf.mxu0
      %v4682 = vadd.f32 %v4664, %v4681
      %4683 = vmatmul.bf16.gmra.mxu0 %v4424
      %v4684 = vpop.f32.mrf.mxu0
      %v4685 = vadd.f32 %v4667, %v4684
      %v4686 = vpop.f32.mrf.mxu0
      %4687 = vdwg.mxu0
      %4688 = vmatpush.bf16.xpose.msra.mxu0 0
      %4689 = vmatpush.bf16.xpose.msra.mxu0 0
      %4690 = vmatpush.bf16.xpose.msra.mxu0 0
      %4691 = vmatpush.bf16.xpose.msra.mxu0 0
      %4692 = vmatpush.bf16.xpose.msra.mxu0 0
      %4693 = vmatpush.bf16.xpose.msra.mxu0 0
      %4694 = vmatpush.bf16.xpose.msra.mxu0 %v4589
      %4695 = vmatpush.bf16.xpose.msra.mxu0 %v4573
      %4696 = vmatmul.bf16.gmra.mxu0 %v4409
      %v4697 = vpop.f32.mrf.mxu0
      %v4698 = vadd.f32 %v4680, %v4697
      %v4699 = vpop.f32.mrf.mxu0
      %v4700 = vadd.f32 %v4682, %v4699
      %4701 = vmatmul.bf16.gmra.mxu0 %v4425
      %v4702 = vpop.f32.mrf.mxu0
      %v4703 = vadd.f32 %v4685, %v4702
      %v4704 = vpop.f32.mrf.mxu0
      %4705 = vdwg.mxu0
      %4706 = vmatpush.bf16.xpose.msra.mxu0 0
      %4707 = vmatpush.bf16.xpose.msra.mxu0 0
      %4708 = vmatpush.bf16.xpose.msra.mxu0 0
      %4709 = vmatpush.bf16.xpose.msra.mxu0 0
      %4710 = vmatpush.bf16.xpose.msra.mxu0 0
      %4711 = vmatpush.bf16.xpose.msra.mxu0 0
      %4712 = vmatpush.bf16.xpose.msra.mxu0 %v4590
      %4713 = vmatpush.bf16.xpose.msra.mxu0 %v4574
      %4714 = vmatmul.bf16.gmra.mxu0 %v4410
      %v4715 = vpop.f32.mrf.mxu0
      %v4716 = vadd.f32 %v4698, %v4715
      %v4717 = vpop.f32.mrf.mxu0
      %v4718 = vadd.f32 %v4700, %v4717
      %4719 = vmatmul.bf16.gmra.mxu0 %v4426
      %v4720 = vpop.f32.mrf.mxu0
      %v4721 = vadd.f32 %v4703, %v4720
      %v4722 = vpop.f32.mrf.mxu0
      %4723 = vdwg.mxu0
      %4724 = vmatpush.bf16.xpose.msra.mxu0 0
      %4725 = vmatpush.bf16.xpose.msra.mxu0 0
      %4726 = vmatpush.bf16.xpose.msra.mxu0 0
      %4727 = vmatpush.bf16.xpose.msra.mxu0 0
      %4728 = vmatpush.bf16.xpose.msra.mxu0 0
      %4729 = vmatpush.bf16.xpose.msra.mxu0 0
      %4730 = vmatpush.bf16.xpose.msra.mxu0 %v4591
      %4731 = vmatpush.bf16.xpose.msra.mxu0 %v4575
      %4732 = vmatmul.bf16.gmra.mxu0 %v4411
      %v4733 = vpop.f32.mrf.mxu0
      %v4734 = vadd.f32 %v4716, %v4733
      %v4735 = vpop.f32.mrf.mxu0
      %v4736 = vadd.f32 %v4718, %v4735
      %4737 = vmatmul.bf16.gmra.mxu0 %v4427
      %v4738 = vpop.f32.mrf.mxu0
      %v4739 = vadd.f32 %v4721, %v4738
      %v4740 = vpop.f32.mrf.mxu0
      %4741 = vdwg.mxu0
      %4742 = vmatpush.bf16.xpose.msra.mxu0 0
      %4743 = vmatpush.bf16.xpose.msra.mxu0 0
      %4744 = vmatpush.bf16.xpose.msra.mxu0 0
      %4745 = vmatpush.bf16.xpose.msra.mxu0 0
      %4746 = vmatpush.bf16.xpose.msra.mxu0 0
      %4747 = vmatpush.bf16.xpose.msra.mxu0 0
      %4748 = vmatpush.bf16.xpose.msra.mxu0 %v4592
      %4749 = vmatpush.bf16.xpose.msra.mxu0 %v4576
      %4750 = vmatmul.bf16.gmra.mxu0 %v4412
      %v4751 = vpop.f32.mrf.mxu0
      %v4752 = vadd.f32 %v4734, %v4751
      %v4753 = vpop.f32.mrf.mxu0
      %v4754 = vadd.f32 %v4736, %v4753
      %4755 = vmatmul.bf16.gmra.mxu0 %v4428
      %v4756 = vpop.f32.mrf.mxu0
      %v4757 = vadd.f32 %v4739, %v4756
      %v4758 = vpop.f32.mrf.mxu0
      %4759 = vdwg.mxu0
      %4760 = vmatpush.bf16.xpose.msra.mxu0 0
      %4761 = vmatpush.bf16.xpose.msra.mxu0 0
      %4762 = vmatpush.bf16.xpose.msra.mxu0 0
      %4763 = vmatpush.bf16.xpose.msra.mxu0 0
      %4764 = vmatpush.bf16.xpose.msra.mxu0 0
      %4765 = vmatpush.bf16.xpose.msra.mxu0 0
      %4766 = vmatpush.bf16.xpose.msra.mxu0 %v4593
      %4767 = vmatpush.bf16.xpose.msra.mxu0 %v4577
      %4768 = vmatmul.bf16.gmra.mxu0 %v4413
      %v4769 = vpop.f32.mrf.mxu0
      %v4770 = vadd.f32 %v4752, %v4769
      %v4771 = vpop.f32.mrf.mxu0
      %v4772 = vadd.f32 %v4754, %v4771
      %4773 = vmatmul.bf16.gmra.mxu0 %v4429
      %v4774 = vpop.f32.mrf.mxu0
      %v4775 = vadd.f32 %v4757, %v4774
      %v4776 = vpop.f32.mrf.mxu0
      %4777 = vdwg.mxu0
      %4778 = vmatpush.bf16.xpose.msra.mxu0 0
      %4779 = vmatpush.bf16.xpose.msra.mxu0 0
      %4780 = vmatpush.bf16.xpose.msra.mxu0 0
      %4781 = vmatpush.bf16.xpose.msra.mxu0 0
      %4782 = vmatpush.bf16.xpose.msra.mxu0 0
      %4783 = vmatpush.bf16.xpose.msra.mxu0 0
      %4784 = vmatpush.bf16.xpose.msra.mxu0 %v4594
      %4785 = vmatpush.bf16.xpose.msra.mxu0 %v4578
      %4786 = vmatmul.bf16.gmra.mxu0 %v4414
      %v4787 = vpop.f32.mrf.mxu0
      %v4788 = vadd.f32 %v4770, %v4787
      %v4789 = vpop.f32.mrf.mxu0
      %v4790 = vadd.f32 %v4772, %v4789
      %4791 = vmatmul.bf16.gmra.mxu0 %v4430
      %v4792 = vpop.f32.mrf.mxu0
      %v4793 = vadd.f32 %v4775, %v4792
      %v4794 = vpop.f32.mrf.mxu0
      %4795 = vdwg.mxu0
      %4796 = vmatpush.bf16.xpose.msra.mxu0 0
      %4797 = vmatpush.bf16.xpose.msra.mxu0 0
      %4798 = vmatpush.bf16.xpose.msra.mxu0 0
      %4799 = vmatpush.bf16.xpose.msra.mxu0 0
      %4800 = vmatpush.bf16.xpose.msra.mxu0 0
      %4801 = vmatpush.bf16.xpose.msra.mxu0 0
      %4802 = vmatpush.bf16.xpose.msra.mxu0 %v4595
      %4803 = vmatpush.bf16.xpose.msra.mxu0 %v4579
      %4804 = vmatmul.bf16.gmra.mxu0 %v4415
      %v4805 = vpop.f32.mrf.mxu0
      %v4806 = vadd.f32 %v4788, %v4805
      %v4807 = vpop.f32.mrf.mxu0
      %v4808 = vadd.f32 %v4790, %v4807
      %4809 = vmatmul.bf16.gmra.mxu0 %v4431
      %v4810 = vpop.f32.mrf.mxu0
      %v4811 = vadd.f32 %v4793, %v4810
      %v4812 = vpop.f32.mrf.mxu0
      %4813 = vdwg.mxu0
      %4814 = vmatpush.bf16.xpose.msra.mxu0 0
      %4815 = vmatpush.bf16.xpose.msra.mxu0 0
      %4816 = vmatpush.bf16.xpose.msra.mxu0 0
      %4817 = vmatpush.bf16.xpose.msra.mxu0 0
      %4818 = vmatpush.bf16.xpose.msra.mxu0 0
      %4819 = vmatpush.bf16.xpose.msra.mxu0 0
      %4820 = vmatpush.bf16.xpose.msra.mxu0 %v4596
      %4821 = vmatpush.bf16.xpose.msra.mxu0 %v4580
      %4822 = vmatmul.bf16.gmra.mxu0 %v4416
      %v4823 = vpop.f32.mrf.mxu0
      %v4824 = vadd.f32 %v4806, %v4823
      %v4825 = vpop.f32.mrf.mxu0
      %v4826 = vadd.f32 %v4808, %v4825
      %4827 = vmatmul.bf16.gmra.mxu0 %v4432
      %v4828 = vpop.f32.mrf.mxu0
      %v4829 = vadd.f32 %v4811, %v4828
      %v4830 = vpop.f32.mrf.mxu0
      %4831 = vdwg.mxu0
      %4832 = vmatpush.bf16.xpose.msra.mxu0 0
      %4833 = vmatpush.bf16.xpose.msra.mxu0 0
      %4834 = vmatpush.bf16.xpose.msra.mxu0 0
      %4835 = vmatpush.bf16.xpose.msra.mxu0 0
      %4836 = vmatpush.bf16.xpose.msra.mxu0 0
      %4837 = vmatpush.bf16.xpose.msra.mxu0 0
      %4838 = vmatpush.bf16.xpose.msra.mxu0 %v4597
      %4839 = vmatpush.bf16.xpose.msra.mxu0 %v4581
      %4840 = vmatmul.bf16.gmra.mxu0 %v4417
      %v4841 = vpop.f32.mrf.mxu0
      %v4842 = vadd.f32 %v4824, %v4841
      %v4843 = vpop.f32.mrf.mxu0
      %v4844 = vadd.f32 %v4826, %v4843
      %4845 = vmatmul.bf16.gmra.mxu0 %v4433
      %v4846 = vpop.f32.mrf.mxu0
      %v4847 = vadd.f32 %v4829, %v4846
      %v4848 = vpop.f32.mrf.mxu0
      %4849 = vdwg.mxu0
      %4850 = vmatpush.bf16.xpose.msra.mxu0 0
      %4851 = vmatpush.bf16.xpose.msra.mxu0 0
      %4852 = vmatpush.bf16.xpose.msra.mxu0 0
      %4853 = vmatpush.bf16.xpose.msra.mxu0 0
      %4854 = vmatpush.bf16.xpose.msra.mxu0 0
      %4855 = vmatpush.bf16.xpose.msra.mxu0 0
      %4856 = vmatpush.bf16.xpose.msra.mxu0 %v4598
      %4857 = vmatpush.bf16.xpose.msra.mxu0 %v4582
      %4858 = vmatmul.bf16.gmra.mxu0 %v4418
      %v4859 = vpop.f32.mrf.mxu0
      %v4860 = vadd.f32 %v4842, %v4859
      %v4861 = vpop.f32.mrf.mxu0
      %v4862 = vadd.f32 %v4844, %v4861
      %4863 = vmatmul.bf16.gmra.mxu0 %v4434
      %v4864 = vpop.f32.mrf.mxu0
      %v4865 = vadd.f32 %v4847, %v4864
      %v4866 = vpop.f32.mrf.mxu0
      %4867 = vdwg.mxu0
      %4868 = vmatpush.bf16.xpose.msra.mxu0 0
      %4869 = vmatpush.bf16.xpose.msra.mxu0 0
      %4870 = vmatpush.bf16.xpose.msra.mxu0 0
      %4871 = vmatpush.bf16.xpose.msra.mxu0 0
      %4872 = vmatpush.bf16.xpose.msra.mxu0 0
      %4873 = vmatpush.bf16.xpose.msra.mxu0 0
      %4874 = vmatpush.bf16.xpose.msra.mxu0 %v4599
      %4875 = vmatpush.bf16.xpose.msra.mxu0 %v4583
      %4876 = vmatmul.bf16.gmra.mxu0 %v4419
      %v4877 = vpop.f32.mrf.mxu0
      %v4878 = vadd.f32 %v4860, %v4877
      %v4879 = vpop.f32.mrf.mxu0
      %v4880 = vadd.f32 %v4862, %v4879
      %4881 = vmatmul.bf16.gmra.mxu0 %v4435
      %v4882 = vpop.f32.mrf.mxu0
      %v4883 = vadd.f32 %v4865, %v4882
      %v4884 = vpop.f32.mrf.mxu0
      %4885 = vdwg.mxu0
      %4886 = vmatpush.bf16.xpose.msra.mxu0 0
      %4887 = vmatpush.bf16.xpose.msra.mxu0 0
      %4888 = vmatpush.bf16.xpose.msra.mxu0 0
      %4889 = vmatpush.bf16.xpose.msra.mxu0 0
      %4890 = vmatpush.bf16.xpose.msra.mxu0 0
      %4891 = vmatpush.bf16.xpose.msra.mxu0 0
      %4892 = vmatpush.bf16.xpose.msra.mxu0 %v4600
      %4893 = vmatpush.bf16.xpose.msra.mxu0 %v4584
      %4894 = vmatmul.bf16.gmra.mxu0 %v4420
      %v4895 = vpop.f32.mrf.mxu0
      %v4896 = vadd.f32 %v4878, %v4895
      %v4897 = vpop.f32.mrf.mxu0
      %v4898 = vadd.f32 %v4880, %v4897
      %4899 = vmatmul.bf16.gmra.mxu0 %v4436
      %v4900 = vpop.f32.mrf.mxu0
      %v4901 = vadd.f32 %v4883, %v4900
      %v4902 = vpop.f32.mrf.mxu0
      %4903 = vdwg.mxu0
      %4904 = vmatpush.bf16.xpose.msra.mxu0 0
      %4905 = vmatpush.bf16.xpose.msra.mxu0 0
      %4906 = vmatpush.bf16.xpose.msra.mxu0 0
      %4907 = vmatpush.bf16.xpose.msra.mxu0 0
      %4908 = vmatpush.bf16.xpose.msra.mxu0 0
      %4909 = vmatpush.bf16.xpose.msra.mxu0 0
      %4910 = vmatpush.bf16.xpose.msra.mxu0 %v4601
      %4911 = vmatpush.bf16.xpose.msra.mxu0 %v4585
      %4912 = vmatmul.bf16.gmra.mxu0 %v4421
      %v4913 = vpop.f32.mrf.mxu0
      %v4914 = vadd.f32 %v4896, %v4913
      %v4915 = vpop.f32.mrf.mxu0
      %v4916 = vadd.f32 %v4898, %v4915
      %4917 = vmatmul.bf16.gmra.mxu0 %v4437
      %v4918 = vpop.f32.mrf.mxu0
      %v4919 = vadd.f32 %v4901, %v4918
      %v4920 = vpop.f32.mrf.mxu0
      %4921 = vdwg.mxu0
      %v4925 = vrot.slane %v4914, 2
      %v4926 = vrot.slane %v4914, 4
      %v4927 = vrot.slane %v4914, 6
      %v4928 = vrot.slane %v4916, 2
      %v4929 = vrot.slane %v4916, 4
      %v4930 = vrot.slane %v4916, 6
      %v4931 = vrot.slane %v4919, 2
      %v4932 = vrot.slane %v4919, 4
      %v4933 = vrot.slane %v4919, 6
      %v4943 = vadd.f32 %v2697, %v4914
      %v4944 = vadd.f32 %v2698, %v4925
      %v4945 = vadd.f32 %v2699, %v4926
      %v4946 = vadd.f32 %v2700, %v4927
      %v4947 = vadd.f32 %v2701, %v4916
      %v4948 = vadd.f32 %v2702, %v4928
      %v4949 = vadd.f32 %v2703, %v4929
      %v4950 = vadd.f32 %v2704, %v4930
      %v4951 = vadd.f32 %v2705, %v4919
      %v4952 = vadd.f32 %v2706, %v4931
      %v4953 = vadd.f32 %v2707, %v4932
      %v4954 = vadd.f32 %v2708, %v4933
      %v4955 = vld [vmem:[%s11] sm:$0x1]
      %v4956 = vld [vmem:[%s12] sm:$0x1]
      %4969 = vst [vmem:[#allocation1] ss:$4 sm:$0xff] %v4943
      %s4970 = scalar_lea.vmem [#allocation1], 1
      %4971 = vst [vmem:[%s4970] ss:$4 sm:$0xff] %v4944
      %s4972 = scalar_lea.vmem [#allocation1], 2
      %4973 = vst [vmem:[%s4972] ss:$4 sm:$0xff] %v4945
      %s4974 = scalar_lea.vmem [#allocation1], 3
      %4975 = vst [vmem:[%s4974] ss:$4 sm:$0xff] %v4946
      %s4976 = scalar_lea.vmem [#allocation1], 32
      %4977 = vst [vmem:[%s4976] ss:$4 sm:$0xff] %v4947
      %s4978 = scalar_lea.vmem [#allocation1], 33
      %4979 = vst [vmem:[%s4978] ss:$4 sm:$0xff] %v4948
      %s4980 = scalar_lea.vmem [#allocation1], 34
      %4981 = vst [vmem:[%s4980] ss:$4 sm:$0xff] %v4949
      %s4982 = scalar_lea.vmem [#allocation1], 35
      %4983 = vst [vmem:[%s4982] ss:$4 sm:$0xff] %v4950
      %v4984 = vld.sshfl [vmem:[#allocation1] sm:$0xff pattern:$0x73625140]
      %v4985 = vld.sshfl [vmem:[#allocation1 + $0x20] sm:$0xff pattern:$0x73625140]
      %4986 = vst [vmem:[#allocation1] ss:$4 sm:$0xff] %v4951
      %4987 = vst [vmem:[%s4970] ss:$4 sm:$0xff] %v4952
      %4988 = vst [vmem:[%s4972] ss:$4 sm:$0xff] %v4953
      %4989 = vst [vmem:[%s4974] ss:$4 sm:$0xff] %v4954
      %v4990 = vld.sshfl [vmem:[#allocation1] sm:$0xff pattern:$0x73625140]
      %v4994 = vsel %vm542, %v4984, 0.0
      %4995 = vadd.xlane.f32.xlu0 %v4994
      %v4996 = vpop.xlane.xlu0 %4995
      %v4997 = vsel %vm542, %v4985, 0.0
      %4998 = vadd.xlane.f32.xlu0 %v4997
      %v4999 = vpop.xlane.xlu0 %4998
      %v5000 = vsel %vm542, %v4990, 0.0
      %5001 = vadd.xlane.f32.xlu0 %v5000
      %v5002 = vpop.xlane.xlu0 %5001
      %v5003 = vmul.f32 %v4996, %v2419
      %v5004 = vmul.f32 %v4999, %v2419
      %v5005 = vmul.f32 %v5002, %v2419
      %v5010 = vunpack.c.l.s4 269488144
      %v5011 = vunpack.c.0.s8 %v5010
      %v5012 = vperm.slane %v5003, %v5011
      %v5014 = vunpack.c.l.s4 842150450
      %v5015 = vunpack.c.0.s8 %v5014
      %v5016 = vperm.slane %v5003, %v5015
      %v5018 = vunpack.c.l.s4 1414812756
      %v5019 = vunpack.c.0.s8 %v5018
      %v5020 = vperm.slane %v5003, %v5019
      %v5022 = vunpack.c.l.s4 1987475062
      %v5023 = vunpack.c.0.s8 %v5022
      %v5024 = vperm.slane %v5003, %v5023
      %v5026 = vunpack.c.l.s4 269488144
      %v5027 = vunpack.c.0.s8 %v5026
      %v5028 = vperm.slane %v5004, %v5027
      %v5030 = vunpack.c.l.s4 842150450
      %v5031 = vunpack.c.0.s8 %v5030
      %v5032 = vperm.slane %v5004, %v5031
      %v5034 = vunpack.c.l.s4 1414812756
      %v5035 = vunpack.c.0.s8 %v5034
      %v5036 = vperm.slane %v5004, %v5035
      %v5038 = vunpack.c.l.s4 1987475062
      %v5039 = vunpack.c.0.s8 %v5038
      %v5040 = vperm.slane %v5004, %v5039
      %v5042 = vunpack.c.l.s4 269488144
      %v5043 = vunpack.c.0.s8 %v5042
      %v5044 = vperm.slane %v5005, %v5043
      %v5046 = vunpack.c.l.s4 842150450
      %v5047 = vunpack.c.0.s8 %v5046
      %v5048 = vperm.slane %v5005, %v5047
      %v5050 = vunpack.c.l.s4 1414812756
      %v5051 = vunpack.c.0.s8 %v5050
      %v5052 = vperm.slane %v5005, %v5051
      %v5054 = vunpack.c.l.s4 1987475062
      %v5055 = vunpack.c.0.s8 %v5054
      %v5056 = vperm.slane %v5005, %v5055
      %v5069 = vsub.f32 %v4943, %v5012
      %v5070 = vsub.f32 %v4944, %v5016
      %v5071 = vsub.f32 %v4945, %v5020
      %v5072 = vsub.f32 %v4946, %v5024
      %v5073 = vsub.f32 %v4947, %v5028
      %v5074 = vsub.f32 %v4948, %v5032
      %v5075 = vsub.f32 %v4949, %v5036
      %v5076 = vsub.f32 %v4950, %v5040
      %v5077 = vsub.f32 %v4951, %v5044
      %v5078 = vsub.f32 %v4952, %v5048
      %v5079 = vsub.f32 %v4953, %v5052
      %v5080 = vsub.f32 %v4954, %v5056
      %v5081 = vmul.f32 %v5069, %v5069
      %v5082 = vmul.f32 %v5070, %v5070
      %v5083 = vmul.f32 %v5071, %v5071
      %v5084 = vmul.f32 %v5072, %v5072
      %v5085 = vmul.f32 %v5073, %v5073
      %v5086 = vmul.f32 %v5074, %v5074
      %v5087 = vmul.f32 %v5075, %v5075
      %v5088 = vmul.f32 %v5076, %v5076
      %v5089 = vmul.f32 %v5077, %v5077
      %v5090 = vmul.f32 %v5078, %v5078
      %v5091 = vmul.f32 %v5079, %v5079
      %v5092 = vmul.f32 %v5080, %v5080
      %5105 = vst [vmem:[#allocation1] ss:$4 sm:$0xff] %v5081
      %s5106 = scalar_lea.vmem [#allocation1], 1
      %5107 = vst [vmem:[%s5106] ss:$4 sm:$0xff] %v5082
      %s5108 = scalar_lea.vmem [#allocation1], 2
      %5109 = vst [vmem:[%s5108] ss:$4 sm:$0xff] %v5083
      %s5110 = scalar_lea.vmem [#allocation1], 3
      %5111 = vst [vmem:[%s5110] ss:$4 sm:$0xff] %v5084
      %s5112 = scalar_lea.vmem [#allocation1], 32
      %5113 = vst [vmem:[%s5112] ss:$4 sm:$0xff] %v5085
      %s5114 = scalar_lea.vmem [#allocation1], 33
      %5115 = vst [vmem:[%s5114] ss:$4 sm:$0xff] %v5086
      %s5116 = scalar_lea.vmem [#allocation1], 34
      %5117 = vst [vmem:[%s5116] ss:$4 sm:$0xff] %v5087
      %s5118 = scalar_lea.vmem [#allocation1], 35
      %5119 = vst [vmem:[%s5118] ss:$4 sm:$0xff] %v5088
      %v5120 = vld.sshfl [vmem:[#allocation1] sm:$0xff pattern:$0x73625140]
      %v5121 = vld.sshfl [vmem:[#allocation1 + $0x20] sm:$0xff pattern:$0x73625140]
      %5122 = vst [vmem:[#allocation1] ss:$4 sm:$0xff] %v5089
      %5123 = vst [vmem:[%s5106] ss:$4 sm:$0xff] %v5090
      %5124 = vst [vmem:[%s5108] ss:$4 sm:$0xff] %v5091
      %5125 = vst [vmem:[%s5110] ss:$4 sm:$0xff] %v5092
      %v5126 = vld.sshfl [vmem:[#allocation1] sm:$0xff pattern:$0x73625140]
      %v5130 = vsel %vm542, %v5120, 0.0
      %5131 = vadd.xlane.f32.xlu0 %v5130
      %v5132 = vpop.xlane.xlu0 %5131
      %v5133 = vsel %vm542, %v5121, 0.0
      %5134 = vadd.xlane.f32.xlu0 %v5133
      %v5135 = vpop.xlane.xlu0 %5134
      %v5136 = vsel %vm542, %v5126, 0.0
      %5137 = vadd.xlane.f32.xlu0 %v5136
      %v5138 = vpop.xlane.xlu0 %5137
      %v5139 = vmul.f32 %v5132, %v2419
      %v5140 = vmul.f32 %v5135, %v2419
      %v5141 = vmul.f32 %v5138, %v2419
      %v5142 = vadd.f32 %v5139, 1e-05
      %v5143 = vadd.f32 %v5140, 1e-05
      %v5144 = vadd.f32 %v5141, 1e-05
      %v5145 = vrsqrt.pop %v5142
      %v5146 = vmul.f32 %v5145, %v5142
      %v5147 = vmul.f32 %v5146, %v5145
      %v5148 = vmul.f32 0.5, %v5147
      %v5149 = vsub.f32 1.5, %v5148
      %v5150 = vmul.f32 %v5145, %v5149
      %vm5151 = vweird.f32 %v5142
      %vm5152 = vweird.f32 %v5145
      %vm5153 = vmor %vm5151, %vm5152
      %v5154 = vsel %vm5153, %v5145, %v5150
      %v5155 = vrsqrt.pop %v5143
      %v5156 = vmul.f32 %v5155, %v5143
      %v5157 = vmul.f32 %v5156, %v5155
      %v5158 = vmul.f32 0.5, %v5157
      %v5159 = vsub.f32 1.5, %v5158
      %v5160 = vmul.f32 %v5155, %v5159
      %vm5161 = vweird.f32 %v5143
      %vm5162 = vweird.f32 %v5155
      %vm5163 = vmor %vm5161, %vm5162
      %v5164 = vsel %vm5163, %v5155, %v5160
      %v5165 = vrsqrt.pop %v5144
      %v5166 = vmul.f32 %v5165, %v5144
      %v5167 = vmul.f32 %v5166, %v5165
      %v5168 = vmul.f32 0.5, %v5167
      %v5169 = vsub.f32 1.5, %v5168
      %v5170 = vmul.f32 %v5165, %v5169
      %vm5171 = vweird.f32 %v5144
      %vm5172 = vweird.f32 %v5165
      %vm5173 = vmor %vm5171, %vm5172
      %v5174 = vsel %vm5173, %v5165, %v5170
      %v5179 = vunpack.c.l.s4 269488144
      %v5180 = vunpack.c.0.s8 %v5179
      %v5181 = vperm.slane %v5154, %v5180
      %v5183 = vunpack.c.l.s4 842150450
      %v5184 = vunpack.c.0.s8 %v5183
      %v5185 = vperm.slane %v5154, %v5184
      %v5187 = vunpack.c.l.s4 1414812756
      %v5188 = vunpack.c.0.s8 %v5187
      %v5189 = vperm.slane %v5154, %v5188
      %v5191 = vunpack.c.l.s4 1987475062
      %v5192 = vunpack.c.0.s8 %v5191
      %v5193 = vperm.slane %v5154, %v5192
      %v5195 = vunpack.c.l.s4 269488144
      %v5196 = vunpack.c.0.s8 %v5195
      %v5197 = vperm.slane %v5164, %v5196
      %v5199 = vunpack.c.l.s4 842150450
      %v5200 = vunpack.c.0.s8 %v5199
      %v5201 = vperm.slane %v5164, %v5200
      %v5203 = vunpack.c.l.s4 1414812756
      %v5204 = vunpack.c.0.s8 %v5203
      %v5205 = vperm.slane %v5164, %v5204
      %v5207 = vunpack.c.l.s4 1987475062
      %v5208 = vunpack.c.0.s8 %v5207
      %v5209 = vperm.slane %v5164, %v5208
      %v5211 = vunpack.c.l.s4 269488144
      %v5212 = vunpack.c.0.s8 %v5211
      %v5213 = vperm.slane %v5174, %v5212
      %v5215 = vunpack.c.l.s4 842150450
      %v5216 = vunpack.c.0.s8 %v5215
      %v5217 = vperm.slane %v5174, %v5216
      %v5219 = vunpack.c.l.s4 1414812756
      %v5220 = vunpack.c.0.s8 %v5219
      %v5221 = vperm.slane %v5174, %v5220
      %v5223 = vunpack.c.l.s4 1987475062
      %v5224 = vunpack.c.0.s8 %v5223
      %v5225 = vperm.slane %v5174, %v5224
      %v5238 = vmul.f32 %v5069, %v5181
      %v5239 = vmul.f32 %v5070, %v5185
      %v5240 = vmul.f32 %v5071, %v5189
      %v5241 = vmul.f32 %v5072, %v5193
      %v5242 = vmul.f32 %v5073, %v5197
      %v5243 = vmul.f32 %v5074, %v5201
      %v5244 = vmul.f32 %v5075, %v5205
      %v5245 = vmul.f32 %v5076, %v5209
      %v5246 = vmul.f32 %v5077, %v5213
      %v5247 = vmul.f32 %v5078, %v5217
      %v5248 = vmul.f32 %v5079, %v5221
      %v5249 = vmul.f32 %v5080, %v5225
      %v5251 = vperm.slane %v4955, 0
      %v5253 = vrot.slane %v5251, 2
      %v5254 = vrot.slane %v5251, 4
      %v5255 = vrot.slane %v5251, 6
      %v5259 = vmul.f32 %v5238, %v5251
      %v5260 = vmul.f32 %v5239, %v5253
      %v5261 = vmul.f32 %v5240, %v5254
      %v5262 = vmul.f32 %v5241, %v5255
      %v5263 = vmul.f32 %v5242, %v5251
      %v5264 = vmul.f32 %v5243, %v5253
      %v5265 = vmul.f32 %v5244, %v5254
      %v5266 = vmul.f32 %v5245, %v5255
      %v5267 = vmul.f32 %v5246, %v5251
      %v5268 = vmul.f32 %v5247, %v5253
      %v5269 = vmul.f32 %v5248, %v5254
      %v5270 = vmul.f32 %v5249, %v5255
      %v5272 = vperm.slane %v4956, 0
      %v5274 = vrot.slane %v5272, 2
      %v5275 = vrot.slane %v5272, 4
      %v5276 = vrot.slane %v5272, 6
      %v5280 = vadd.f32 %v5259, %v5272
      %v5281 = vadd.f32 %v5260, %v5274
      %v5282 = vadd.f32 %v5261, %v5275
      %v5283 = vadd.f32 %v5262, %v5276
      %v5284 = vadd.f32 %v5263, %v5272
      %v5285 = vadd.f32 %v5264, %v5274
      %v5286 = vadd.f32 %v5265, %v5275
      %v5287 = vadd.f32 %v5266, %v5276
      %v5288 = vadd.f32 %v5267, %v5272
      %v5289 = vadd.f32 %v5268, %v5274
      %v5290 = vadd.f32 %v5269, %v5275
      %v5291 = vadd.f32 %v5270, %v5276
      %5304 = vst [vmem:[#allocation1] ss:$4 sm:$0xff] %v5280
      %s5305 = scalar_lea.vmem [#allocation1], 1
      %5306 = vst [vmem:[%s5305] ss:$4 sm:$0xff] %v5281
      %s5307 = scalar_lea.vmem [#allocation1], 2
      %5308 = vst [vmem:[%s5307] ss:$4 sm:$0xff] %v5282
      %v5309 = vld.sshfl [vmem:[#allocation1] sm:$0xff pattern:$0x73625140]
      %s5310 = scalar_lea.vmem [#allocation1], 32
      %5311 = vst [vmem:[%s5310] ss:$4 sm:$0xff] %v5283
      %s5312 = scalar_lea.vmem [#allocation1], 33
      %5313 = vst [vmem:[%s5312] ss:$4 sm:$0xff] %v5284
      %s5314 = scalar_lea.vmem [#allocation1], 34
      %5315 = vst [vmem:[%s5314] ss:$4 sm:$0xff] %v5285
      %v5316 = vld.sshfl [vmem:[#allocation1 + $0x20] sm:$0xff pattern:$0x73625140]
      %5317 = vst [vmem:[#allocation1] ss:$4 sm:$0xff] %v5286
      %5318 = vst [vmem:[%s5305] ss:$4 sm:$0xff] %v5287
      %5319 = vst [vmem:[%s5307] ss:$4 sm:$0xff] %v5288
      %v5320 = vld.sshfl [vmem:[#allocation1] sm:$0xff pattern:$0x73625140]
      %5321 = vst [vmem:[%s5310] ss:$4 sm:$0xff] %v5289
      %5322 = vst [vmem:[%s5312] ss:$4 sm:$0xff] %v5290
      %5323 = vst [vmem:[%s5314] ss:$4 sm:$0xff] %v5291
      %v5324 = vld.sshfl [vmem:[#allocation1 + $0x20] sm:$0xff pattern:$0x73625140]
      %vm5329 = vcmask 259072
      %5330 = vst.msk [vmem:[%s442] sm:$0x3f] %vm5329, %v5309
      %5331 = vst.msk [vmem:[%s442 + $0x8] sm:$0x3f] %vm5329, %v5316
      %5332 = vst.msk [vmem:[%s442 + $0x10] sm:$0x3f] %vm5329, %v5320
      %5333 = vst.msk [vmem:[%s442 + $0x18] sm:$0x3f] %vm5329, %v5324
      %s5334 = smul.u32 4, %s24
      %p5335 = scmp.lt.s32.totalorder %s5334, 7
      %s5336 = scalar_select %p5335, %s5334, 7
      %s5337 = smul.addr %s5336, 8
      %s5338 = scalar_lea.vmem %s13, %s5337
      // Predicated region
      $region73: #{macode_forward.5} parent=71 // pred_check
        %p5339 = pneg %p320
      $region74: #{macode_forward.5} parent=71 // pred_check_branch
        %5341 = sbr.rel (%p5339) target = $region76
      $region75: #{macode_forward.5} parent=71 // pred_region
        %s5342 = smul.u32 4, %s24
      $region76: #{macode_forward.5} parent=71 // pred_fallthru
        _
    $region72: #{macode_forward.5} parent=5 // pred_fallthru
      _
    %p5343 = scmp.le.s32.totalorder 2, %s19
    // Predicated region
    $region77: #{macode_forward.5} parent=5 // pred_check
      %p5344 = pneg %p5343
    $region78: #{macode_forward.5} parent=5 // pred_check_branch
      %5346 = sbr.rel (%p5344) target = $region80
    $region79: #{macode_forward.5} parent=5 // pred_region
      %s5347 = ssub.s32 %s19, 2
      // Predicated region
      $region81: #{macode_forward.5} parent=79 // pred_check
        %p5348 = pneg %p326
      $region82: #{macode_forward.5} parent=79 // pred_check_branch
        %5350 = sbr.rel (%p5348) target = $region84
      $region83: #{macode_forward.5} parent=79 // pred_region
        %s5351 = smul.u32 4, %s25
        %p5352 = scmp.lt.s32.totalorder %s5351, 7
        %s5353 = scalar_select %p5352, %s5351, 7
        %s5354 = smul.addr %s5353, 8
        %s5355 = scalar_lea.vmem %s13, %s5354
      $region84: #{macode_forward.5} parent=79 // pred_fallthru
        _
    $region80: #{macode_forward.5} parent=5 // pred_fallthru
      _
  $region6: #{macode_forward.5} parent=0 // loop_footer
    %s23 = sadd.s32 1, %s19
  $region7: #{macode_forward.5} parent=0 // loop_footer_branch
    %18 = sbr.rel target = $region3
  $region8: #{macode_forward.5} parent=0 // loop_exit
    _

</llo_original>
